<compile_context>
chip_gen: v7x
topology: tpu7x:2x2x1
jax: 0.10.0
libtpu: 0.0.40
codegen_flags: <defaults>
</compile_context>

<pallas_src>
import functools

import jax
import jax.numpy as jnp
import numpy as np
from jax.experimental import pallas as pl
from jax.experimental.pallas import tpu as pltpu

HID = 32            # hidden_dim
INP = 64            # input_dim
B = 2
H = 8
W = 16
KS = 5              # separable kernel size
PAD = 2
M_IMG = H * W       # 128 matmul rows per image
KH = KS * HID       # 160 tap-stacked h contraction dim


# --------------------------------------------------------------------------
# Kernel
# --------------------------------------------------------------------------
def _sepconv_gru_kernel(h_ref, xczr_ref, xcq_ref, wh_ref, out_ref):
    f32 = jnp.float32
    g = h_ref.shape[0]                 # images folded into this block
    rows = g * W * H
    mm_dtype = wh_ref.dtype            # bf16 (default) or f32 matmul operands

    def im2col_w(a):
        # a: (g, W, H, HID) -> (rows, KS*HID); conv taps shift along W, which
        # is a major axis here, so the 5 tap slices are pure address offsets.
        zp = jnp.zeros((g, PAD, H, HID), a.dtype)
        ap = jnp.concatenate([zp, a, zp], axis=1)            # (g, W+4, H, HID)
        taps = [ap[:, k:k + W] for k in range(KS)]
        return jnp.concatenate(taps, axis=-1).reshape(rows, KH)

    def im2col_h(a):
        # a: (g, W, H, HID) -> (rows, KS*HID); conv taps shift along H (the
        # sublane axis) as static-offset slices -> no row reorder is needed
        # between the two passes (replaces the old permutation matmul).
        zp = jnp.zeros((g, W, PAD, HID), a.dtype)
        ap = jnp.concatenate([zp, a, zp], axis=2)            # (g, W, H+4, HID)
        taps = [ap[:, :, k:k + H] for k in range(KS)]
        return jnp.concatenate(taps, axis=-1).reshape(rows, KH)

    def gru_pass(h4d, im2col, whzr, whq, xczr, xcq):
        # h4d: (g, W, H, HID) f32.  whzr/whq: (KH, 2*HID) (q zero-padded).
        # xczr: (rows, 2*HID), xcq: (rows, HID) -- x conv + bias, precomputed.
        h_flat = h4d.reshape(rows, HID)

        s_zr = jnp.dot(im2col(h4d.astype(mm_dtype)), whzr,
                       preferred_element_type=f32) + xczr.astype(f32)
        zr = jax.nn.sigmoid(s_zr)
        z = zr[:, :HID]
        r = zr[:, HID:]

        rh = (r * h_flat).astype(mm_dtype).reshape(g, W, H, HID)
        s_q = jnp.dot(im2col(rh), whq,
                      preferred_element_type=f32)[:, :HID] + xcq.astype(f32)
        q = jnp.tanh(s_q)

        return (1.0 - z) * h_flat + z * q                     # (rows, HID) f32

    # pass 1: (1,5) conv, taps along W
    h1 = gru_pass(h_ref[...], im2col_w, wh_ref[0], wh_ref[1],
                  xczr_ref[0], xcq_ref[0])
    # pass 2: (5,1) conv, taps along H (same (b, w, h) row order, no reorder)
    h2 = gru_pass(h1.reshape(g, W, H, HID), im2col_h, wh_ref[2], wh_ref[3],
                  xczr_ref[1], xcq_ref[1])

    out_ref[...] = h2


# --------------------------------------------------------------------------
# Wrapper-side packing (layout plumbing + h-independent precompute)
# --------------------------------------------------------------------------
def _h_weight_slab(params, dtype):
    """All four h-side matmul weights in one (4, KH, 2*HID) slab.

    slab[0]=whzr pass1, slab[1]=whq pass1 (zero-padded to 64 cols),
    slab[2]=whzr pass2, slab[3]=whq pass2 (zero-padded).
    Row index = tap*HID + in_channel, matching the im2col column order.
    """
    def pack(names, horizontal):
        mats = []
        for name in names:
            w = params[f"w{name}"].astype(jnp.float32)        # (HID, HID+INP, kh, kw)
            taps = w[:, :HID, 0, :] if horizontal else w[:, :HID, :, 0]
            mats.append(jnp.transpose(taps, (2, 1, 0)).reshape(KH, HID))
        whzr = jnp.concatenate(mats[:2], axis=1)              # (KH, 64)  [z | r]
        whq = jnp.pad(mats[2], ((0, 0), (0, HID)))            # (KH, 64)  [q | 0]
        return whzr, whq

    whzr1, whq1 = pack(("z1", "r1", "q1"), True)
    whzr2, whq2 = pack(("z2", "r2", "q2"), False)
    return jnp.stack([whzr1, whq1, whzr2, whq2]).astype(dtype)  # (4, KH, 64)


def _xc_inputs(x_nchw, params, dtype):
    """Precompute the h-independent x contribution (x conv + bias) per pass,
    pre-split per gate group, rows ordered (b, w, h)."""
    bsz = x_nchw.shape[0]
    xf = x_nchw.astype(jnp.float32)

    def conv_x(name, pad):
        wx = params[f"w{name}"][:, HID:, :, :].astype(jnp.float32)
        y = jax.lax.conv_general_dilated(
            xf, wx, (1, 1), pad,
            dimension_numbers=("NCHW", "OIHW", "NCHW"),
            precision=jax.lax.Precision.HIGHEST)
        return y + params[f"b{name}"].astype(jnp.float32)[None, :, None, None]

    def pack(zc, rc, qc):
        zr = jnp.concatenate([zc, rc], axis=1)                       # (B,64,H,W)
        zr = jnp.transpose(zr, (0, 3, 2, 1)).reshape(bsz * W * H, 2 * HID)
        q = jnp.transpose(qc, (0, 3, 2, 1)).reshape(bsz * W * H, HID)
        return zr, q

    pad1 = [(0, 0), (PAD, PAD)]
    pad2 = [(PAD, PAD), (0, 0)]
    zr1, q1 = pack(conv_x("z1", pad1), conv_x("r1", pad1), conv_x("q1", pad1))
    zr2, q2 = pack(conv_x("z2", pad2), conv_x("r2", pad2), conv_x("q2", pad2))

    xczr = jnp.stack([zr1, zr2], axis=0).astype(dtype)               # (2,B*M,64)
    xcq = jnp.stack([q1, q2], axis=0).astype(dtype)                  # (2,B*M,32)
    return xczr, xcq


def _images_per_block(batch):
    """v7x (2 TensorCores/device): 1 image per grid step so the 'parallel'
    grid axis spreads the batch across cores.  Single-TC chips (v5e/v6e):
    fold the whole batch into one block -> M=256 matmul rows, grid=(1,)."""
    try:
        kind = jax.devices()[0].device_kind.lower()
    except Exception:  # pragma: no cover - defensive
        kind = ""
    multi_tc = ("v7" in kind) or ("7x" in kind)
    if multi_tc and batch % 2 == 0:
        return batch // 2
    return batch


@functools.partial(jax.jit, static_argnames=("use_bf16",))
def sep_conv_gru(h_nchw, x_nchw, params, use_bf16=True):
    assert h_nchw.shape == (B, HID, H, W)
    assert x_nchw.shape == (B, INP, H, W)
    mm_dtype = jnp.bfloat16 if use_bf16 else jnp.float32

    # Hidden state in (B, W, H, HID): H=8 (sublanes), HID=32 (lanes).
    h_whc = jnp.transpose(h_nchw, (0, 3, 2, 1)).astype(jnp.float32)
    xczr, xcq = _xc_inputs(x_nchw, params, mm_dtype)
    wh = _h_weight_slab(params, mm_dtype)

    g = _images_per_block(B)           # images folded per grid step
    grid = (B // g,)
    rows = g * M_IMG

    out = pl.pallas_call(
        _sepconv_gru_kernel,
        out_shape=jax.ShapeDtypeStruct((B * M_IMG, HID), jnp.float32),
        grid_spec=pltpu.PrefetchScalarGridSpec(
            num_scalar_prefetch=0,
            grid=grid,
            in_specs=[
                pl.BlockSpec((g, W, H, HID), lambda b: (b, 0, 0, 0)),
                pl.BlockSpec((2, rows, 2 * HID), lambda b: (0, b, 0)),
                pl.BlockSpec((2, rows, HID), lambda b: (0, b, 0)),
                # constant index map -> single DMA, weights stay VMEM-resident
                pl.BlockSpec((4, KH, 2 * HID), lambda b: (0, 0, 0)),
            ],
            out_specs=pl.BlockSpec((rows, HID), lambda b: (b, 0)),
        ),
        compiler_params=pltpu.CompilerParams(
            dimension_semantics=("parallel",)),
    )(h_whc, xczr, xcq, wh)

    out = out.reshape(B, W, H, HID)                # rows were (b, w, h) ordered
    return jnp.transpose(out, (0, 3, 2, 1))        # back to NCHW


# --------------------------------------------------------------------------
# Pure-JAX reference (mirrors the PyTorch module, NCHW)
# --------------------------------------------------------------------------
def _conv(x, w, b, pad):
    out = jax.lax.conv_general_dilated(
        x, w, window_strides=(1, 1), padding=pad,
        dimension_numbers=("NCHW", "OIHW", "NCHW"))
    return out + b[None, :, None, None]


def sep_conv_gru_ref(h, x, p):
    hx = jnp.concatenate([h, x], axis=1)
    z = jax.nn.sigmoid(_conv(hx, p["wz1"], p["bz1"], [(0, 0), (2, 2)]))
    r = jax.nn.sigmoid(_conv(hx, p["wr1"], p["br1"], [(0, 0), (2, 2)]))
    q = jnp.tanh(_conv(jnp.concatenate([r * h, x], axis=1),
                       p["wq1"], p["bq1"], [(0, 0), (2, 2)]))
    h = (1 - z) * h + z * q
    hx = jnp.concatenate([h, x], axis=1)
    z = jax.nn.sigmoid(_conv(hx, p["wz2"], p["bz2"], [(2, 2), (0, 0)]))
    r = jax.nn.sigmoid(_conv(hx, p["wr2"], p["br2"], [(2, 2), (0, 0)]))
    q = jnp.tanh(_conv(jnp.concatenate([r * h, x], axis=1),
                       p["wq2"], p["bq2"], [(2, 2), (0, 0)]))
    h = (1 - z) * h + z * q
    return h


if __name__ == "__main__":
    key = jax.random.PRNGKey(0)
    keys = jax.random.split(key, 16)
    cin = HID + INP
    params = {}
    i = 0
    for name, kh, kw in (("z1", 1, 5), ("r1", 1, 5), ("q1", 1, 5),
                         ("z2", 5, 1), ("r2", 5, 1), ("q2", 5, 1)):
        params[f"w{name}"] = 0.05 * jax.random.normal(
            keys[i], (HID, cin, kh, kw), jnp.float32)
        params[f"b{name}"] = 0.05 * jax.random.normal(
            keys[i + 1], (HID,), jnp.float32)
        i += 2
    h0 = jax.random.normal(keys[12], (B, HID, H, W), jnp.float32)
    x0 = jax.random.normal(keys[13], (B, INP, H, W), jnp.float32)

    ref = jax.block_until_ready(sep_conv_gru_ref(h0, x0, params))

    # Default path: bf16 MXU operands, f32 accumulation / element-wise math.
    # Tolerance 2e-2 budgets bf16 operand rounding across two chained GRU
    # passes (estimated worst-case element error ~1e-2).
    out_bf16 = jax.block_until_ready(sep_conv_gru(h0, x0, params, use_bf16=True))
    assert out_bf16.shape == (B, HID, H, W)
    np.testing.assert_allclose(np.asarray(out_bf16), np.asarray(ref),
                               atol=2e-2, rtol=2e-2)

    # Full-precision path keeps the original tight match with the reference.
    out_f32 = jax.block_until_ready(sep_conv_gru(h0, x0, params, use_bf16=False))
    np.testing.assert_allclose(np.asarray(out_f32), np.asarray(ref),
                               atol=2e-3, rtol=2e-3)

    print("KERNEL_OK")
</pallas_src>

<mosaic_0001>
module attributes {stable_mosaic.version = 11 : i64} {
  func.func @_sepconv_gru_kernel(%arg0: i32, %arg1: memref<2x16x8x32xf32, #tpu.memory_space<vmem>>, %arg2: memref<2x256x64xbf16, #tpu.memory_space<vmem>>, %arg3: memref<2x256x32xbf16, #tpu.memory_space<vmem>>, %arg4: memref<4x160x64xbf16, #tpu.memory_space<vmem>>, %arg5: memref<256x32xf32, #tpu.memory_space<vmem>>) attributes {dimension_semantics = [#tpu.dimension_semantics<parallel>], iteration_bounds = array<i64: 1>, scalar_prefetch = 0 : i64, scratch_operands = 0 : i64, tpu.core_type = #tpu.core_type<tc>, window_params = [{transform_indices = @transform_0, window_bounds = array<i64: 2, 16, 8, 32>}, {transform_indices = @transform_1, window_bounds = array<i64: 2, 256, 64>}, {transform_indices = @transform_2, window_bounds = array<i64: 2, 256, 32>}, {pipeline_mode = #tpu.pipeline_mode<synchronous>, transform_indices = @transform_3, window_bounds = array<i64: 4, 160, 64>}, {transform_indices = @transform_4, window_bounds = array<i64: 256, 32>}]} {
    %c0 = arith.constant 0 : index
    %c0_0 = arith.constant 0 : index
    %c0_1 = arith.constant 0 : index
    %c0_2 = arith.constant 0 : index
    %0 = vector.load %arg1[%c0, %c0_0, %c0_1, %c0_2] : memref<2x16x8x32xf32, #tpu.memory_space<vmem>>, vector<2x16x8x32xf32>
    %c0_3 = arith.constant 0 : index
    %c0_4 = arith.constant 0 : index
    %c0_5 = arith.constant 0 : index
    %1 = vector.load %arg4[%c0_3, %c0_4, %c0_5] : memref<4x160x64xbf16, #tpu.memory_space<vmem>>, vector<1x160x64xbf16>
    %2 = vector.shape_cast %1 : vector<1x160x64xbf16> to vector<160x64xbf16>
    %c1 = arith.constant 1 : index
    %c0_6 = arith.constant 0 : index
    %c0_7 = arith.constant 0 : index
    %3 = vector.load %arg4[%c1, %c0_6, %c0_7] : memref<4x160x64xbf16, #tpu.memory_space<vmem>>, vector<1x160x64xbf16>
    %4 = vector.shape_cast %3 : vector<1x160x64xbf16> to vector<160x64xbf16>
    %c0_8 = arith.constant 0 : index
    %c0_9 = arith.constant 0 : index
    %c0_10 = arith.constant 0 : index
    %5 = vector.load %arg2[%c0_8, %c0_9, %c0_10] : memref<2x256x64xbf16, #tpu.memory_space<vmem>>, vector<1x256x64xbf16>
    %6 = vector.shape_cast %5 : vector<1x256x64xbf16> to vector<256x64xbf16>
    %c0_11 = arith.constant 0 : index
    %c0_12 = arith.constant 0 : index
    %c0_13 = arith.constant 0 : index
    %7 = vector.load %arg3[%c0_11, %c0_12, %c0_13] : memref<2x256x32xbf16, #tpu.memory_space<vmem>>, vector<1x256x32xbf16>
    %8 = vector.shape_cast %7 : vector<1x256x32xbf16> to vector<256x32xbf16>
    %9 = vector.shape_cast %0 : vector<2x16x8x32xf32> to vector<256x32xf32>
    %10 = arith.truncf %0 : vector<2x16x8x32xf32> to vector<2x16x8x32xbf16>
    %cst = arith.constant 0.000000e+00 : bf16
    %11 = vector.broadcast %cst : bf16 to vector<2x2x8x32xbf16>
    %12 = tpu.concatenate %11, %10, %11 in 1 : vector<2x2x8x32xbf16>, vector<2x16x8x32xbf16>, vector<2x2x8x32xbf16> -> vector<2x20x8x32xbf16>
    %13 = vector.extract_strided_slice %12 {offsets = [0, 0, 0, 0], sizes = [2, 16, 8, 32], strides = [1, 1, 1, 1]} : vector<2x20x8x32xbf16> to vector<2x16x8x32xbf16>
    %14 = vector.extract_strided_slice %12 {offsets = [0, 1, 0, 0], sizes = [2, 16, 8, 32], strides = [1, 1, 1, 1]} : vector<2x20x8x32xbf16> to vector<2x16x8x32xbf16>
    %15 = vector.extract_strided_slice %12 {offsets = [0, 2, 0, 0], sizes = [2, 16, 8, 32], strides = [1, 1, 1, 1]} : vector<2x20x8x32xbf16> to vector<2x16x8x32xbf16>
    %16 = vector.extract_strided_slice %12 {offsets = [0, 3, 0, 0], sizes = [2, 16, 8, 32], strides = [1, 1, 1, 1]} : vector<2x20x8x32xbf16> to vector<2x16x8x32xbf16>
    %17 = vector.extract_strided_slice %12 {offsets = [0, 4, 0, 0], sizes = [2, 16, 8, 32], strides = [1, 1, 1, 1]} : vector<2x20x8x32xbf16> to vector<2x16x8x32xbf16>
    %18 = tpu.concatenate %13, %14, %15, %16, %17 in 3 : vector<2x16x8x32xbf16>, vector<2x16x8x32xbf16>, vector<2x16x8x32xbf16>, vector<2x16x8x32xbf16>, vector<2x16x8x32xbf16> -> vector<2x16x8x160xbf16>
    %19 = vector.shape_cast %18 : vector<2x16x8x160xbf16> to vector<256x160xbf16>
    %cst_14 = arith.constant dense<0.000000e+00> : vector<256x64xf32>
    %20 = tpu.matmul %19, %2, %cst_14 {dimension_numbers = #tpu.dot_dimension_numbers<[1], [0], [0], [1], [0, 0, 1, 1], [], []>} : vector<256x160xbf16>, vector<160x64xbf16>, vector<256x64xf32> -> vector<256x64xf32>
    %21 = arith.extf %6 : vector<256x64xbf16> to vector<256x64xf32>
    %22 = arith.addf %20, %21 : vector<256x64xf32>
    %23 = arith.negf %22 : vector<256x64xf32>
    %24 = math.exp %23 : vector<256x64xf32>
    %cst_15 = arith.constant 1.000000e+00 : f32
    %25 = vector.broadcast %cst_15 : f32 to vector<256x64xf32>
    %26 = arith.addf %25, %24 : vector<256x64xf32>
    %27 = arith.divf %25, %26 : vector<256x64xf32>
    %28 = vector.extract_strided_slice %27 {offsets = [0, 0], sizes = [256, 32], strides = [1, 1]} : vector<256x64xf32> to vector<256x32xf32>
    %29 = vector.extract_strided_slice %27 {offsets = [0, 32], sizes = [256, 32], strides = [1, 1]} : vector<256x64xf32> to vector<256x32xf32>
    %30 = arith.mulf %29, %9 : vector<256x32xf32>
    %31 = arith.truncf %30 : vector<256x32xf32> to vector<256x32xbf16>
    %32 = vector.shape_cast %31 : vector<256x32xbf16> to vector<2x16x8x32xbf16>
    %cst_16 = arith.constant 0.000000e+00 : bf16
    %33 = vector.broadcast %cst_16 : bf16 to vector<2x2x8x32xbf16>
    %34 = tpu.concatenate %33, %32, %33 in 1 : vector<2x2x8x32xbf16>, vector<2x16x8x32xbf16>, vector<2x2x8x32xbf16> -> vector<2x20x8x32xbf16>
    %35 = vector.extract_strided_slice %34 {offsets = [0, 0, 0, 0], sizes = [2, 16, 8, 32], strides = [1, 1, 1, 1]} : vector<2x20x8x32xbf16> to vector<2x16x8x32xbf16>
    %36 = vector.extract_strided_slice %34 {offsets = [0, 1, 0, 0], sizes = [2, 16, 8, 32], strides = [1, 1, 1, 1]} : vector<2x20x8x32xbf16> to vector<2x16x8x32xbf16>
    %37 = vector.extract_strided_slice %34 {offsets = [0, 2, 0, 0], sizes = [2, 16, 8, 32], strides = [1, 1, 1, 1]} : vector<2x20x8x32xbf16> to vector<2x16x8x32xbf16>
    %38 = vector.extract_strided_slice %34 {offsets = [0, 3, 0, 0], sizes = [2, 16, 8, 32], strides = [1, 1, 1, 1]} : vector<2x20x8x32xbf16> to vector<2x16x8x32xbf16>
    %39 = vector.extract_strided_slice %34 {offsets = [0, 4, 0, 0], sizes = [2, 16, 8, 32], strides = [1, 1, 1, 1]} : vector<2x20x8x32xbf16> to vector<2x16x8x32xbf16>
    %40 = tpu.concatenate %35, %36, %37, %38, %39 in 3 : vector<2x16x8x32xbf16>, vector<2x16x8x32xbf16>, vector<2x16x8x32xbf16>, vector<2x16x8x32xbf16>, vector<2x16x8x32xbf16> -> vector<2x16x8x160xbf16>
    %41 = vector.shape_cast %40 : vector<2x16x8x160xbf16> to vector<256x160xbf16>
    %cst_17 = arith.constant dense<0.000000e+00> : vector<256x64xf32>
    %42 = tpu.matmul %41, %4, %cst_17 {dimension_numbers = #tpu.dot_dimension_numbers<[1], [0], [0], [1], [0, 0, 1, 1], [], []>} : vector<256x160xbf16>, vector<160x64xbf16>, vector<256x64xf32> -> vector<256x64xf32>
    %43 = vector.extract_strided_slice %42 {offsets = [0, 0], sizes = [256, 32], strides = [1, 1]} : vector<256x64xf32> to vector<256x32xf32>
    %44 = arith.extf %8 : vector<256x32xbf16> to vector<256x32xf32>
    %45 = arith.addf %43, %44 : vector<256x32xf32>
    %46 = math.tanh %45 : vector<256x32xf32>
    %cst_18 = arith.constant 1.000000e+00 : f32
    %47 = vector.broadcast %cst_18 : f32 to vector<256x32xf32>
    %48 = arith.subf %47, %28 : vector<256x32xf32>
    %49 = arith.mulf %48, %9 : vector<256x32xf32>
    %50 = arith.mulf %28, %46 : vector<256x32xf32>
    %51 = arith.addf %49, %50 : vector<256x32xf32>
    %52 = vector.shape_cast %51 : vector<256x32xf32> to vector<2x16x8x32xf32>
    %c2 = arith.constant 2 : index
    %c0_19 = arith.constant 0 : index
    %c0_20 = arith.constant 0 : index
    %53 = vector.load %arg4[%c2, %c0_19, %c0_20] : memref<4x160x64xbf16, #tpu.memory_space<vmem>>, vector<1x160x64xbf16>
    %54 = vector.shape_cast %53 : vector<1x160x64xbf16> to vector<160x64xbf16>
    %c3 = arith.constant 3 : index
    %c0_21 = arith.constant 0 : index
    %c0_22 = arith.constant 0 : index
    %55 = vector.load %arg4[%c3, %c0_21, %c0_22] : memref<4x160x64xbf16, #tpu.memory_space<vmem>>, vector<1x160x64xbf16>
    %56 = vector.shape_cast %55 : vector<1x160x64xbf16> to vector<160x64xbf16>
    %c1_23 = arith.constant 1 : index
    %c0_24 = arith.constant 0 : index
    %c0_25 = arith.constant 0 : index
    %57 = vector.load %arg2[%c1_23, %c0_24, %c0_25] : memref<2x256x64xbf16, #tpu.memory_space<vmem>>, vector<1x256x64xbf16>
    %58 = vector.shape_cast %57 : vector<1x256x64xbf16> to vector<256x64xbf16>
    %c1_26 = arith.constant 1 : index
    %c0_27 = arith.constant 0 : index
    %c0_28 = arith.constant 0 : index
    %59 = vector.load %arg3[%c1_26, %c0_27, %c0_28] : memref<2x256x32xbf16, #tpu.memory_space<vmem>>, vector<1x256x32xbf16>
    %60 = vector.shape_cast %59 : vector<1x256x32xbf16> to vector<256x32xbf16>
    %61 = vector.shape_cast %52 : vector<2x16x8x32xf32> to vector<256x32xf32>
    %62 = arith.truncf %52 : vector<2x16x8x32xf32> to vector<2x16x8x32xbf16>
    %cst_29 = arith.constant 0.000000e+00 : bf16
    %63 = vector.broadcast %cst_29 : bf16 to vector<2x16x2x32xbf16>
    %64 = tpu.concatenate %63, %62, %63 in 2 : vector<2x16x2x32xbf16>, vector<2x16x8x32xbf16>, vector<2x16x2x32xbf16> -> vector<2x16x12x32xbf16>
    %65 = vector.extract_strided_slice %64 {offsets = [0, 0, 0, 0], sizes = [2, 16, 8, 32], strides = [1, 1, 1, 1]} : vector<2x16x12x32xbf16> to vector<2x16x8x32xbf16>
    %66 = vector.extract_strided_slice %64 {offsets = [0, 0, 1, 0], sizes = [2, 16, 8, 32], strides = [1, 1, 1, 1]} : vector<2x16x12x32xbf16> to vector<2x16x8x32xbf16>
    %67 = vector.extract_strided_slice %64 {offsets = [0, 0, 2, 0], sizes = [2, 16, 8, 32], strides = [1, 1, 1, 1]} : vector<2x16x12x32xbf16> to vector<2x16x8x32xbf16>
    %68 = vector.extract_strided_slice %64 {offsets = [0, 0, 3, 0], sizes = [2, 16, 8, 32], strides = [1, 1, 1, 1]} : vector<2x16x12x32xbf16> to vector<2x16x8x32xbf16>
    %69 = vector.extract_strided_slice %64 {offsets = [0, 0, 4, 0], sizes = [2, 16, 8, 32], strides = [1, 1, 1, 1]} : vector<2x16x12x32xbf16> to vector<2x16x8x32xbf16>
    %70 = tpu.concatenate %65, %66, %67, %68, %69 in 3 : vector<2x16x8x32xbf16>, vector<2x16x8x32xbf16>, vector<2x16x8x32xbf16>, vector<2x16x8x32xbf16>, vector<2x16x8x32xbf16> -> vector<2x16x8x160xbf16>
    %71 = vector.shape_cast %70 : vector<2x16x8x160xbf16> to vector<256x160xbf16>
    %cst_30 = arith.constant dense<0.000000e+00> : vector<256x64xf32>
    %72 = tpu.matmul %71, %54, %cst_30 {dimension_numbers = #tpu.dot_dimension_numbers<[1], [0], [0], [1], [0, 0, 1, 1], [], []>} : vector<256x160xbf16>, vector<160x64xbf16>, vector<256x64xf32> -> vector<256x64xf32>
    %73 = arith.extf %58 : vector<256x64xbf16> to vector<256x64xf32>
    %74 = arith.addf %72, %73 : vector<256x64xf32>
    %75 = arith.negf %74 : vector<256x64xf32>
    %76 = math.exp %75 : vector<256x64xf32>
    %cst_31 = arith.constant 1.000000e+00 : f32
    %77 = vector.broadcast %cst_31 : f32 to vector<256x64xf32>
    %78 = arith.addf %77, %76 : vector<256x64xf32>
    %79 = arith.divf %77, %78 : vector<256x64xf32>
    %80 = vector.extract_strided_slice %79 {offsets = [0, 0], sizes = [256, 32], strides = [1, 1]} : vector<256x64xf32> to vector<256x32xf32>
    %81 = vector.extract_strided_slice %79 {offsets = [0, 32], sizes = [256, 32], strides = [1, 1]} : vector<256x64xf32> to vector<256x32xf32>
    %82 = arith.mulf %81, %61 : vector<256x32xf32>
    %83 = arith.truncf %82 : vector<256x32xf32> to vector<256x32xbf16>
    %84 = vector.shape_cast %83 : vector<256x32xbf16> to vector<2x16x8x32xbf16>
    %cst_32 = arith.constant 0.000000e+00 : bf16
    %85 = vector.broadcast %cst_32 : bf16 to vector<2x16x2x32xbf16>
    %86 = tpu.concatenate %85, %84, %85 in 2 : vector<2x16x2x32xbf16>, vector<2x16x8x32xbf16>, vector<2x16x2x32xbf16> -> vector<2x16x12x32xbf16>
    %87 = vector.extract_strided_slice %86 {offsets = [0, 0, 0, 0], sizes = [2, 16, 8, 32], strides = [1, 1, 1, 1]} : vector<2x16x12x32xbf16> to vector<2x16x8x32xbf16>
    %88 = vector.extract_strided_slice %86 {offsets = [0, 0, 1, 0], sizes = [2, 16, 8, 32], strides = [1, 1, 1, 1]} : vector<2x16x12x32xbf16> to vector<2x16x8x32xbf16>
    %89 = vector.extract_strided_slice %86 {offsets = [0, 0, 2, 0], sizes = [2, 16, 8, 32], strides = [1, 1, 1, 1]} : vector<2x16x12x32xbf16> to vector<2x16x8x32xbf16>
    %90 = vector.extract_strided_slice %86 {offsets = [0, 0, 3, 0], sizes = [2, 16, 8, 32], strides = [1, 1, 1, 1]} : vector<2x16x12x32xbf16> to vector<2x16x8x32xbf16>
    %91 = vector.extract_strided_slice %86 {offsets = [0, 0, 4, 0], sizes = [2, 16, 8, 32], strides = [1, 1, 1, 1]} : vector<2x16x12x32xbf16> to vector<2x16x8x32xbf16>
    %92 = tpu.concatenate %87, %88, %89, %90, %91 in 3 : vector<2x16x8x32xbf16>, vector<2x16x8x32xbf16>, vector<2x16x8x32xbf16>, vector<2x16x8x32xbf16>, vector<2x16x8x32xbf16> -> vector<2x16x8x160xbf16>
    %93 = vector.shape_cast %92 : vector<2x16x8x160xbf16> to vector<256x160xbf16>
    %cst_33 = arith.constant dense<0.000000e+00> : vector<256x64xf32>
    %94 = tpu.matmul %93, %56, %cst_33 {dimension_numbers = #tpu.dot_dimension_numbers<[1], [0], [0], [1], [0, 0, 1, 1], [], []>} : vector<256x160xbf16>, vector<160x64xbf16>, vector<256x64xf32> -> vector<256x64xf32>
    %95 = vector.extract_strided_slice %94 {offsets = [0, 0], sizes = [256, 32], strides = [1, 1]} : vector<256x64xf32> to vector<256x32xf32>
    %96 = arith.extf %60 : vector<256x32xbf16> to vector<256x32xf32>
    %97 = arith.addf %95, %96 : vector<256x32xf32>
    %98 = math.tanh %97 : vector<256x32xf32>
    %cst_34 = arith.constant 1.000000e+00 : f32
    %99 = vector.broadcast %cst_34 : f32 to vector<256x32xf32>
    %100 = arith.subf %99, %80 : vector<256x32xf32>
    %101 = arith.mulf %100, %61 : vector<256x32xf32>
    %102 = arith.mulf %80, %98 : vector<256x32xf32>
    %103 = arith.addf %101, %102 : vector<256x32xf32>
    %c0_35 = arith.constant 0 : index
    %c0_36 = arith.constant 0 : index
    %104 = vector.load %arg5[%c0_35, %c0_36] : memref<256x32xf32, #tpu.memory_space<vmem>>, vector<256x32xf32>
    tpu.vector_store %arg5[%c0_35, %c0_36], %103 {strides = array<i32>} : memref<256x32xf32, #tpu.memory_space<vmem>>, vector<256x32xf32>,
    return
  }
  func.func @transform_0(%arg0: i32) -> (i32, i32, i32, i32) {
    %c0_i32 = arith.constant 0 : i32
    %c0_i32_0 = arith.constant 0 : i32
    %c0_i32_1 = arith.constant 0 : i32
    %c0_i32_2 = arith.constant 0 : i32
    return %arg0, %c0_i32, %c0_i32_0, %c0_i32_1 : i32, i32, i32, i32
  }
  func.func @transform_1(%arg0: i32) -> (i32, i32, i32) {
    %c0_i32 = arith.constant 0 : i32
    %c0_i32_0 = arith.constant 0 : i32
    %c0_i32_1 = arith.constant 0 : i32
    return %c0_i32, %arg0, %c0_i32_0 : i32, i32, i32
  }
  func.func @transform_2(%arg0: i32) -> (i32, i32, i32) {
    %c0_i32 = arith.constant 0 : i32
    %c0_i32_0 = arith.constant 0 : i32
    %c0_i32_1 = arith.constant 0 : i32
    return %c0_i32, %arg0, %c0_i32_0 : i32, i32, i32
  }
  func.func @transform_3(%arg0: i32) -> (i32, i32, i32) {
    %c0_i32 = arith.constant 0 : i32
    %c0_i32_0 = arith.constant 0 : i32
    %c0_i32_1 = arith.constant 0 : i32
    %c0_i32_2 = arith.constant 0 : i32
    return %c0_i32, %c0_i32_0, %c0_i32_1 : i32, i32, i32
  }
  func.func @transform_4(%arg0: i32) -> (i32, i32) {
    %c0_i32 = arith.constant 0 : i32
    %c0_i32_0 = arith.constant 0 : i32
    return %arg0, %c0_i32 : i32, i32
  }
}

</mosaic_0001>

<llo_original>
// kernel: sep_conv_gru.1
$region0: #{sep_conv_gru.1}
  #allocation0 [shape = 'u32[]', space=smem, size = 0x4, offset = 0x4, fixed_abs, tag = 'smem constant byte address 0x4 - core index']
  #allocation1 [shape = 'u32[144,128]{1,0:T(1,128)}', space=vmem, size = 0x12000, scoped, tag = 'internal scratch']
  %s0 = inlined_call_operand.vmem [shape: f32[2,16,8,32], index: 0, kind: input, shape index: {}]
  %s1 = inlined_call_operand.vmem [shape: bf16[2,256,64], index: 1, kind: input, shape index: {}]
  %s2 = inlined_call_operand.vmem [shape: bf16[2,256,32], index: 2, kind: input, shape index: {}]
  %s3 = inlined_call_operand.vmem [shape: bf16[4,160,64], index: 3, kind: input, shape index: {}]
  %s4 = inlined_call_operand.vmem [shape: f32[256,32], index: 4, kind: output, shape index: {}]
  %s5 = sld [smem:[#allocation0]]
  $region26: #{sep_conv_gru.1} parent=0
    _
  %s7 = ssub.s32 1, %s5
  %s8 = scalar_select 0, %s7, %s5
  // Predicated region
  $region2: #{sep_conv_gru.1} parent=0 // pred_check
    _
  $region3: #{sep_conv_gru.1} parent=0 // pred_check_branch
    %10 = sbr.rel (0) target = $region5
  $region4: #{sep_conv_gru.1} parent=0 // pred_region
    _
  $region5: #{sep_conv_gru.1} parent=0 // pred_fallthru
    _
  // Predicated region
  $region6: #{sep_conv_gru.1} parent=0 // pred_check
    _
  $region7: #{sep_conv_gru.1} parent=0 // pred_check_branch
    %12 = sbr.rel (0) target = $region9
  $region8: #{sep_conv_gru.1} parent=0 // pred_region
    _
  $region9: #{sep_conv_gru.1} parent=0 // pred_fallthru
    _
  // Predicated region
  $region10: #{sep_conv_gru.1} parent=0 // pred_check
    _
  $region11: #{sep_conv_gru.1} parent=0 // pred_check_branch
    %14 = sbr.rel (0) target = $region13
  $region12: #{sep_conv_gru.1} parent=0 // pred_region
    _
  $region13: #{sep_conv_gru.1} parent=0 // pred_fallthru
    _
  // Predicated region
  $region14: #{sep_conv_gru.1} parent=0 // pred_check
    _
  $region15: #{sep_conv_gru.1} parent=0 // pred_check_branch
    %16 = sbr.rel (0) target = $region17
  $region16: #{sep_conv_gru.1} parent=0 // pred_region
    _
  $region17: #{sep_conv_gru.1} parent=0 // pred_fallthru
    _
  %v18 = vld [vmem:[%s0] sm:$0xff]
  %v19 = vld [vmem:[%s0 + $0x8] sm:$0xff]
  %v20 = vld [vmem:[%s0 + $0x10] sm:$0xff]
  %v21 = vld [vmem:[%s0 + $0x18] sm:$0xff]
  %v22 = vld [vmem:[%s0 + $0x20] sm:$0xff]
  %v23 = vld [vmem:[%s0 + $0x28] sm:$0xff]
  %v24 = vld [vmem:[%s0 + $0x30] sm:$0xff]
  %v25 = vld [vmem:[%s0 + $0x38] sm:$0xff]
  %v26 = vld [vmem:[%s0 + $0x40] sm:$0xff]
  %v27 = vld [vmem:[%s0 + $0x48] sm:$0xff]
  %v28 = vld [vmem:[%s0 + $0x50] sm:$0xff]
  %v29 = vld [vmem:[%s0 + $0x58] sm:$0xff]
  %v30 = vld [vmem:[%s0 + $0x60] sm:$0xff]
  %v31 = vld [vmem:[%s0 + $0x68] sm:$0xff]
  %v32 = vld [vmem:[%s0 + $0x70] sm:$0xff]
  %v33 = vld [vmem:[%s0 + $0x78] sm:$0xff]
  %v34 = vld [vmem:[%s0 + $0x80] sm:$0xff]
  %v35 = vld [vmem:[%s0 + $0x88] sm:$0xff]
  %v36 = vld [vmem:[%s0 + $0x90] sm:$0xff]
  %v37 = vld [vmem:[%s0 + $0x98] sm:$0xff]
  %v38 = vld [vmem:[%s0 + $0xa0] sm:$0xff]
  %v39 = vld [vmem:[%s0 + $0xa8] sm:$0xff]
  %v40 = vld [vmem:[%s0 + $0xb0] sm:$0xff]
  %v41 = vld [vmem:[%s0 + $0xb8] sm:$0xff]
  %v42 = vld [vmem:[%s0 + $0xc0] sm:$0xff]
  %v43 = vld [vmem:[%s0 + $0xc8] sm:$0xff]
  %v44 = vld [vmem:[%s0 + $0xd0] sm:$0xff]
  %v45 = vld [vmem:[%s0 + $0xd8] sm:$0xff]
  %v46 = vld [vmem:[%s0 + $0xe0] sm:$0xff]
  %v47 = vld [vmem:[%s0 + $0xe8] sm:$0xff]
  %v48 = vld [vmem:[%s0 + $0xf0] sm:$0xff]
  %v49 = vld [vmem:[%s0 + $0xf8] sm:$0xff]
  %v50 = vld [vmem:[%s3] sm:$0xf]
  %v51 = vld [vmem:[%s3 + $0x4] sm:$0xf]
  %v52 = vld [vmem:[%s3 + $0x8] sm:$0xf]
  %v53 = vld [vmem:[%s3 + $0xc] sm:$0xf]
  %v54 = vld [vmem:[%s3 + $0x10] sm:$0xf]
  %v55 = vld [vmem:[%s3 + $0x14] sm:$0xf]
  %v56 = vld [vmem:[%s3 + $0x18] sm:$0xf]
  %v57 = vld [vmem:[%s3 + $0x1c] sm:$0xf]
  %v58 = vld [vmem:[%s3 + $0x20] sm:$0xf]
  %v59 = vld [vmem:[%s3 + $0x24] sm:$0xf]
  %v60 = vld [vmem:[%s3 + $0x28] sm:$0xf]
  %v61 = vld [vmem:[%s3 + $0x2c] sm:$0xf]
  %v62 = vld [vmem:[%s3 + $0x30] sm:$0xf]
  %v63 = vld [vmem:[%s3 + $0x34] sm:$0xf]
  %v64 = vld [vmem:[%s3 + $0x38] sm:$0xf]
  %v65 = vld [vmem:[%s3 + $0x3c] sm:$0xf]
  %v66 = vld [vmem:[%s3 + $0x40] sm:$0xf]
  %v67 = vld [vmem:[%s3 + $0x44] sm:$0xf]
  %v68 = vld [vmem:[%s3 + $0x48] sm:$0xf]
  %v69 = vld [vmem:[%s3 + $0x4c] sm:$0xf]
  %s70 = scalar_lea.vmem %s3, 80
  %v71 = vld [vmem:[%s70] sm:$0xf]
  %v72 = vld [vmem:[%s70 + $0x4] sm:$0xf]
  %v73 = vld [vmem:[%s70 + $0x8] sm:$0xf]
  %v74 = vld [vmem:[%s70 + $0xc] sm:$0xf]
  %v75 = vld [vmem:[%s70 + $0x10] sm:$0xf]
  %v76 = vld [vmem:[%s70 + $0x14] sm:$0xf]
  %v77 = vld [vmem:[%s70 + $0x18] sm:$0xf]
  %v78 = vld [vmem:[%s70 + $0x1c] sm:$0xf]
  %v79 = vld [vmem:[%s70 + $0x20] sm:$0xf]
  %v80 = vld [vmem:[%s70 + $0x24] sm:$0xf]
  %v81 = vld [vmem:[%s70 + $0x28] sm:$0xf]
  %v82 = vld [vmem:[%s70 + $0x2c] sm:$0xf]
  %v83 = vld [vmem:[%s70 + $0x30] sm:$0xf]
  %v84 = vld [vmem:[%s70 + $0x34] sm:$0xf]
  %v85 = vld [vmem:[%s70 + $0x38] sm:$0xf]
  %v86 = vld [vmem:[%s70 + $0x3c] sm:$0xf]
  %v87 = vld [vmem:[%s70 + $0x40] sm:$0xf]
  %v88 = vld [vmem:[%s70 + $0x44] sm:$0xf]
  %v89 = vld [vmem:[%s70 + $0x48] sm:$0xf]
  %v90 = vld [vmem:[%s70 + $0x4c] sm:$0xf]
  %v91 = vld [vmem:[%s1] sm:$0xf]
  %v92 = vld [vmem:[%s1 + $0x4] sm:$0xf]
  %v93 = vld [vmem:[%s1 + $0x8] sm:$0xf]
  %v94 = vld [vmem:[%s1 + $0xc] sm:$0xf]
  %v95 = vld [vmem:[%s1 + $0x10] sm:$0xf]
  %v96 = vld [vmem:[%s1 + $0x14] sm:$0xf]
  %v97 = vld [vmem:[%s1 + $0x18] sm:$0xf]
  %v98 = vld [vmem:[%s1 + $0x1c] sm:$0xf]
  %v99 = vld [vmem:[%s1 + $0x20] sm:$0xf]
  %v100 = vld [vmem:[%s1 + $0x24] sm:$0xf]
  %v101 = vld [vmem:[%s1 + $0x28] sm:$0xf]
  %v102 = vld [vmem:[%s1 + $0x2c] sm:$0xf]
  %v103 = vld [vmem:[%s1 + $0x30] sm:$0xf]
  %v104 = vld [vmem:[%s1 + $0x34] sm:$0xf]
  %v105 = vld [vmem:[%s1 + $0x38] sm:$0xf]
  %v106 = vld [vmem:[%s1 + $0x3c] sm:$0xf]
  %v107 = vld [vmem:[%s1 + $0x40] sm:$0xf]
  %v108 = vld [vmem:[%s1 + $0x44] sm:$0xf]
  %v109 = vld [vmem:[%s1 + $0x48] sm:$0xf]
  %v110 = vld [vmem:[%s1 + $0x4c] sm:$0xf]
  %v111 = vld [vmem:[%s1 + $0x50] sm:$0xf]
  %v112 = vld [vmem:[%s1 + $0x54] sm:$0xf]
  %v113 = vld [vmem:[%s1 + $0x58] sm:$0xf]
  %v114 = vld [vmem:[%s1 + $0x5c] sm:$0xf]
  %v115 = vld [vmem:[%s1 + $0x60] sm:$0xf]
  %v116 = vld [vmem:[%s1 + $0x64] sm:$0xf]
  %v117 = vld [vmem:[%s1 + $0x68] sm:$0xf]
  %v118 = vld [vmem:[%s1 + $0x6c] sm:$0xf]
  %v119 = vld [vmem:[%s1 + $0x70] sm:$0xf]
  %v120 = vld [vmem:[%s1 + $0x74] sm:$0xf]
  %v121 = vld [vmem:[%s1 + $0x78] sm:$0xf]
  %v122 = vld [vmem:[%s1 + $0x7c] sm:$0xf]
  %v123 = vld [vmem:[%s2] sm:$0xf]
  %v124 = vld [vmem:[%s2 + $0x4] sm:$0xf]
  %v125 = vld [vmem:[%s2 + $0x8] sm:$0xf]
  %v126 = vld [vmem:[%s2 + $0xc] sm:$0xf]
  %v127 = vld [vmem:[%s2 + $0x10] sm:$0xf]
  %v128 = vld [vmem:[%s2 + $0x14] sm:$0xf]
  %v129 = vld [vmem:[%s2 + $0x18] sm:$0xf]
  %v130 = vld [vmem:[%s2 + $0x1c] sm:$0xf]
  %v131 = vld [vmem:[%s2 + $0x20] sm:$0xf]
  %v132 = vld [vmem:[%s2 + $0x24] sm:$0xf]
  %v133 = vld [vmem:[%s2 + $0x28] sm:$0xf]
  %v134 = vld [vmem:[%s2 + $0x2c] sm:$0xf]
  %v135 = vld [vmem:[%s2 + $0x30] sm:$0xf]
  %v136 = vld [vmem:[%s2 + $0x34] sm:$0xf]
  %v137 = vld [vmem:[%s2 + $0x38] sm:$0xf]
  %v138 = vld [vmem:[%s2 + $0x3c] sm:$0xf]
  %v139 = vld [vmem:[%s2 + $0x40] sm:$0xf]
  %v140 = vld [vmem:[%s2 + $0x44] sm:$0xf]
  %v141 = vld [vmem:[%s2 + $0x48] sm:$0xf]
  %v142 = vld [vmem:[%s2 + $0x4c] sm:$0xf]
  %v143 = vld [vmem:[%s2 + $0x50] sm:$0xf]
  %v144 = vld [vmem:[%s2 + $0x54] sm:$0xf]
  %v145 = vld [vmem:[%s2 + $0x58] sm:$0xf]
  %v146 = vld [vmem:[%s2 + $0x5c] sm:$0xf]
  %v147 = vld [vmem:[%s2 + $0x60] sm:$0xf]
  %v148 = vld [vmem:[%s2 + $0x64] sm:$0xf]
  %v149 = vld [vmem:[%s2 + $0x68] sm:$0xf]
  %v150 = vld [vmem:[%s2 + $0x6c] sm:$0xf]
  %v151 = vld [vmem:[%s2 + $0x70] sm:$0xf]
  %v152 = vld [vmem:[%s2 + $0x74] sm:$0xf]
  %v153 = vld [vmem:[%s2 + $0x78] sm:$0xf]
  %v154 = vld [vmem:[%s2 + $0x7c] sm:$0xf]
  %v155 = vpack.c.bf16 %v18, %v18
  %v156 = vpack.c.bf16 %v19, %v19
  %v157 = vpack.c.bf16 %v20, %v20
  %v158 = vpack.c.bf16 %v21, %v21
  %v159 = vpack.c.bf16 %v22, %v22
  %v160 = vpack.c.bf16 %v23, %v23
  %v161 = vpack.c.bf16 %v24, %v24
  %v162 = vpack.c.bf16 %v25, %v25
  %v163 = vpack.c.bf16 %v26, %v26
  %v164 = vpack.c.bf16 %v27, %v27
  %v165 = vpack.c.bf16 %v28, %v28
  %v166 = vpack.c.bf16 %v29, %v29
  %v167 = vpack.c.bf16 %v30, %v30
  %v168 = vpack.c.bf16 %v31, %v31
  %v169 = vpack.c.bf16 %v32, %v32
  %v170 = vpack.c.bf16 %v33, %v33
  %v171 = vpack.c.bf16 %v34, %v34
  %v172 = vpack.c.bf16 %v35, %v35
  %v173 = vpack.c.bf16 %v36, %v36
  %v174 = vpack.c.bf16 %v37, %v37
  %v175 = vpack.c.bf16 %v38, %v38
  %v176 = vpack.c.bf16 %v39, %v39
  %v177 = vpack.c.bf16 %v40, %v40
  %v178 = vpack.c.bf16 %v41, %v41
  %v179 = vpack.c.bf16 %v42, %v42
  %v180 = vpack.c.bf16 %v43, %v43
  %v181 = vpack.c.bf16 %v44, %v44
  %v182 = vpack.c.bf16 %v45, %v45
  %v183 = vpack.c.bf16 %v46, %v46
  %v184 = vpack.c.bf16 %v47, %v47
  %v185 = vpack.c.bf16 %v48, %v48
  %v186 = vpack.c.bf16 %v49, %v49
  %218 = vrot.lane.b32.xlu0 0, 32
  %v219 = vpop.permute.xlu0 %218
  %220 = vrot.lane.b32.xlu0 %v155, 32
  %v221 = vpop.permute.xlu0 %220
  %222 = vrot.lane.b32.xlu0 %v156, 32
  %v223 = vpop.permute.xlu0 %222
  %224 = vrot.lane.b32.xlu0 %v157, 32
  %v225 = vpop.permute.xlu0 %224
  %226 = vrot.lane.b32.xlu0 %v158, 32
  %v227 = vpop.permute.xlu0 %226
  %228 = vrot.lane.b32.xlu0 %v159, 32
  %v229 = vpop.permute.xlu0 %228
  %230 = vrot.lane.b32.xlu0 %v160, 32
  %v231 = vpop.permute.xlu0 %230
  %232 = vrot.lane.b32.xlu0 %v161, 32
  %v233 = vpop.permute.xlu0 %232
  %234 = vrot.lane.b32.xlu0 %v162, 32
  %v235 = vpop.permute.xlu0 %234
  %236 = vrot.lane.b32.xlu0 %v163, 32
  %v237 = vpop.permute.xlu0 %236
  %238 = vrot.lane.b32.xlu0 %v164, 32
  %v239 = vpop.permute.xlu0 %238
  %240 = vrot.lane.b32.xlu0 %v165, 32
  %v241 = vpop.permute.xlu0 %240
  %242 = vrot.lane.b32.xlu0 %v166, 32
  %v243 = vpop.permute.xlu0 %242
  %244 = vrot.lane.b32.xlu0 %v167, 32
  %v245 = vpop.permute.xlu0 %244
  %246 = vrot.lane.b32.xlu0 %v168, 32
  %v247 = vpop.permute.xlu0 %246
  %248 = vrot.lane.b32.xlu0 %v169, 32
  %v249 = vpop.permute.xlu0 %248
  %250 = vrot.lane.b32.xlu0 %v171, 32
  %v251 = vpop.permute.xlu0 %250
  %252 = vrot.lane.b32.xlu0 %v172, 32
  %v253 = vpop.permute.xlu0 %252
  %254 = vrot.lane.b32.xlu0 %v173, 32
  %v255 = vpop.permute.xlu0 %254
  %256 = vrot.lane.b32.xlu0 %v174, 32
  %v257 = vpop.permute.xlu0 %256
  %258 = vrot.lane.b32.xlu0 %v175, 32
  %v259 = vpop.permute.xlu0 %258
  %260 = vrot.lane.b32.xlu0 %v176, 32
  %v261 = vpop.permute.xlu0 %260
  %262 = vrot.lane.b32.xlu0 %v177, 32
  %v263 = vpop.permute.xlu0 %262
  %264 = vrot.lane.b32.xlu0 %v178, 32
  %v265 = vpop.permute.xlu0 %264
  %266 = vrot.lane.b32.xlu0 %v179, 32
  %v267 = vpop.permute.xlu0 %266
  %268 = vrot.lane.b32.xlu0 %v180, 32
  %v269 = vpop.permute.xlu0 %268
  %270 = vrot.lane.b32.xlu0 %v181, 32
  %v271 = vpop.permute.xlu0 %270
  %272 = vrot.lane.b32.xlu0 %v182, 32
  %v273 = vpop.permute.xlu0 %272
  %274 = vrot.lane.b32.xlu0 %v183, 32
  %v275 = vpop.permute.xlu0 %274
  %276 = vrot.lane.b32.xlu0 %v184, 32
  %v277 = vpop.permute.xlu0 %276
  %278 = vrot.lane.b32.xlu0 %v185, 32
  %v279 = vpop.permute.xlu0 %278
  %282 = vrot.lane.b32.xlu0 %v155, 64
  %v283 = vpop.permute.xlu0 %282
  %284 = vrot.lane.b32.xlu0 %v156, 64
  %v285 = vpop.permute.xlu0 %284
  %286 = vrot.lane.b32.xlu0 %v157, 64
  %v287 = vpop.permute.xlu0 %286
  %288 = vrot.lane.b32.xlu0 %v158, 64
  %v289 = vpop.permute.xlu0 %288
  %290 = vrot.lane.b32.xlu0 %v159, 64
  %v291 = vpop.permute.xlu0 %290
  %292 = vrot.lane.b32.xlu0 %v160, 64
  %v293 = vpop.permute.xlu0 %292
  %294 = vrot.lane.b32.xlu0 %v161, 64
  %v295 = vpop.permute.xlu0 %294
  %296 = vrot.lane.b32.xlu0 %v162, 64
  %v297 = vpop.permute.xlu0 %296
  %298 = vrot.lane.b32.xlu0 %v163, 64
  %v299 = vpop.permute.xlu0 %298
  %300 = vrot.lane.b32.xlu0 %v164, 64
  %v301 = vpop.permute.xlu0 %300
  %302 = vrot.lane.b32.xlu0 %v165, 64
  %v303 = vpop.permute.xlu0 %302
  %304 = vrot.lane.b32.xlu0 %v166, 64
  %v305 = vpop.permute.xlu0 %304
  %306 = vrot.lane.b32.xlu0 %v167, 64
  %v307 = vpop.permute.xlu0 %306
  %308 = vrot.lane.b32.xlu0 %v168, 64
  %v309 = vpop.permute.xlu0 %308
  %310 = vrot.lane.b32.xlu0 %v169, 64
  %v311 = vpop.permute.xlu0 %310
  %312 = vrot.lane.b32.xlu0 %v170, 64
  %v313 = vpop.permute.xlu0 %312
  %314 = vrot.lane.b32.xlu0 %v171, 64
  %v315 = vpop.permute.xlu0 %314
  %316 = vrot.lane.b32.xlu0 %v172, 64
  %v317 = vpop.permute.xlu0 %316
  %318 = vrot.lane.b32.xlu0 %v173, 64
  %v319 = vpop.permute.xlu0 %318
  %320 = vrot.lane.b32.xlu0 %v174, 64
  %v321 = vpop.permute.xlu0 %320
  %322 = vrot.lane.b32.xlu0 %v175, 64
  %v323 = vpop.permute.xlu0 %322
  %324 = vrot.lane.b32.xlu0 %v176, 64
  %v325 = vpop.permute.xlu0 %324
  %326 = vrot.lane.b32.xlu0 %v177, 64
  %v327 = vpop.permute.xlu0 %326
  %328 = vrot.lane.b32.xlu0 %v178, 64
  %v329 = vpop.permute.xlu0 %328
  %330 = vrot.lane.b32.xlu0 %v179, 64
  %v331 = vpop.permute.xlu0 %330
  %332 = vrot.lane.b32.xlu0 %v180, 64
  %v333 = vpop.permute.xlu0 %332
  %334 = vrot.lane.b32.xlu0 %v181, 64
  %v335 = vpop.permute.xlu0 %334
  %336 = vrot.lane.b32.xlu0 %v182, 64
  %v337 = vpop.permute.xlu0 %336
  %338 = vrot.lane.b32.xlu0 %v183, 64
  %v339 = vpop.permute.xlu0 %338
  %340 = vrot.lane.b32.xlu0 %v184, 64
  %v341 = vpop.permute.xlu0 %340
  %342 = vrot.lane.b32.xlu0 %v185, 64
  %v343 = vpop.permute.xlu0 %342
  %344 = vrot.lane.b32.xlu0 %v186, 64
  %v345 = vpop.permute.xlu0 %344
  %346 = vrot.lane.b32.xlu0 %v156, 96
  %v347 = vpop.permute.xlu0 %346
  %348 = vrot.lane.b32.xlu0 %v157, 96
  %v349 = vpop.permute.xlu0 %348
  %350 = vrot.lane.b32.xlu0 %v158, 96
  %v351 = vpop.permute.xlu0 %350
  %352 = vrot.lane.b32.xlu0 %v159, 96
  %v353 = vpop.permute.xlu0 %352
  %354 = vrot.lane.b32.xlu0 %v160, 96
  %v355 = vpop.permute.xlu0 %354
  %356 = vrot.lane.b32.xlu0 %v161, 96
  %v357 = vpop.permute.xlu0 %356
  %358 = vrot.lane.b32.xlu0 %v162, 96
  %v359 = vpop.permute.xlu0 %358
  %360 = vrot.lane.b32.xlu0 %v163, 96
  %v361 = vpop.permute.xlu0 %360
  %362 = vrot.lane.b32.xlu0 %v164, 96
  %v363 = vpop.permute.xlu0 %362
  %364 = vrot.lane.b32.xlu0 %v165, 96
  %v365 = vpop.permute.xlu0 %364
  %366 = vrot.lane.b32.xlu0 %v166, 96
  %v367 = vpop.permute.xlu0 %366
  %368 = vrot.lane.b32.xlu0 %v167, 96
  %v369 = vpop.permute.xlu0 %368
  %370 = vrot.lane.b32.xlu0 %v168, 96
  %v371 = vpop.permute.xlu0 %370
  %372 = vrot.lane.b32.xlu0 %v169, 96
  %v373 = vpop.permute.xlu0 %372
  %374 = vrot.lane.b32.xlu0 %v170, 96
  %v375 = vpop.permute.xlu0 %374
  %376 = vrot.lane.b32.xlu0 0, 96
  %v377 = vpop.permute.xlu0 %376
  %378 = vrot.lane.b32.xlu0 %v172, 96
  %v379 = vpop.permute.xlu0 %378
  %380 = vrot.lane.b32.xlu0 %v173, 96
  %v381 = vpop.permute.xlu0 %380
  %382 = vrot.lane.b32.xlu0 %v174, 96
  %v383 = vpop.permute.xlu0 %382
  %384 = vrot.lane.b32.xlu0 %v175, 96
  %v385 = vpop.permute.xlu0 %384
  %386 = vrot.lane.b32.xlu0 %v176, 96
  %v387 = vpop.permute.xlu0 %386
  %388 = vrot.lane.b32.xlu0 %v177, 96
  %v389 = vpop.permute.xlu0 %388
  %390 = vrot.lane.b32.xlu0 %v178, 96
  %v391 = vpop.permute.xlu0 %390
  %392 = vrot.lane.b32.xlu0 %v179, 96
  %v393 = vpop.permute.xlu0 %392
  %394 = vrot.lane.b32.xlu0 %v180, 96
  %v395 = vpop.permute.xlu0 %394
  %396 = vrot.lane.b32.xlu0 %v181, 96
  %v397 = vpop.permute.xlu0 %396
  %398 = vrot.lane.b32.xlu0 %v182, 96
  %v399 = vpop.permute.xlu0 %398
  %400 = vrot.lane.b32.xlu0 %v183, 96
  %v401 = vpop.permute.xlu0 %400
  %402 = vrot.lane.b32.xlu0 %v184, 96
  %v403 = vpop.permute.xlu0 %402
  %404 = vrot.lane.b32.xlu0 %v185, 96
  %v405 = vpop.permute.xlu0 %404
  %406 = vrot.lane.b32.xlu0 %v186, 96
  %v407 = vpop.permute.xlu0 %406
  %vm408 = vcmask 261120
  %v411 = vsel %vm408, 0, %v219
  %v413 = vsel %vm408, 0, %v221
  %v416 = vsel %vm408, %v155, %v223
  %v419 = vsel %vm408, %v156, %v225
  %v422 = vsel %vm408, %v157, %v227
  %v425 = vsel %vm408, %v158, %v229
  %v428 = vsel %vm408, %v159, %v231
  %v431 = vsel %vm408, %v160, %v233
  %v434 = vsel %vm408, %v161, %v235
  %v437 = vsel %vm408, %v162, %v237
  %v440 = vsel %vm408, %v163, %v239
  %v443 = vsel %vm408, %v164, %v241
  %v446 = vsel %vm408, %v165, %v243
  %v449 = vsel %vm408, %v166, %v245
  %v452 = vsel %vm408, %v167, %v247
  %v455 = vsel %vm408, %v168, %v249
  %v457 = vsel %vm408, 0, %v251
  %v460 = vsel %vm408, %v171, %v253
  %v463 = vsel %vm408, %v172, %v255
  %v466 = vsel %vm408, %v173, %v257
  %v469 = vsel %vm408, %v174, %v259
  %v472 = vsel %vm408, %v175, %v261
  %v475 = vsel %vm408, %v176, %v263
  %v478 = vsel %vm408, %v177, %v265
  %v481 = vsel %vm408, %v178, %v267
  %v484 = vsel %vm408, %v179, %v269
  %v487 = vsel %vm408, %v180, %v271
  %v490 = vsel %vm408, %v181, %v273
  %v493 = vsel %vm408, %v182, %v275
  %v496 = vsel %vm408, %v183, %v277
  %v499 = vsel %vm408, %v184, %v279
  %vm500 = vcmask 523264
  %v502 = vsel %vm500, %v411, %v283
  %v504 = vsel %vm500, %v413, %v285
  %v506 = vsel %vm500, %v416, %v287
  %v508 = vsel %vm500, %v419, %v289
  %v510 = vsel %vm500, %v422, %v291
  %v512 = vsel %vm500, %v425, %v293
  %v514 = vsel %vm500, %v428, %v295
  %v516 = vsel %vm500, %v431, %v297
  %v518 = vsel %vm500, %v434, %v299
  %v520 = vsel %vm500, %v437, %v301
  %v522 = vsel %vm500, %v440, %v303
  %v524 = vsel %vm500, %v443, %v305
  %v526 = vsel %vm500, %v446, %v307
  %v528 = vsel %vm500, %v449, %v309
  %v530 = vsel %vm500, %v452, %v311
  %v532 = vsel %vm500, %v455, %v313
  %v534 = vsel %vm500, %v411, %v315
  %v536 = vsel %vm500, %v457, %v317
  %v538 = vsel %vm500, %v460, %v319
  %v540 = vsel %vm500, %v463, %v321
  %v542 = vsel %vm500, %v466, %v323
  %v544 = vsel %vm500, %v469, %v325
  %v546 = vsel %vm500, %v472, %v327
  %v548 = vsel %vm500, %v475, %v329
  %v550 = vsel %vm500, %v478, %v331
  %v552 = vsel %vm500, %v481, %v333
  %v554 = vsel %vm500, %v484, %v335
  %v556 = vsel %vm500, %v487, %v337
  %v558 = vsel %vm500, %v490, %v339
  %v560 = vsel %vm500, %v493, %v341
  %v562 = vsel %vm500, %v496, %v343
  %v564 = vsel %vm500, %v499, %v345
  %vm565 = vcmask 785408
  %v567 = vsel %vm565, %v502, %v347
  %v569 = vsel %vm565, %v504, %v349
  %v571 = vsel %vm565, %v506, %v351
  %v573 = vsel %vm565, %v508, %v353
  %v575 = vsel %vm565, %v510, %v355
  %v577 = vsel %vm565, %v512, %v357
  %v579 = vsel %vm565, %v514, %v359
  %v581 = vsel %vm565, %v516, %v361
  %v583 = vsel %vm565, %v518, %v363
  %v585 = vsel %vm565, %v520, %v365
  %v587 = vsel %vm565, %v522, %v367
  %v589 = vsel %vm565, %v524, %v369
  %v591 = vsel %vm565, %v526, %v371
  %v593 = vsel %vm565, %v528, %v373
  %v595 = vsel %vm565, %v530, %v375
  %v597 = vsel %vm565, %v532, %v377
  %v599 = vsel %vm565, %v534, %v379
  %v601 = vsel %vm565, %v536, %v381
  %v603 = vsel %vm565, %v538, %v383
  %v605 = vsel %vm565, %v540, %v385
  %v607 = vsel %vm565, %v542, %v387
  %v609 = vsel %vm565, %v544, %v389
  %v611 = vsel %vm565, %v546, %v391
  %v613 = vsel %vm565, %v548, %v393
  %v615 = vsel %vm565, %v550, %v395
  %v617 = vsel %vm565, %v552, %v397
  %v619 = vsel %vm565, %v554, %v399
  %v621 = vsel %vm565, %v556, %v401
  %v623 = vsel %vm565, %v558, %v403
  %v625 = vsel %vm565, %v560, %v405
  %v627 = vsel %vm565, %v562, %v407
  %v628 = vsel %vm565, %v564, %v377
  %v661 = vunpack.c.l.b16 %v567
  %v662 = vunpack.c.l.b16 %v157
  %v663 = vunpack.c.l.b16 %v569
  %v664 = vunpack.c.l.b16 %v158
  %v665 = vunpack.c.l.b16 %v571
  %v666 = vunpack.c.l.b16 %v159
  %v667 = vunpack.c.l.b16 %v573
  %v668 = vunpack.c.l.b16 %v160
  %v669 = vunpack.c.l.b16 %v575
  %v670 = vunpack.c.l.b16 %v161
  %v671 = vunpack.c.l.b16 %v577
  %v672 = vunpack.c.l.b16 %v162
  %v673 = vunpack.c.l.b16 %v579
  %v674 = vunpack.c.l.b16 %v163
  %v675 = vunpack.c.l.b16 %v581
  %v676 = vunpack.c.l.b16 %v164
  %v677 = vunpack.c.l.b16 %v583
  %v678 = vunpack.c.l.b16 %v165
  %v679 = vunpack.c.l.b16 %v585
  %v680 = vunpack.c.l.b16 %v166
  %v681 = vunpack.c.l.b16 %v587
  %v682 = vunpack.c.l.b16 %v167
  %v683 = vunpack.c.l.b16 %v589
  %v684 = vunpack.c.l.b16 %v168
  %v685 = vunpack.c.l.b16 %v591
  %v686 = vunpack.c.l.b16 %v169
  %v687 = vunpack.c.l.b16 %v593
  %v688 = vunpack.c.l.b16 %v170
  %v689 = vunpack.c.l.b16 %v595
  %v690 = vunpack.c.l.b16 0
  %v691 = vunpack.c.l.b16 %v597
  %v692 = vunpack.c.l.b16 %v599
  %v693 = vunpack.c.l.b16 %v173
  %v694 = vunpack.c.l.b16 %v601
  %v695 = vunpack.c.l.b16 %v174
  %v696 = vunpack.c.l.b16 %v603
  %v697 = vunpack.c.l.b16 %v175
  %v698 = vunpack.c.l.b16 %v605
  %v699 = vunpack.c.l.b16 %v176
  %v700 = vunpack.c.l.b16 %v607
  %v701 = vunpack.c.l.b16 %v177
  %v702 = vunpack.c.l.b16 %v609
  %v703 = vunpack.c.l.b16 %v178
  %v704 = vunpack.c.l.b16 %v611
  %v705 = vunpack.c.l.b16 %v179
  %v706 = vunpack.c.l.b16 %v613
  %v707 = vunpack.c.l.b16 %v180
  %v708 = vunpack.c.l.b16 %v615
  %v709 = vunpack.c.l.b16 %v181
  %v710 = vunpack.c.l.b16 %v617
  %v711 = vunpack.c.l.b16 %v182
  %v712 = vunpack.c.l.b16 %v619
  %v713 = vunpack.c.l.b16 %v183
  %v714 = vunpack.c.l.b16 %v621
  %v715 = vunpack.c.l.b16 %v184
  %v716 = vunpack.c.l.b16 %v623
  %v717 = vunpack.c.l.b16 %v185
  %v718 = vunpack.c.l.b16 %v625
  %v719 = vunpack.c.l.b16 %v186
  %v720 = vunpack.c.l.b16 %v627
  %v721 = vunpack.c.l.b16 %v628
  %v722 = vunpack.c.l.bf16 %v91
  %v723 = vunpack.c.l.bf16 %v92
  %v724 = vunpack.c.l.bf16 %v93
  %v725 = vunpack.c.l.bf16 %v94
  %v726 = vunpack.c.l.bf16 %v95
  %v727 = vunpack.c.l.bf16 %v96
  %v728 = vunpack.c.l.bf16 %v97
  %v729 = vunpack.c.l.bf16 %v98
  %v730 = vunpack.c.l.bf16 %v99
  %v731 = vunpack.c.l.bf16 %v100
  %v732 = vunpack.c.l.bf16 %v101
  %v733 = vunpack.c.l.bf16 %v102
  %v734 = vunpack.c.l.bf16 %v103
  %v735 = vunpack.c.l.bf16 %v104
  %v736 = vunpack.c.l.bf16 %v105
  %v737 = vunpack.c.l.bf16 %v106
  %v738 = vunpack.c.l.bf16 %v107
  %v739 = vunpack.c.l.bf16 %v108
  %v740 = vunpack.c.l.bf16 %v109
  %v741 = vunpack.c.l.bf16 %v110
  %v742 = vunpack.c.l.bf16 %v111
  %v743 = vunpack.c.l.bf16 %v112
  %v744 = vunpack.c.l.bf16 %v113
  %v745 = vunpack.c.l.bf16 %v114
  %v746 = vunpack.c.l.bf16 %v115
  %v747 = vunpack.c.l.bf16 %v116
  %v748 = vunpack.c.l.bf16 %v117
  %v749 = vunpack.c.l.bf16 %v118
  %v750 = vunpack.c.l.bf16 %v119
  %v751 = vunpack.c.l.bf16 %v120
  %v752 = vunpack.c.l.bf16 %v121
  %v753 = vunpack.c.l.bf16 %v122
  %v754 = vpack.c.b16 %v663, %v661
  %v755 = vpack.c.b16 %v664, %v662
  %v756 = vpack.c.b16 %v667, %v665
  %v757 = vpack.c.b16 %v668, %v666
  %v758 = vpack.c.b16 %v671, %v669
  %v759 = vpack.c.b16 %v672, %v670
  %v760 = vpack.c.b16 %v675, %v673
  %v761 = vpack.c.b16 %v676, %v674
  %v762 = vpack.c.b16 %v679, %v677
  %v763 = vpack.c.b16 %v680, %v678
  %v764 = vpack.c.b16 %v683, %v681
  %v765 = vpack.c.b16 %v684, %v682
  %v766 = vpack.c.b16 %v687, %v685
  %v767 = vpack.c.b16 %v688, %v686
  %v768 = vpack.c.b16 %v691, %v689
  %v769 = vpack.c.b16 %v690, %v690
  %v770 = vpack.c.b16 %v694, %v692
  %v771 = vpack.c.b16 %v695, %v693
  %v772 = vpack.c.b16 %v698, %v696
  %v773 = vpack.c.b16 %v699, %v697
  %v774 = vpack.c.b16 %v702, %v700
  %v775 = vpack.c.b16 %v703, %v701
  %v776 = vpack.c.b16 %v706, %v704
  %v777 = vpack.c.b16 %v707, %v705
  %v778 = vpack.c.b16 %v710, %v708
  %v779 = vpack.c.b16 %v711, %v709
  %v780 = vpack.c.b16 %v714, %v712
  %v781 = vpack.c.b16 %v715, %v713
  %v782 = vpack.c.b16 %v718, %v716
  %v783 = vpack.c.b16 %v719, %v717
  %v784 = vpack.c.b16 %v721, %v720
  %v821 = vunpack.c.l.b16 %v50
  %v822 = vunpack.c.l.b16 %v51
  %v823 = vunpack.c.l.b16 %v52
  %v824 = vunpack.c.l.b16 %v53
  %v825 = vunpack.c.l.b16 %v54
  %v826 = vunpack.c.l.b16 %v55
  %v827 = vunpack.c.l.b16 %v56
  %v828 = vunpack.c.l.b16 %v57
  %v829 = vunpack.c.l.b16 %v58
  %v830 = vunpack.c.l.b16 %v59
  %v831 = vunpack.c.l.b16 %v60
  %v832 = vunpack.c.l.b16 %v61
  %v833 = vunpack.c.l.b16 %v62
  %v834 = vunpack.c.l.b16 %v63
  %v835 = vunpack.c.l.b16 %v64
  %v836 = vunpack.c.l.b16 %v65
  %v837 = vunpack.c.l.b16 %v66
  %v838 = vunpack.c.l.b16 %v67
  %v839 = vunpack.c.l.b16 %v68
  %v840 = vunpack.c.l.b16 %v69
  %v841 = vpack.c.b16 %v822, %v821
  %v842 = vpack.c.b16 %v824, %v823
  %v843 = vpack.c.b16 %v826, %v825
  %v844 = vpack.c.b16 %v828, %v827
  %v845 = vpack.c.b16 %v830, %v829
  %v846 = vpack.c.b16 %v832, %v831
  %v847 = vpack.c.b16 %v834, %v833
  %v848 = vpack.c.b16 %v836, %v835
  %v849 = vpack.c.b16 %v838, %v837
  %v850 = vpack.c.b16 %v840, %v839
  %v862 = vsel %vm408, %v755, 0
  %v865 = vsel %vm408, %v757, 0
  %v868 = vsel %vm408, %v759, 0
  %v871 = vsel %vm408, %v761, 0
  %v874 = vsel %vm408, %v763, 0
  %v877 = vsel %vm408, %v765, 0
  %v880 = vsel %vm408, %v767, 0
  %v883 = vsel %vm408, %v769, 0
  %v886 = vsel %vm408, %v771, 0
  %v889 = vsel %vm408, %v773, 0
  %v892 = vsel %vm408, %v775, 0
  %v895 = vsel %vm408, %v777, 0
  %v898 = vsel %vm408, %v779, 0
  %v901 = vsel %vm408, %v781, 0
  %v904 = vsel %vm408, %v783, 0
  %906 = vmatprep.subr.bf16.mxu0 0
  %907 = vmatpush1.bf16.msra.mxu0 %v841
  %908 = vmatprep.subr.bf16.mxu0 0
  %909 = vmatpush1.bf16.msra.mxu0 %v842
  %910 = vmatprep.subr.bf16.mxu0 0
  %911 = vmatpush1.bf16.msra.mxu0 %v843
  %912 = vmatprep.subr.bf16.mxu0 0
  %913 = vmatpush1.bf16.msra.mxu0 %v844
  %914 = vmatprep.subr.bf16.mxu0 0
  %915 = vmatpush1.bf16.msra.mxu0 %v845
  %916 = vmatprep.subr.bf16.mxu0 0
  %917 = vmatpush1.bf16.msra.mxu0 %v846
  %918 = vmatprep.subr.bf16.mxu0 0
  %919 = vmatpush1.bf16.msra.mxu0 %v847
  %920 = vmatprep.subr.bf16.mxu0 0
  %921 = vmatpush1.bf16.msra.mxu0 %v848
  %922 = vmatprep.subr.bf16.mxu0 0
  %923 = vmatpush1.bf16.msra.mxu0 %v849
  %924 = vmatprep.subr.bf16.mxu0 0
  %925 = vmatpush1.bf16.msra.mxu0 %v850
  %926 = vmatprep.subr.bf16.mxu0 0
  %927 = vmatpush1.bf16.msra.mxu0 0
  %928 = vmatprep.subr.bf16.mxu0 0
  %929 = vmatpush1.bf16.msra.mxu0 0
  %930 = vmatprep.subr.bf16.mxu0 0
  %931 = vmatpush1.bf16.msra.mxu0 0
  %932 = vmatprep.subr.bf16.mxu0 0
  %933 = vmatpush1.bf16.msra.mxu0 0
  %934 = vmatprep.subr.bf16.mxu0 0
  %935 = vmatpush1.bf16.msra.mxu0 0
  %936 = vmatprep.subr.bf16.mxu0 0
  %937 = vmatpush1.bf16.msra.mxu0 0
  %938 = vmatprep.mubr.bf16.mxu0 %v862
  %939 = vmatmul.mubr.bf16.gmra.mrb[0].mxu0 %v754
  %v940 = vpop.f32.mrb[0].mxu0
  %v941 = vadd.f32 %v722, %v940
  %v942 = vpop.f32.mrb[0].mxu0
  %v943 = vpop.f32.mrb[0].mxu0
  %v944 = vadd.f32 %v723, %v943
  %v945 = vpop.f32.mrb[0].mxu0
  %946 = vmatprep.mubr.bf16.mxu0 %v865
  %947 = vmatmul.mubr.bf16.gmra.mrb[0].mxu0 %v756
  %v948 = vpop.f32.mrb[0].mxu0
  %v949 = vadd.f32 %v724, %v948
  %v950 = vpop.f32.mrb[0].mxu0
  %v951 = vpop.f32.mrb[0].mxu0
  %v952 = vadd.f32 %v725, %v951
  %v953 = vpop.f32.mrb[0].mxu0
  %954 = vmatprep.mubr.bf16.mxu0 %v868
  %955 = vmatmul.mubr.bf16.gmra.mrb[0].mxu0 %v758
  %v956 = vpop.f32.mrb[0].mxu0
  %v957 = vadd.f32 %v726, %v956
  %v958 = vpop.f32.mrb[0].mxu0
  %v959 = vpop.f32.mrb[0].mxu0
  %v960 = vadd.f32 %v727, %v959
  %v961 = vpop.f32.mrb[0].mxu0
  %962 = vmatprep.mubr.bf16.mxu0 %v871
  %963 = vmatmul.mubr.bf16.gmra.mrb[0].mxu0 %v760
  %v964 = vpop.f32.mrb[0].mxu0
  %v965 = vadd.f32 %v728, %v964
  %v966 = vpop.f32.mrb[0].mxu0
  %v967 = vpop.f32.mrb[0].mxu0
  %v968 = vadd.f32 %v729, %v967
  %v969 = vpop.f32.mrb[0].mxu0
  %970 = vmatprep.mubr.bf16.mxu0 %v874
  %971 = vmatmul.mubr.bf16.gmra.mrb[0].mxu0 %v762
  %v972 = vpop.f32.mrb[0].mxu0
  %v973 = vadd.f32 %v730, %v972
  %v974 = vpop.f32.mrb[0].mxu0
  %v975 = vpop.f32.mrb[0].mxu0
  %v976 = vadd.f32 %v731, %v975
  %v977 = vpop.f32.mrb[0].mxu0
  %978 = vmatprep.mubr.bf16.mxu0 %v877
  %979 = vmatmul.mubr.bf16.gmra.mrb[0].mxu0 %v764
  %v980 = vpop.f32.mrb[0].mxu0
  %v981 = vadd.f32 %v732, %v980
  %v982 = vpop.f32.mrb[0].mxu0
  %v983 = vpop.f32.mrb[0].mxu0
  %v984 = vadd.f32 %v733, %v983
  %v985 = vpop.f32.mrb[0].mxu0
  %986 = vmatprep.mubr.bf16.mxu0 %v880
  %987 = vmatmul.mubr.bf16.gmra.mrb[0].mxu0 %v766
  %v988 = vpop.f32.mrb[0].mxu0
  %v989 = vadd.f32 %v734, %v988
  %v990 = vpop.f32.mrb[0].mxu0
  %v991 = vpop.f32.mrb[0].mxu0
  %v992 = vadd.f32 %v735, %v991
  %v993 = vpop.f32.mrb[0].mxu0
  %994 = vmatprep.mubr.bf16.mxu0 %v883
  %995 = vmatmul.mubr.bf16.gmra.mrb[0].mxu0 %v768
  %v996 = vpop.f32.mrb[0].mxu0
  %v997 = vadd.f32 %v736, %v996
  %v998 = vpop.f32.mrb[0].mxu0
  %v999 = vpop.f32.mrb[0].mxu0
  %v1000 = vadd.f32 %v737, %v999
  %v1001 = vpop.f32.mrb[0].mxu0
  %1002 = vmatprep.mubr.bf16.mxu0 %v886
  %1003 = vmatmul.mubr.bf16.gmra.mrb[0].mxu0 %v770
  %v1004 = vpop.f32.mrb[0].mxu0
  %v1005 = vadd.f32 %v738, %v1004
  %v1006 = vpop.f32.mrb[0].mxu0
  %v1007 = vpop.f32.mrb[0].mxu0
  %v1008 = vadd.f32 %v739, %v1007
  %v1009 = vpop.f32.mrb[0].mxu0
  %1010 = vmatprep.mubr.bf16.mxu0 %v889
  %1011 = vmatmul.mubr.bf16.gmra.mrb[0].mxu0 %v772
  %v1012 = vpop.f32.mrb[0].mxu0
  %v1013 = vadd.f32 %v740, %v1012
  %v1014 = vpop.f32.mrb[0].mxu0
  %v1015 = vpop.f32.mrb[0].mxu0
  %v1016 = vadd.f32 %v741, %v1015
  %v1017 = vpop.f32.mrb[0].mxu0
  %1018 = vmatprep.mubr.bf16.mxu0 %v892
  %1019 = vmatmul.mubr.bf16.gmra.mrb[0].mxu0 %v774
  %v1020 = vpop.f32.mrb[0].mxu0
  %v1021 = vadd.f32 %v742, %v1020
  %v1022 = vpop.f32.mrb[0].mxu0
  %v1023 = vpop.f32.mrb[0].mxu0
  %v1024 = vadd.f32 %v743, %v1023
  %v1025 = vpop.f32.mrb[0].mxu0
  %1026 = vmatprep.mubr.bf16.mxu0 %v895
  %1027 = vmatmul.mubr.bf16.gmra.mrb[0].mxu0 %v776
  %v1028 = vpop.f32.mrb[0].mxu0
  %v1029 = vadd.f32 %v744, %v1028
  %v1030 = vpop.f32.mrb[0].mxu0
  %v1031 = vpop.f32.mrb[0].mxu0
  %v1032 = vadd.f32 %v745, %v1031
  %v1033 = vpop.f32.mrb[0].mxu0
  %1034 = vmatprep.mubr.bf16.mxu0 %v898
  %1035 = vmatmul.mubr.bf16.gmra.mrb[0].mxu0 %v778
  %v1036 = vpop.f32.mrb[0].mxu0
  %v1037 = vadd.f32 %v746, %v1036
  %v1038 = vpop.f32.mrb[0].mxu0
  %v1039 = vpop.f32.mrb[0].mxu0
  %v1040 = vadd.f32 %v747, %v1039
  %v1041 = vpop.f32.mrb[0].mxu0
  %1042 = vmatprep.mubr.bf16.mxu0 %v901
  %1043 = vmatmul.mubr.bf16.gmra.mrb[0].mxu0 %v780
  %v1044 = vpop.f32.mrb[0].mxu0
  %v1045 = vadd.f32 %v748, %v1044
  %v1046 = vpop.f32.mrb[0].mxu0
  %v1047 = vpop.f32.mrb[0].mxu0
  %v1048 = vadd.f32 %v749, %v1047
  %v1049 = vpop.f32.mrb[0].mxu0
  %1050 = vmatprep.mubr.bf16.mxu0 %v904
  %1051 = vmatmul.mubr.bf16.gmra.mrb[0].mxu0 %v782
  %v1052 = vpop.f32.mrb[0].mxu0
  %v1053 = vadd.f32 %v750, %v1052
  %v1054 = vpop.f32.mrb[0].mxu0
  %v1055 = vpop.f32.mrb[0].mxu0
  %v1056 = vadd.f32 %v751, %v1055
  %v1057 = vpop.f32.mrb[0].mxu0
  %1058 = vmatprep.mubr.bf16.mxu0 %v883
  %1059 = vmatmul.mubr.bf16.gmra.mrb[0].mxu0 %v784
  %v1060 = vpop.f32.mrb[0].mxu0
  %v1061 = vadd.f32 %v752, %v1060
  %v1062 = vpop.f32.mrb[0].mxu0
  %v1063 = vpop.f32.mrb[0].mxu0
  %v1064 = vadd.f32 %v753, %v1063
  %v1065 = vpop.f32.mrb[0].mxu0
  %1066 = vdwg.mxu0
  %v1067 = vxor.u32 %v941, 2147483648
  %v1068 = vxor.u32 %v944, 2147483648
  %v1069 = vxor.u32 %v949, 2147483648
  %v1070 = vxor.u32 %v952, 2147483648
  %v1071 = vxor.u32 %v957, 2147483648
  %v1072 = vxor.u32 %v960, 2147483648
  %v1073 = vxor.u32 %v965, 2147483648
  %v1074 = vxor.u32 %v968, 2147483648
  %v1075 = vxor.u32 %v973, 2147483648
  %v1076 = vxor.u32 %v976, 2147483648
  %v1077 = vxor.u32 %v981, 2147483648
  %v1078 = vxor.u32 %v984, 2147483648
  %v1079 = vxor.u32 %v989, 2147483648
  %v1080 = vxor.u32 %v992, 2147483648
  %v1081 = vxor.u32 %v997, 2147483648
  %v1082 = vxor.u32 %v1000, 2147483648
  %v1083 = vxor.u32 %v1005, 2147483648
  %v1084 = vxor.u32 %v1008, 2147483648
  %v1085 = vxor.u32 %v1013, 2147483648
  %v1086 = vxor.u32 %v1016, 2147483648
  %v1087 = vxor.u32 %v1021, 2147483648
  %v1088 = vxor.u32 %v1024, 2147483648
  %v1089 = vxor.u32 %v1029, 2147483648
  %v1090 = vxor.u32 %v1032, 2147483648
  %v1091 = vxor.u32 %v1037, 2147483648
  %v1092 = vxor.u32 %v1040, 2147483648
  %v1093 = vxor.u32 %v1045, 2147483648
  %v1094 = vxor.u32 %v1048, 2147483648
  %v1095 = vxor.u32 %v1053, 2147483648
  %v1096 = vxor.u32 %v1056, 2147483648
  %v1097 = vxor.u32 %v1061, 2147483648
  %v1098 = vxor.u32 %v1064, 2147483648
  %v1099 = vmul.f32 %v1067, 1.442695
  %v1100 = vpow.pop %v1099
  %v1101 = vmul.f32 %v1068, 1.442695
  %v1102 = vpow.pop %v1101
  %v1103 = vmul.f32 %v1069, 1.442695
  %v1104 = vpow.pop %v1103
  %v1105 = vmul.f32 %v1070, 1.442695
  %v1106 = vpow.pop %v1105
  %v1107 = vmul.f32 %v1071, 1.442695
  %v1108 = vpow.pop %v1107
  %v1109 = vmul.f32 %v1072, 1.442695
  %v1110 = vpow.pop %v1109
  %v1111 = vmul.f32 %v1073, 1.442695
  %v1112 = vpow.pop %v1111
  %v1113 = vmul.f32 %v1074, 1.442695
  %v1114 = vpow.pop %v1113
  %v1115 = vmul.f32 %v1075, 1.442695
  %v1116 = vpow.pop %v1115
  %v1117 = vmul.f32 %v1076, 1.442695
  %v1118 = vpow.pop %v1117
  %v1119 = vmul.f32 %v1077, 1.442695
  %v1120 = vpow.pop %v1119
  %v1121 = vmul.f32 %v1078, 1.442695
  %v1122 = vpow.pop %v1121
  %v1123 = vmul.f32 %v1079, 1.442695
  %v1124 = vpow.pop %v1123
  %v1125 = vmul.f32 %v1080, 1.442695
  %v1126 = vpow.pop %v1125
  %v1127 = vmul.f32 %v1081, 1.442695
  %v1128 = vpow.pop %v1127
  %v1129 = vmul.f32 %v1082, 1.442695
  %v1130 = vpow.pop %v1129
  %v1131 = vmul.f32 %v1083, 1.442695
  %v1132 = vpow.pop %v1131
  %v1133 = vmul.f32 %v1084, 1.442695
  %v1134 = vpow.pop %v1133
  %v1135 = vmul.f32 %v1085, 1.442695
  %v1136 = vpow.pop %v1135
  %v1137 = vmul.f32 %v1086, 1.442695
  %v1138 = vpow.pop %v1137
  %v1139 = vmul.f32 %v1087, 1.442695
  %v1140 = vpow.pop %v1139
  %v1141 = vmul.f32 %v1088, 1.442695
  %v1142 = vpow.pop %v1141
  %v1143 = vmul.f32 %v1089, 1.442695
  %v1144 = vpow.pop %v1143
  %v1145 = vmul.f32 %v1090, 1.442695
  %v1146 = vpow.pop %v1145
  %v1147 = vmul.f32 %v1091, 1.442695
  %v1148 = vpow.pop %v1147
  %v1149 = vmul.f32 %v1092, 1.442695
  %v1150 = vpow.pop %v1149
  %v1151 = vmul.f32 %v1093, 1.442695
  %v1152 = vpow.pop %v1151
  %v1153 = vmul.f32 %v1094, 1.442695
  %v1154 = vpow.pop %v1153
  %v1155 = vmul.f32 %v1095, 1.442695
  %v1156 = vpow.pop %v1155
  %v1157 = vmul.f32 %v1096, 1.442695
  %v1158 = vpow.pop %v1157
  %v1159 = vmul.f32 %v1097, 1.442695
  %v1160 = vpow.pop %v1159
  %v1161 = vmul.f32 %v1098, 1.442695
  %v1162 = vpow.pop %v1161
  %v1163 = vadd.f32 %v1100, 1.0
  %v1164 = vadd.f32 %v1102, 1.0
  %v1165 = vadd.f32 %v1104, 1.0
  %v1166 = vadd.f32 %v1106, 1.0
  %v1167 = vadd.f32 %v1108, 1.0
  %v1168 = vadd.f32 %v1110, 1.0
  %v1169 = vadd.f32 %v1112, 1.0
  %v1170 = vadd.f32 %v1114, 1.0
  %v1171 = vadd.f32 %v1116, 1.0
  %v1172 = vadd.f32 %v1118, 1.0
  %v1173 = vadd.f32 %v1120, 1.0
  %v1174 = vadd.f32 %v1122, 1.0
  %v1175 = vadd.f32 %v1124, 1.0
  %v1176 = vadd.f32 %v1126, 1.0
  %v1177 = vadd.f32 %v1128, 1.0
  %v1178 = vadd.f32 %v1130, 1.0
  %v1179 = vadd.f32 %v1132, 1.0
  %v1180 = vadd.f32 %v1134, 1.0
  %v1181 = vadd.f32 %v1136, 1.0
  %v1182 = vadd.f32 %v1138, 1.0
  %v1183 = vadd.f32 %v1140, 1.0
  %v1184 = vadd.f32 %v1142, 1.0
  %v1185 = vadd.f32 %v1144, 1.0
  %v1186 = vadd.f32 %v1146, 1.0
  %v1187 = vadd.f32 %v1148, 1.0
  %v1188 = vadd.f32 %v1150, 1.0
  %v1189 = vadd.f32 %v1152, 1.0
  %v1190 = vadd.f32 %v1154, 1.0
  %v1191 = vadd.f32 %v1156, 1.0
  %v1192 = vadd.f32 %v1158, 1.0
  %v1193 = vadd.f32 %v1160, 1.0
  %v1194 = vadd.f32 %v1162, 1.0
  %v1195 = vrcp.pop %v1163
  %v1196 = vmul.f32 1.0, %v1195
  %v1197 = vrcp.pop %v1164
  %v1198 = vmul.f32 1.0, %v1197
  %v1199 = vrcp.pop %v1165
  %v1200 = vmul.f32 1.0, %v1199
  %v1201 = vrcp.pop %v1166
  %v1202 = vmul.f32 1.0, %v1201
  %v1203 = vrcp.pop %v1167
  %v1204 = vmul.f32 1.0, %v1203
  %v1205 = vrcp.pop %v1168
  %v1206 = vmul.f32 1.0, %v1205
  %v1207 = vrcp.pop %v1169
  %v1208 = vmul.f32 1.0, %v1207
  %v1209 = vrcp.pop %v1170
  %v1210 = vmul.f32 1.0, %v1209
  %v1211 = vrcp.pop %v1171
  %v1212 = vmul.f32 1.0, %v1211
  %v1213 = vrcp.pop %v1172
  %v1214 = vmul.f32 1.0, %v1213
  %v1215 = vrcp.pop %v1173
  %v1216 = vmul.f32 1.0, %v1215
  %v1217 = vrcp.pop %v1174
  %v1218 = vmul.f32 1.0, %v1217
  %v1219 = vrcp.pop %v1175
  %v1220 = vmul.f32 1.0, %v1219
  %v1221 = vrcp.pop %v1176
  %v1222 = vmul.f32 1.0, %v1221
  %v1223 = vrcp.pop %v1177
  %v1224 = vmul.f32 1.0, %v1223
  %v1225 = vrcp.pop %v1178
  %v1226 = vmul.f32 1.0, %v1225
  %v1227 = vrcp.pop %v1179
  %v1228 = vmul.f32 1.0, %v1227
  %v1229 = vrcp.pop %v1180
  %v1230 = vmul.f32 1.0, %v1229
  %v1231 = vrcp.pop %v1181
  %v1232 = vmul.f32 1.0, %v1231
  %v1233 = vrcp.pop %v1182
  %v1234 = vmul.f32 1.0, %v1233
  %v1235 = vrcp.pop %v1183
  %v1236 = vmul.f32 1.0, %v1235
  %v1237 = vrcp.pop %v1184
  %v1238 = vmul.f32 1.0, %v1237
  %v1239 = vrcp.pop %v1185
  %v1240 = vmul.f32 1.0, %v1239
  %v1241 = vrcp.pop %v1186
  %v1242 = vmul.f32 1.0, %v1241
  %v1243 = vrcp.pop %v1187
  %v1244 = vmul.f32 1.0, %v1243
  %v1245 = vrcp.pop %v1188
  %v1246 = vmul.f32 1.0, %v1245
  %v1247 = vrcp.pop %v1189
  %v1248 = vmul.f32 1.0, %v1247
  %v1249 = vrcp.pop %v1190
  %v1250 = vmul.f32 1.0, %v1249
  %v1251 = vrcp.pop %v1191
  %v1252 = vmul.f32 1.0, %v1251
  %v1253 = vrcp.pop %v1192
  %v1254 = vmul.f32 1.0, %v1253
  %v1255 = vrcp.pop %v1193
  %v1256 = vmul.f32 1.0, %v1255
  %v1257 = vrcp.pop %v1194
  %v1258 = vmul.f32 1.0, %v1257
  %1291 = vrot.lane.b32.xlu0 %v18, 32
  %v1292 = vpop.permute.xlu0 %1291
  %1293 = vrot.lane.b32.xlu0 %v19, 32
  %v1294 = vpop.permute.xlu0 %1293
  %1295 = vrot.lane.b32.xlu0 %v20, 32
  %v1296 = vpop.permute.xlu0 %1295
  %1297 = vrot.lane.b32.xlu0 %v21, 32
  %v1298 = vpop.permute.xlu0 %1297
  %1299 = vrot.lane.b32.xlu0 %v22, 32
  %v1300 = vpop.permute.xlu0 %1299
  %1301 = vrot.lane.b32.xlu0 %v23, 32
  %v1302 = vpop.permute.xlu0 %1301
  %1303 = vrot.lane.b32.xlu0 %v24, 32
  %v1304 = vpop.permute.xlu0 %1303
  %1305 = vrot.lane.b32.xlu0 %v25, 32
  %v1306 = vpop.permute.xlu0 %1305
  %1307 = vrot.lane.b32.xlu0 %v26, 32
  %v1308 = vpop.permute.xlu0 %1307
  %1309 = vrot.lane.b32.xlu0 %v27, 32
  %v1310 = vpop.permute.xlu0 %1309
  %1311 = vrot.lane.b32.xlu0 %v28, 32
  %v1312 = vpop.permute.xlu0 %1311
  %1313 = vrot.lane.b32.xlu0 %v29, 32
  %v1314 = vpop.permute.xlu0 %1313
  %1315 = vrot.lane.b32.xlu0 %v30, 32
  %v1316 = vpop.permute.xlu0 %1315
  %1317 = vrot.lane.b32.xlu0 %v31, 32
  %v1318 = vpop.permute.xlu0 %1317
  %1319 = vrot.lane.b32.xlu0 %v32, 32
  %v1320 = vpop.permute.xlu0 %1319
  %1321 = vrot.lane.b32.xlu0 %v33, 32
  %v1322 = vpop.permute.xlu0 %1321
  %1323 = vrot.lane.b32.xlu0 %v34, 32
  %v1324 = vpop.permute.xlu0 %1323
  %1325 = vrot.lane.b32.xlu0 %v35, 32
  %v1326 = vpop.permute.xlu0 %1325
  %1327 = vrot.lane.b32.xlu0 %v36, 32
  %v1328 = vpop.permute.xlu0 %1327
  %1329 = vrot.lane.b32.xlu0 %v37, 32
  %v1330 = vpop.permute.xlu0 %1329
  %1331 = vrot.lane.b32.xlu0 %v38, 32
  %v1332 = vpop.permute.xlu0 %1331
  %1333 = vrot.lane.b32.xlu0 %v39, 32
  %v1334 = vpop.permute.xlu0 %1333
  %1335 = vrot.lane.b32.xlu0 %v40, 32
  %v1336 = vpop.permute.xlu0 %1335
  %1337 = vrot.lane.b32.xlu0 %v41, 32
  %v1338 = vpop.permute.xlu0 %1337
  %1339 = vrot.lane.b32.xlu0 %v42, 32
  %v1340 = vpop.permute.xlu0 %1339
  %1341 = vrot.lane.b32.xlu0 %v43, 32
  %v1342 = vpop.permute.xlu0 %1341
  %1343 = vrot.lane.b32.xlu0 %v44, 32
  %v1344 = vpop.permute.xlu0 %1343
  %1345 = vrot.lane.b32.xlu0 %v45, 32
  %v1346 = vpop.permute.xlu0 %1345
  %1347 = vrot.lane.b32.xlu0 %v46, 32
  %v1348 = vpop.permute.xlu0 %1347
  %1349 = vrot.lane.b32.xlu0 %v47, 32
  %v1350 = vpop.permute.xlu0 %1349
  %1351 = vrot.lane.b32.xlu0 %v48, 32
  %v1352 = vpop.permute.xlu0 %1351
  %1353 = vrot.lane.b32.xlu0 %v49, 32
  %v1354 = vpop.permute.xlu0 %1353
  %v1387 = vmul.f32 %v1196, %v1292
  %v1388 = vmul.f32 %v1198, %v1294
  %v1389 = vmul.f32 %v1200, %v1296
  %v1390 = vmul.f32 %v1202, %v1298
  %v1391 = vmul.f32 %v1204, %v1300
  %v1392 = vmul.f32 %v1206, %v1302
  %v1393 = vmul.f32 %v1208, %v1304
  %v1394 = vmul.f32 %v1210, %v1306
  %v1395 = vmul.f32 %v1212, %v1308
  %v1396 = vmul.f32 %v1214, %v1310
  %v1397 = vmul.f32 %v1216, %v1312
  %v1398 = vmul.f32 %v1218, %v1314
  %v1399 = vmul.f32 %v1220, %v1316
  %v1400 = vmul.f32 %v1222, %v1318
  %v1401 = vmul.f32 %v1224, %v1320
  %v1402 = vmul.f32 %v1226, %v1322
  %v1403 = vmul.f32 %v1228, %v1324
  %v1404 = vmul.f32 %v1230, %v1326
  %v1405 = vmul.f32 %v1232, %v1328
  %v1406 = vmul.f32 %v1234, %v1330
  %v1407 = vmul.f32 %v1236, %v1332
  %v1408 = vmul.f32 %v1238, %v1334
  %v1409 = vmul.f32 %v1240, %v1336
  %v1410 = vmul.f32 %v1242, %v1338
  %v1411 = vmul.f32 %v1244, %v1340
  %v1412 = vmul.f32 %v1246, %v1342
  %v1413 = vmul.f32 %v1248, %v1344
  %v1414 = vmul.f32 %v1250, %v1346
  %v1415 = vmul.f32 %v1252, %v1348
  %v1416 = vmul.f32 %v1254, %v1350
  %v1417 = vmul.f32 %v1256, %v1352
  %v1418 = vmul.f32 %v1258, %v1354
  %v1419 = vpack.c.bf16 %v1388, %v1387
  %v1420 = vpack.c.bf16 %v1390, %v1389
  %v1421 = vpack.c.bf16 %v1392, %v1391
  %v1422 = vpack.c.bf16 %v1394, %v1393
  %v1423 = vpack.c.bf16 %v1396, %v1395
  %v1424 = vpack.c.bf16 %v1398, %v1397
  %v1425 = vpack.c.bf16 %v1400, %v1399
  %v1426 = vpack.c.bf16 %v1402, %v1401
  %v1427 = vpack.c.bf16 %v1404, %v1403
  %v1428 = vpack.c.bf16 %v1406, %v1405
  %v1429 = vpack.c.bf16 %v1408, %v1407
  %v1430 = vpack.c.bf16 %v1410, %v1409
  %v1431 = vpack.c.bf16 %v1412, %v1411
  %v1432 = vpack.c.bf16 %v1414, %v1413
  %v1433 = vpack.c.bf16 %v1416, %v1415
  %v1434 = vpack.c.bf16 %v1418, %v1417
  %v1451 = vunpack.c.l.b16 %v1419
  %v1452 = vunpack.c.h.b16 %v1419
  %v1453 = vunpack.c.l.b16 %v1420
  %v1454 = vunpack.c.h.b16 %v1420
  %v1455 = vunpack.c.l.b16 %v1421
  %v1456 = vunpack.c.h.b16 %v1421
  %v1457 = vunpack.c.l.b16 %v1422
  %v1458 = vunpack.c.h.b16 %v1422
  %v1459 = vunpack.c.l.b16 %v1423
  %v1460 = vunpack.c.h.b16 %v1423
  %v1461 = vunpack.c.l.b16 %v1424
  %v1462 = vunpack.c.h.b16 %v1424
  %v1463 = vunpack.c.l.b16 %v1425
  %v1464 = vunpack.c.h.b16 %v1425
  %v1465 = vunpack.c.l.b16 %v1426
  %v1466 = vunpack.c.h.b16 %v1426
  %v1467 = vunpack.c.l.b16 %v1427
  %v1468 = vunpack.c.h.b16 %v1427
  %v1469 = vunpack.c.l.b16 %v1428
  %v1470 = vunpack.c.h.b16 %v1428
  %v1471 = vunpack.c.l.b16 %v1429
  %v1472 = vunpack.c.h.b16 %v1429
  %v1473 = vunpack.c.l.b16 %v1430
  %v1474 = vunpack.c.h.b16 %v1430
  %v1475 = vunpack.c.l.b16 %v1431
  %v1476 = vunpack.c.h.b16 %v1431
  %v1477 = vunpack.c.l.b16 %v1432
  %v1478 = vunpack.c.h.b16 %v1432
  %v1479 = vunpack.c.l.b16 %v1433
  %v1480 = vunpack.c.h.b16 %v1433
  %v1481 = vunpack.c.l.b16 %v1434
  %v1482 = vunpack.c.h.b16 %v1434
  %v1483 = vpack.c.b16 %v1451, %v1451
  %v1484 = vpack.c.b16 %v1452, %v1452
  %v1485 = vpack.c.b16 %v1453, %v1453
  %v1486 = vpack.c.b16 %v1454, %v1454
  %v1487 = vpack.c.b16 %v1455, %v1455
  %v1488 = vpack.c.b16 %v1456, %v1456
  %v1489 = vpack.c.b16 %v1457, %v1457
  %v1490 = vpack.c.b16 %v1458, %v1458
  %v1491 = vpack.c.b16 %v1459, %v1459
  %v1492 = vpack.c.b16 %v1460, %v1460
  %v1493 = vpack.c.b16 %v1461, %v1461
  %v1494 = vpack.c.b16 %v1462, %v1462
  %v1495 = vpack.c.b16 %v1463, %v1463
  %v1496 = vpack.c.b16 %v1464, %v1464
  %v1497 = vpack.c.b16 %v1465, %v1465
  %v1498 = vpack.c.b16 %v1466, %v1466
  %v1499 = vpack.c.b16 %v1467, %v1467
  %v1500 = vpack.c.b16 %v1468, %v1468
  %v1501 = vpack.c.b16 %v1469, %v1469
  %v1502 = vpack.c.b16 %v1470, %v1470
  %v1503 = vpack.c.b16 %v1471, %v1471
  %v1504 = vpack.c.b16 %v1472, %v1472
  %v1505 = vpack.c.b16 %v1473, %v1473
  %v1506 = vpack.c.b16 %v1474, %v1474
  %v1507 = vpack.c.b16 %v1475, %v1475
  %v1508 = vpack.c.b16 %v1476, %v1476
  %v1509 = vpack.c.b16 %v1477, %v1477
  %v1510 = vpack.c.b16 %v1478, %v1478
  %v1511 = vpack.c.b16 %v1479, %v1479
  %v1512 = vpack.c.b16 %v1480, %v1480
  %v1513 = vpack.c.b16 %v1481, %v1481
  %v1514 = vpack.c.b16 %v1482, %v1482
  %1515 = vrot.lane.b32.xlu0 %v1483, 96
  %v1516 = vpop.permute.xlu0 %1515
  %1517 = vrot.lane.b32.xlu0 %v1484, 96
  %v1518 = vpop.permute.xlu0 %1517
  %1519 = vrot.lane.b32.xlu0 %v1485, 96
  %v1520 = vpop.permute.xlu0 %1519
  %1521 = vrot.lane.b32.xlu0 %v1486, 96
  %v1522 = vpop.permute.xlu0 %1521
  %1523 = vrot.lane.b32.xlu0 %v1487, 96
  %v1524 = vpop.permute.xlu0 %1523
  %1525 = vrot.lane.b32.xlu0 %v1488, 96
  %v1526 = vpop.permute.xlu0 %1525
  %1527 = vrot.lane.b32.xlu0 %v1489, 96
  %v1528 = vpop.permute.xlu0 %1527
  %1529 = vrot.lane.b32.xlu0 %v1490, 96
  %v1530 = vpop.permute.xlu0 %1529
  %1531 = vrot.lane.b32.xlu0 %v1491, 96
  %v1532 = vpop.permute.xlu0 %1531
  %1533 = vrot.lane.b32.xlu0 %v1492, 96
  %v1534 = vpop.permute.xlu0 %1533
  %1535 = vrot.lane.b32.xlu0 %v1493, 96
  %v1536 = vpop.permute.xlu0 %1535
  %1537 = vrot.lane.b32.xlu0 %v1494, 96
  %v1538 = vpop.permute.xlu0 %1537
  %1539 = vrot.lane.b32.xlu0 %v1495, 96
  %v1540 = vpop.permute.xlu0 %1539
  %1541 = vrot.lane.b32.xlu0 %v1496, 96
  %v1542 = vpop.permute.xlu0 %1541
  %1543 = vrot.lane.b32.xlu0 %v1497, 96
  %v1544 = vpop.permute.xlu0 %1543
  %1545 = vrot.lane.b32.xlu0 %v1498, 96
  %v1546 = vpop.permute.xlu0 %1545
  %1547 = vrot.lane.b32.xlu0 %v1499, 96
  %v1548 = vpop.permute.xlu0 %1547
  %1549 = vrot.lane.b32.xlu0 %v1500, 96
  %v1550 = vpop.permute.xlu0 %1549
  %1551 = vrot.lane.b32.xlu0 %v1501, 96
  %v1552 = vpop.permute.xlu0 %1551
  %1553 = vrot.lane.b32.xlu0 %v1502, 96
  %v1554 = vpop.permute.xlu0 %1553
  %1555 = vrot.lane.b32.xlu0 %v1503, 96
  %v1556 = vpop.permute.xlu0 %1555
  %1557 = vrot.lane.b32.xlu0 %v1504, 96
  %v1558 = vpop.permute.xlu0 %1557
  %1559 = vrot.lane.b32.xlu0 %v1505, 96
  %v1560 = vpop.permute.xlu0 %1559
  %1561 = vrot.lane.b32.xlu0 %v1506, 96
  %v1562 = vpop.permute.xlu0 %1561
  %1563 = vrot.lane.b32.xlu0 %v1507, 96
  %v1564 = vpop.permute.xlu0 %1563
  %1565 = vrot.lane.b32.xlu0 %v1508, 96
  %v1566 = vpop.permute.xlu0 %1565
  %1567 = vrot.lane.b32.xlu0 %v1509, 96
  %v1568 = vpop.permute.xlu0 %1567
  %1569 = vrot.lane.b32.xlu0 %v1510, 96
  %v1570 = vpop.permute.xlu0 %1569
  %1571 = vrot.lane.b32.xlu0 %v1511, 96
  %v1572 = vpop.permute.xlu0 %1571
  %1573 = vrot.lane.b32.xlu0 %v1512, 96
  %v1574 = vpop.permute.xlu0 %1573
  %1575 = vrot.lane.b32.xlu0 %v1513, 96
  %v1576 = vpop.permute.xlu0 %1575
  %1577 = vrot.lane.b32.xlu0 %v1514, 96
  %v1578 = vpop.permute.xlu0 %1577
  %1579 = vrot.lane.b32.xlu0 %v1516, 32
  %v1580 = vpop.permute.xlu0 %1579
  %1581 = vrot.lane.b32.xlu0 %v1518, 32
  %v1582 = vpop.permute.xlu0 %1581
  %1583 = vrot.lane.b32.xlu0 %v1520, 32
  %v1584 = vpop.permute.xlu0 %1583
  %1585 = vrot.lane.b32.xlu0 %v1522, 32
  %v1586 = vpop.permute.xlu0 %1585
  %1587 = vrot.lane.b32.xlu0 %v1524, 32
  %v1588 = vpop.permute.xlu0 %1587
  %1589 = vrot.lane.b32.xlu0 %v1526, 32
  %v1590 = vpop.permute.xlu0 %1589
  %1591 = vrot.lane.b32.xlu0 %v1528, 32
  %v1592 = vpop.permute.xlu0 %1591
  %1593 = vrot.lane.b32.xlu0 %v1530, 32
  %v1594 = vpop.permute.xlu0 %1593
  %1595 = vrot.lane.b32.xlu0 %v1532, 32
  %v1596 = vpop.permute.xlu0 %1595
  %1597 = vrot.lane.b32.xlu0 %v1534, 32
  %v1598 = vpop.permute.xlu0 %1597
  %1599 = vrot.lane.b32.xlu0 %v1536, 32
  %v1600 = vpop.permute.xlu0 %1599
  %1601 = vrot.lane.b32.xlu0 %v1538, 32
  %v1602 = vpop.permute.xlu0 %1601
  %1603 = vrot.lane.b32.xlu0 %v1540, 32
  %v1604 = vpop.permute.xlu0 %1603
  %1605 = vrot.lane.b32.xlu0 %v1542, 32
  %v1606 = vpop.permute.xlu0 %1605
  %1607 = vrot.lane.b32.xlu0 %v1544, 32
  %v1608 = vpop.permute.xlu0 %1607
  %1609 = vrot.lane.b32.xlu0 %v1548, 32
  %v1610 = vpop.permute.xlu0 %1609
  %1611 = vrot.lane.b32.xlu0 %v1550, 32
  %v1612 = vpop.permute.xlu0 %1611
  %1613 = vrot.lane.b32.xlu0 %v1552, 32
  %v1614 = vpop.permute.xlu0 %1613
  %1615 = vrot.lane.b32.xlu0 %v1554, 32
  %v1616 = vpop.permute.xlu0 %1615
  %1617 = vrot.lane.b32.xlu0 %v1556, 32
  %v1618 = vpop.permute.xlu0 %1617
  %1619 = vrot.lane.b32.xlu0 %v1558, 32
  %v1620 = vpop.permute.xlu0 %1619
  %1621 = vrot.lane.b32.xlu0 %v1560, 32
  %v1622 = vpop.permute.xlu0 %1621
  %1623 = vrot.lane.b32.xlu0 %v1562, 32
  %v1624 = vpop.permute.xlu0 %1623
  %1625 = vrot.lane.b32.xlu0 %v1564, 32
  %v1626 = vpop.permute.xlu0 %1625
  %1627 = vrot.lane.b32.xlu0 %v1566, 32
  %v1628 = vpop.permute.xlu0 %1627
  %1629 = vrot.lane.b32.xlu0 %v1568, 32
  %v1630 = vpop.permute.xlu0 %1629
  %1631 = vrot.lane.b32.xlu0 %v1570, 32
  %v1632 = vpop.permute.xlu0 %1631
  %1633 = vrot.lane.b32.xlu0 %v1572, 32
  %v1634 = vpop.permute.xlu0 %1633
  %1635 = vrot.lane.b32.xlu0 %v1574, 32
  %v1636 = vpop.permute.xlu0 %1635
  %1637 = vrot.lane.b32.xlu0 %v1576, 32
  %v1638 = vpop.permute.xlu0 %1637
  %1639 = vrot.lane.b32.xlu0 %v1516, 64
  %v1640 = vpop.permute.xlu0 %1639
  %1641 = vrot.lane.b32.xlu0 %v1518, 64
  %v1642 = vpop.permute.xlu0 %1641
  %1643 = vrot.lane.b32.xlu0 %v1520, 64
  %v1644 = vpop.permute.xlu0 %1643
  %1645 = vrot.lane.b32.xlu0 %v1522, 64
  %v1646 = vpop.permute.xlu0 %1645
  %1647 = vrot.lane.b32.xlu0 %v1524, 64
  %v1648 = vpop.permute.xlu0 %1647
  %1649 = vrot.lane.b32.xlu0 %v1526, 64
  %v1650 = vpop.permute.xlu0 %1649
  %1651 = vrot.lane.b32.xlu0 %v1528, 64
  %v1652 = vpop.permute.xlu0 %1651
  %1653 = vrot.lane.b32.xlu0 %v1530, 64
  %v1654 = vpop.permute.xlu0 %1653
  %1655 = vrot.lane.b32.xlu0 %v1532, 64
  %v1656 = vpop.permute.xlu0 %1655
  %1657 = vrot.lane.b32.xlu0 %v1534, 64
  %v1658 = vpop.permute.xlu0 %1657
  %1659 = vrot.lane.b32.xlu0 %v1536, 64
  %v1660 = vpop.permute.xlu0 %1659
  %1661 = vrot.lane.b32.xlu0 %v1538, 64
  %v1662 = vpop.permute.xlu0 %1661
  %1663 = vrot.lane.b32.xlu0 %v1540, 64
  %v1664 = vpop.permute.xlu0 %1663
  %1665 = vrot.lane.b32.xlu0 %v1542, 64
  %v1666 = vpop.permute.xlu0 %1665
  %1667 = vrot.lane.b32.xlu0 %v1544, 64
  %v1668 = vpop.permute.xlu0 %1667
  %1669 = vrot.lane.b32.xlu0 %v1546, 64
  %v1670 = vpop.permute.xlu0 %1669
  %1671 = vrot.lane.b32.xlu0 %v1548, 64
  %v1672 = vpop.permute.xlu0 %1671
  %1673 = vrot.lane.b32.xlu0 %v1550, 64
  %v1674 = vpop.permute.xlu0 %1673
  %1675 = vrot.lane.b32.xlu0 %v1552, 64
  %v1676 = vpop.permute.xlu0 %1675
  %1677 = vrot.lane.b32.xlu0 %v1554, 64
  %v1678 = vpop.permute.xlu0 %1677
  %1679 = vrot.lane.b32.xlu0 %v1556, 64
  %v1680 = vpop.permute.xlu0 %1679
  %1681 = vrot.lane.b32.xlu0 %v1558, 64
  %v1682 = vpop.permute.xlu0 %1681
  %1683 = vrot.lane.b32.xlu0 %v1560, 64
  %v1684 = vpop.permute.xlu0 %1683
  %1685 = vrot.lane.b32.xlu0 %v1562, 64
  %v1686 = vpop.permute.xlu0 %1685
  %1687 = vrot.lane.b32.xlu0 %v1564, 64
  %v1688 = vpop.permute.xlu0 %1687
  %1689 = vrot.lane.b32.xlu0 %v1566, 64
  %v1690 = vpop.permute.xlu0 %1689
  %1691 = vrot.lane.b32.xlu0 %v1568, 64
  %v1692 = vpop.permute.xlu0 %1691
  %1693 = vrot.lane.b32.xlu0 %v1570, 64
  %v1694 = vpop.permute.xlu0 %1693
  %1695 = vrot.lane.b32.xlu0 %v1572, 64
  %v1696 = vpop.permute.xlu0 %1695
  %1697 = vrot.lane.b32.xlu0 %v1574, 64
  %v1698 = vpop.permute.xlu0 %1697
  %1699 = vrot.lane.b32.xlu0 %v1576, 64
  %v1700 = vpop.permute.xlu0 %1699
  %1701 = vrot.lane.b32.xlu0 %v1578, 64
  %v1702 = vpop.permute.xlu0 %1701
  %1703 = vrot.lane.b32.xlu0 %v1518, 96
  %v1704 = vpop.permute.xlu0 %1703
  %1705 = vrot.lane.b32.xlu0 %v1520, 96
  %v1706 = vpop.permute.xlu0 %1705
  %1707 = vrot.lane.b32.xlu0 %v1522, 96
  %v1708 = vpop.permute.xlu0 %1707
  %1709 = vrot.lane.b32.xlu0 %v1524, 96
  %v1710 = vpop.permute.xlu0 %1709
  %1711 = vrot.lane.b32.xlu0 %v1526, 96
  %v1712 = vpop.permute.xlu0 %1711
  %1713 = vrot.lane.b32.xlu0 %v1528, 96
  %v1714 = vpop.permute.xlu0 %1713
  %1715 = vrot.lane.b32.xlu0 %v1530, 96
  %v1716 = vpop.permute.xlu0 %1715
  %1717 = vrot.lane.b32.xlu0 %v1532, 96
  %v1718 = vpop.permute.xlu0 %1717
  %1719 = vrot.lane.b32.xlu0 %v1534, 96
  %v1720 = vpop.permute.xlu0 %1719
  %1721 = vrot.lane.b32.xlu0 %v1536, 96
  %v1722 = vpop.permute.xlu0 %1721
  %1723 = vrot.lane.b32.xlu0 %v1538, 96
  %v1724 = vpop.permute.xlu0 %1723
  %1725 = vrot.lane.b32.xlu0 %v1540, 96
  %v1726 = vpop.permute.xlu0 %1725
  %1727 = vrot.lane.b32.xlu0 %v1542, 96
  %v1728 = vpop.permute.xlu0 %1727
  %1729 = vrot.lane.b32.xlu0 %v1544, 96
  %v1730 = vpop.permute.xlu0 %1729
  %1731 = vrot.lane.b32.xlu0 %v1546, 96
  %v1732 = vpop.permute.xlu0 %1731
  %1733 = vrot.lane.b32.xlu0 %v1550, 96
  %v1734 = vpop.permute.xlu0 %1733
  %1735 = vrot.lane.b32.xlu0 %v1552, 96
  %v1736 = vpop.permute.xlu0 %1735
  %1737 = vrot.lane.b32.xlu0 %v1554, 96
  %v1738 = vpop.permute.xlu0 %1737
  %1739 = vrot.lane.b32.xlu0 %v1556, 96
  %v1740 = vpop.permute.xlu0 %1739
  %1741 = vrot.lane.b32.xlu0 %v1558, 96
  %v1742 = vpop.permute.xlu0 %1741
  %1743 = vrot.lane.b32.xlu0 %v1560, 96
  %v1744 = vpop.permute.xlu0 %1743
  %1745 = vrot.lane.b32.xlu0 %v1562, 96
  %v1746 = vpop.permute.xlu0 %1745
  %1747 = vrot.lane.b32.xlu0 %v1564, 96
  %v1748 = vpop.permute.xlu0 %1747
  %1749 = vrot.lane.b32.xlu0 %v1566, 96
  %v1750 = vpop.permute.xlu0 %1749
  %1751 = vrot.lane.b32.xlu0 %v1568, 96
  %v1752 = vpop.permute.xlu0 %1751
  %1753 = vrot.lane.b32.xlu0 %v1570, 96
  %v1754 = vpop.permute.xlu0 %1753
  %1755 = vrot.lane.b32.xlu0 %v1572, 96
  %v1756 = vpop.permute.xlu0 %1755
  %1757 = vrot.lane.b32.xlu0 %v1574, 96
  %v1758 = vpop.permute.xlu0 %1757
  %1759 = vrot.lane.b32.xlu0 %v1576, 96
  %v1760 = vpop.permute.xlu0 %1759
  %1761 = vrot.lane.b32.xlu0 %v1578, 96
  %v1762 = vpop.permute.xlu0 %1761
  %v1764 = vsel %vm408, 0, %v1580
  %v1767 = vsel %vm408, %v1516, %v1582
  %v1770 = vsel %vm408, %v1518, %v1584
  %v1773 = vsel %vm408, %v1520, %v1586
  %v1776 = vsel %vm408, %v1522, %v1588
  %v1779 = vsel %vm408, %v1524, %v1590
  %v1782 = vsel %vm408, %v1526, %v1592
  %v1785 = vsel %vm408, %v1528, %v1594
  %v1788 = vsel %vm408, %v1530, %v1596
  %v1791 = vsel %vm408, %v1532, %v1598
  %v1794 = vsel %vm408, %v1534, %v1600
  %v1797 = vsel %vm408, %v1536, %v1602
  %v1800 = vsel %vm408, %v1538, %v1604
  %v1803 = vsel %vm408, %v1540, %v1606
  %v1806 = vsel %vm408, %v1542, %v1608
  %v1808 = vsel %vm408, 0, %v1610
  %v1811 = vsel %vm408, %v1548, %v1612
  %v1814 = vsel %vm408, %v1550, %v1614
  %v1817 = vsel %vm408, %v1552, %v1616
  %v1820 = vsel %vm408, %v1554, %v1618
  %v1823 = vsel %vm408, %v1556, %v1620
  %v1826 = vsel %vm408, %v1558, %v1622
  %v1829 = vsel %vm408, %v1560, %v1624
  %v1832 = vsel %vm408, %v1562, %v1626
  %v1835 = vsel %vm408, %v1564, %v1628
  %v1838 = vsel %vm408, %v1566, %v1630
  %v1841 = vsel %vm408, %v1568, %v1632
  %v1844 = vsel %vm408, %v1570, %v1634
  %v1847 = vsel %vm408, %v1572, %v1636
  %v1850 = vsel %vm408, %v1574, %v1638
  %v1852 = vsel %vm500, %v411, %v1640
  %v1854 = vsel %vm500, %v1764, %v1642
  %v1856 = vsel %vm500, %v1767, %v1644
  %v1858 = vsel %vm500, %v1770, %v1646
  %v1860 = vsel %vm500, %v1773, %v1648
  %v1862 = vsel %vm500, %v1776, %v1650
  %v1864 = vsel %vm500, %v1779, %v1652
  %v1866 = vsel %vm500, %v1782, %v1654
  %v1868 = vsel %vm500, %v1785, %v1656
  %v1870 = vsel %vm500, %v1788, %v1658
  %v1872 = vsel %vm500, %v1791, %v1660
  %v1874 = vsel %vm500, %v1794, %v1662
  %v1876 = vsel %vm500, %v1797, %v1664
  %v1878 = vsel %vm500, %v1800, %v1666
  %v1880 = vsel %vm500, %v1803, %v1668
  %v1882 = vsel %vm500, %v1806, %v1670
  %v1884 = vsel %vm500, %v411, %v1672
  %v1886 = vsel %vm500, %v1808, %v1674
  %v1888 = vsel %vm500, %v1811, %v1676
  %v1890 = vsel %vm500, %v1814, %v1678
  %v1892 = vsel %vm500, %v1817, %v1680
  %v1894 = vsel %vm500, %v1820, %v1682
  %v1896 = vsel %vm500, %v1823, %v1684
  %v1898 = vsel %vm500, %v1826, %v1686
  %v1900 = vsel %vm500, %v1829, %v1688
  %v1902 = vsel %vm500, %v1832, %v1690
  %v1904 = vsel %vm500, %v1835, %v1692
  %v1906 = vsel %vm500, %v1838, %v1694
  %v1908 = vsel %vm500, %v1841, %v1696
  %v1910 = vsel %vm500, %v1844, %v1698
  %v1912 = vsel %vm500, %v1847, %v1700
  %v1914 = vsel %vm500, %v1850, %v1702
  %v1916 = vsel %vm565, %v1852, %v1704
  %v1918 = vsel %vm565, %v1854, %v1706
  %v1920 = vsel %vm565, %v1856, %v1708
  %v1922 = vsel %vm565, %v1858, %v1710
  %v1924 = vsel %vm565, %v1860, %v1712
  %v1926 = vsel %vm565, %v1862, %v1714
  %v1928 = vsel %vm565, %v1864, %v1716
  %v1930 = vsel %vm565, %v1866, %v1718
  %v1932 = vsel %vm565, %v1868, %v1720
  %v1934 = vsel %vm565, %v1870, %v1722
  %v1936 = vsel %vm565, %v1872, %v1724
  %v1938 = vsel %vm565, %v1874, %v1726
  %v1940 = vsel %vm565, %v1876, %v1728
  %v1942 = vsel %vm565, %v1878, %v1730
  %v1944 = vsel %vm565, %v1880, %v1732
  %v1945 = vsel %vm565, %v1882, %v377
  %v1947 = vsel %vm565, %v1884, %v1734
  %v1949 = vsel %vm565, %v1886, %v1736
  %v1951 = vsel %vm565, %v1888, %v1738
  %v1953 = vsel %vm565, %v1890, %v1740
  %v1955 = vsel %vm565, %v1892, %v1742
  %v1957 = vsel %vm565, %v1894, %v1744
  %v1959 = vsel %vm565, %v1896, %v1746
  %v1961 = vsel %vm565, %v1898, %v1748
  %v1963 = vsel %vm565, %v1900, %v1750
  %v1965 = vsel %vm565, %v1902, %v1752
  %v1967 = vsel %vm565, %v1904, %v1754
  %v1969 = vsel %vm565, %v1906, %v1756
  %v1971 = vsel %vm565, %v1908, %v1758
  %v1973 = vsel %vm565, %v1910, %v1760
  %v1975 = vsel %vm565, %v1912, %v1762
  %v1976 = vsel %vm565, %v1914, %v377
  %v2009 = vunpack.c.l.b16 %v1916
  %v2010 = vunpack.c.l.b16 %v1520
  %v2011 = vunpack.c.l.b16 %v1918
  %v2012 = vunpack.c.l.b16 %v1522
  %v2013 = vunpack.c.l.b16 %v1920
  %v2014 = vunpack.c.l.b16 %v1524
  %v2015 = vunpack.c.l.b16 %v1922
  %v2016 = vunpack.c.l.b16 %v1526
  %v2017 = vunpack.c.l.b16 %v1924
  %v2018 = vunpack.c.l.b16 %v1528
  %v2019 = vunpack.c.l.b16 %v1926
  %v2020 = vunpack.c.l.b16 %v1530
  %v2021 = vunpack.c.l.b16 %v1928
  %v2022 = vunpack.c.l.b16 %v1532
  %v2023 = vunpack.c.l.b16 %v1930
  %v2024 = vunpack.c.l.b16 %v1534
  %v2025 = vunpack.c.l.b16 %v1932
  %v2026 = vunpack.c.l.b16 %v1536
  %v2027 = vunpack.c.l.b16 %v1934
  %v2028 = vunpack.c.l.b16 %v1538
  %v2029 = vunpack.c.l.b16 %v1936
  %v2030 = vunpack.c.l.b16 %v1540
  %v2031 = vunpack.c.l.b16 %v1938
  %v2032 = vunpack.c.l.b16 %v1542
  %v2033 = vunpack.c.l.b16 %v1940
  %v2034 = vunpack.c.l.b16 %v1544
  %v2035 = vunpack.c.l.b16 %v1942
  %v2036 = vunpack.c.l.b16 %v1546
  %v2037 = vunpack.c.l.b16 %v1944
  %v2038 = vunpack.c.l.b16 %v1945
  %v2039 = vunpack.c.l.b16 %v1947
  %v2040 = vunpack.c.l.b16 %v1552
  %v2041 = vunpack.c.l.b16 %v1949
  %v2042 = vunpack.c.l.b16 %v1554
  %v2043 = vunpack.c.l.b16 %v1951
  %v2044 = vunpack.c.l.b16 %v1556
  %v2045 = vunpack.c.l.b16 %v1953
  %v2046 = vunpack.c.l.b16 %v1558
  %v2047 = vunpack.c.l.b16 %v1955
  %v2048 = vunpack.c.l.b16 %v1560
  %v2049 = vunpack.c.l.b16 %v1957
  %v2050 = vunpack.c.l.b16 %v1562
  %v2051 = vunpack.c.l.b16 %v1959
  %v2052 = vunpack.c.l.b16 %v1564
  %v2053 = vunpack.c.l.b16 %v1961
  %v2054 = vunpack.c.l.b16 %v1566
  %v2055 = vunpack.c.l.b16 %v1963
  %v2056 = vunpack.c.l.b16 %v1568
  %v2057 = vunpack.c.l.b16 %v1965
  %v2058 = vunpack.c.l.b16 %v1570
  %v2059 = vunpack.c.l.b16 %v1967
  %v2060 = vunpack.c.l.b16 %v1572
  %v2061 = vunpack.c.l.b16 %v1969
  %v2062 = vunpack.c.l.b16 %v1574
  %v2063 = vunpack.c.l.b16 %v1971
  %v2064 = vunpack.c.l.b16 %v1576
  %v2065 = vunpack.c.l.b16 %v1973
  %v2066 = vunpack.c.l.b16 %v1578
  %v2067 = vunpack.c.l.b16 %v1975
  %v2068 = vunpack.c.l.b16 %v1976
  %v2069 = vpack.c.b16 %v2011, %v2009
  %v2070 = vpack.c.b16 %v2012, %v2010
  %v2071 = vpack.c.b16 %v2015, %v2013
  %v2072 = vpack.c.b16 %v2016, %v2014
  %v2073 = vpack.c.b16 %v2019, %v2017
  %v2074 = vpack.c.b16 %v2020, %v2018
  %v2075 = vpack.c.b16 %v2023, %v2021
  %v2076 = vpack.c.b16 %v2024, %v2022
  %v2077 = vpack.c.b16 %v2027, %v2025
  %v2078 = vpack.c.b16 %v2028, %v2026
  %v2079 = vpack.c.b16 %v2031, %v2029
  %v2080 = vpack.c.b16 %v2032, %v2030
  %v2081 = vpack.c.b16 %v2035, %v2033
  %v2082 = vpack.c.b16 %v2036, %v2034
  %v2083 = vpack.c.b16 %v2038, %v2037
  %v2084 = vpack.c.b16 %v2041, %v2039
  %v2085 = vpack.c.b16 %v2042, %v2040
  %v2086 = vpack.c.b16 %v2045, %v2043
  %v2087 = vpack.c.b16 %v2046, %v2044
  %v2088 = vpack.c.b16 %v2049, %v2047
  %v2089 = vpack.c.b16 %v2050, %v2048
  %v2090 = vpack.c.b16 %v2053, %v2051
  %v2091 = vpack.c.b16 %v2054, %v2052
  %v2092 = vpack.c.b16 %v2057, %v2055
  %v2093 = vpack.c.b16 %v2058, %v2056
  %v2094 = vpack.c.b16 %v2061, %v2059
  %v2095 = vpack.c.b16 %v2062, %v2060
  %v2096 = vpack.c.b16 %v2065, %v2063
  %v2097 = vpack.c.b16 %v2066, %v2064
  %v2098 = vpack.c.b16 %v2068, %v2067
  %v2135 = vunpack.c.l.b16 %v71
  %v2136 = vunpack.c.l.b16 %v72
  %v2137 = vunpack.c.l.b16 %v73
  %v2138 = vunpack.c.l.b16 %v74
  %v2139 = vunpack.c.l.b16 %v75
  %v2140 = vunpack.c.l.b16 %v76
  %v2141 = vunpack.c.l.b16 %v77
  %v2142 = vunpack.c.l.b16 %v78
  %v2143 = vunpack.c.l.b16 %v79
  %v2144 = vunpack.c.l.b16 %v80
  %v2145 = vunpack.c.l.b16 %v81
  %v2146 = vunpack.c.l.b16 %v82
  %v2147 = vunpack.c.l.b16 %v83
  %v2148 = vunpack.c.l.b16 %v84
  %v2149 = vunpack.c.l.b16 %v85
  %v2150 = vunpack.c.l.b16 %v86
  %v2151 = vunpack.c.l.b16 %v87
  %v2152 = vunpack.c.l.b16 %v88
  %v2153 = vunpack.c.l.b16 %v89
  %v2154 = vunpack.c.l.b16 %v90
  %v2155 = vpack.c.b16 %v2136, %v2135
  %v2156 = vpack.c.b16 %v2138, %v2137
  %v2157 = vpack.c.b16 %v2140, %v2139
  %v2158 = vpack.c.b16 %v2142, %v2141
  %v2159 = vpack.c.b16 %v2144, %v2143
  %v2160 = vpack.c.b16 %v2146, %v2145
  %v2161 = vpack.c.b16 %v2148, %v2147
  %v2162 = vpack.c.b16 %v2150, %v2149
  %v2163 = vpack.c.b16 %v2152, %v2151
  %v2164 = vpack.c.b16 %v2154, %v2153
  %v2176 = vsel %vm408, %v2070, 0
  %v2179 = vsel %vm408, %v2072, 0
  %v2182 = vsel %vm408, %v2074, 0
  %v2185 = vsel %vm408, %v2076, 0
  %v2188 = vsel %vm408, %v2078, 0
  %v2191 = vsel %vm408, %v2080, 0
  %v2194 = vsel %vm408, %v2082, 0
  %v2197 = vsel %vm408, %v2085, 0
  %v2200 = vsel %vm408, %v2087, 0
  %v2203 = vsel %vm408, %v2089, 0
  %v2206 = vsel %vm408, %v2091, 0
  %v2209 = vsel %vm408, %v2093, 0
  %v2212 = vsel %vm408, %v2095, 0
  %v2215 = vsel %vm408, %v2097, 0
  %2217 = vmatprep.subr.bf16.mxu0 0
  %2218 = vmatpush1.bf16.msra.mxu0 %v2155
  %2219 = vmatprep.subr.bf16.mxu0 0
  %2220 = vmatpush1.bf16.msra.mxu0 %v2156
  %2221 = vmatprep.subr.bf16.mxu0 0
  %2222 = vmatpush1.bf16.msra.mxu0 %v2157
  %2223 = vmatprep.subr.bf16.mxu0 0
  %2224 = vmatpush1.bf16.msra.mxu0 %v2158
  %2225 = vmatprep.subr.bf16.mxu0 0
  %2226 = vmatpush1.bf16.msra.mxu0 %v2159
  %2227 = vmatprep.subr.bf16.mxu0 0
  %2228 = vmatpush1.bf16.msra.mxu0 %v2160
  %2229 = vmatprep.subr.bf16.mxu0 0
  %2230 = vmatpush1.bf16.msra.mxu0 %v2161
  %2231 = vmatprep.subr.bf16.mxu0 0
  %2232 = vmatpush1.bf16.msra.mxu0 %v2162
  %2233 = vmatprep.subr.bf16.mxu0 0
  %2234 = vmatpush1.bf16.msra.mxu0 %v2163
  %2235 = vmatprep.subr.bf16.mxu0 0
  %2236 = vmatpush1.bf16.msra.mxu0 %v2164
  %2237 = vmatprep.subr.bf16.mxu0 0
  %2238 = vmatpush1.bf16.msra.mxu0 0
  %2239 = vmatprep.subr.bf16.mxu0 0
  %2240 = vmatpush1.bf16.msra.mxu0 0
  %2241 = vmatprep.subr.bf16.mxu0 0
  %2242 = vmatpush1.bf16.msra.mxu0 0
  %2243 = vmatprep.subr.bf16.mxu0 0
  %2244 = vmatpush1.bf16.msra.mxu0 0
  %2245 = vmatprep.subr.bf16.mxu0 0
  %2246 = vmatpush1.bf16.msra.mxu0 0
  %2247 = vmatprep.subr.bf16.mxu0 0
  %2248 = vmatpush1.bf16.msra.mxu0 0
  %2249 = vmatprep.mubr.bf16.mxu0 %v2176
  %2250 = vmatmul.mubr.bf16.gmra.mrb[0].mxu0 %v2069
  %v2251 = vpop.f32.mrb[0].mxu0
  %v2252 = vadd.f32 0.0, %v2251
  %v2253 = vpop.f32.mrb[0].mxu0
  %v2254 = vpop.f32.mrb[0].mxu0
  %v2255 = vadd.f32 0.0, %v2254
  %v2256 = vpop.f32.mrb[0].mxu0
  %2257 = vmatprep.mubr.bf16.mxu0 %v2179
  %2258 = vmatmul.mubr.bf16.gmra.mrb[0].mxu0 %v2071
  %v2259 = vpop.f32.mrb[0].mxu0
  %v2260 = vadd.f32 0.0, %v2259
  %v2261 = vpop.f32.mrb[0].mxu0
  %v2262 = vpop.f32.mrb[0].mxu0
  %v2263 = vadd.f32 0.0, %v2262
  %v2264 = vpop.f32.mrb[0].mxu0
  %2265 = vmatprep.mubr.bf16.mxu0 %v2182
  %2266 = vmatmul.mubr.bf16.gmra.mrb[0].mxu0 %v2073
  %v2267 = vpop.f32.mrb[0].mxu0
  %v2268 = vadd.f32 0.0, %v2267
  %v2269 = vpop.f32.mrb[0].mxu0
  %v2270 = vpop.f32.mrb[0].mxu0
  %v2271 = vadd.f32 0.0, %v2270
  %v2272 = vpop.f32.mrb[0].mxu0
  %2273 = vmatprep.mubr.bf16.mxu0 %v2185
  %2274 = vmatmul.mubr.bf16.gmra.mrb[0].mxu0 %v2075
  %v2275 = vpop.f32.mrb[0].mxu0
  %v2276 = vadd.f32 0.0, %v2275
  %v2277 = vpop.f32.mrb[0].mxu0
  %v2278 = vpop.f32.mrb[0].mxu0
  %v2279 = vadd.f32 0.0, %v2278
  %v2280 = vpop.f32.mrb[0].mxu0
  %2281 = vmatprep.mubr.bf16.mxu0 %v2188
  %2282 = vmatmul.mubr.bf16.gmra.mrb[0].mxu0 %v2077
  %v2283 = vpop.f32.mrb[0].mxu0
  %v2284 = vadd.f32 0.0, %v2283
  %v2285 = vpop.f32.mrb[0].mxu0
  %v2286 = vpop.f32.mrb[0].mxu0
  %v2287 = vadd.f32 0.0, %v2286
  %v2288 = vpop.f32.mrb[0].mxu0
  %2289 = vmatprep.mubr.bf16.mxu0 %v2191
  %2290 = vmatmul.mubr.bf16.gmra.mrb[0].mxu0 %v2079
  %v2291 = vpop.f32.mrb[0].mxu0
  %v2292 = vadd.f32 0.0, %v2291
  %v2293 = vpop.f32.mrb[0].mxu0
  %v2294 = vpop.f32.mrb[0].mxu0
  %v2295 = vadd.f32 0.0, %v2294
  %v2296 = vpop.f32.mrb[0].mxu0
  %2297 = vmatprep.mubr.bf16.mxu0 %v2194
  %2298 = vmatmul.mubr.bf16.gmra.mrb[0].mxu0 %v2081
  %v2299 = vpop.f32.mrb[0].mxu0
  %v2300 = vadd.f32 0.0, %v2299
  %v2301 = vpop.f32.mrb[0].mxu0
  %v2302 = vpop.f32.mrb[0].mxu0
  %v2303 = vadd.f32 0.0, %v2302
  %v2304 = vpop.f32.mrb[0].mxu0
  %2305 = vmatprep.mubr.bf16.mxu0 %v883
  %2306 = vmatmul.mubr.bf16.gmra.mrb[0].mxu0 %v2083
  %v2307 = vpop.f32.mrb[0].mxu0
  %v2308 = vadd.f32 0.0, %v2307
  %v2309 = vpop.f32.mrb[0].mxu0
  %v2310 = vpop.f32.mrb[0].mxu0
  %v2311 = vadd.f32 0.0, %v2310
  %v2312 = vpop.f32.mrb[0].mxu0
  %2313 = vmatprep.mubr.bf16.mxu0 %v2197
  %2314 = vmatmul.mubr.bf16.gmra.mrb[0].mxu0 %v2084
  %v2315 = vpop.f32.mrb[0].mxu0
  %v2316 = vadd.f32 0.0, %v2315
  %v2317 = vpop.f32.mrb[0].mxu0
  %v2318 = vpop.f32.mrb[0].mxu0
  %v2319 = vadd.f32 0.0, %v2318
  %v2320 = vpop.f32.mrb[0].mxu0
  %2321 = vmatprep.mubr.bf16.mxu0 %v2200
  %2322 = vmatmul.mubr.bf16.gmra.mrb[0].mxu0 %v2086
  %v2323 = vpop.f32.mrb[0].mxu0
  %v2324 = vadd.f32 0.0, %v2323
  %v2325 = vpop.f32.mrb[0].mxu0
  %v2326 = vpop.f32.mrb[0].mxu0
  %v2327 = vadd.f32 0.0, %v2326
  %v2328 = vpop.f32.mrb[0].mxu0
  %2329 = vmatprep.mubr.bf16.mxu0 %v2203
  %2330 = vmatmul.mubr.bf16.gmra.mrb[0].mxu0 %v2088
  %v2331 = vpop.f32.mrb[0].mxu0
  %v2332 = vadd.f32 0.0, %v2331
  %v2333 = vpop.f32.mrb[0].mxu0
  %v2334 = vpop.f32.mrb[0].mxu0
  %v2335 = vadd.f32 0.0, %v2334
  %v2336 = vpop.f32.mrb[0].mxu0
  %2337 = vmatprep.mubr.bf16.mxu0 %v2206
  %2338 = vmatmul.mubr.bf16.gmra.mrb[0].mxu0 %v2090
  %v2339 = vpop.f32.mrb[0].mxu0
  %v2340 = vadd.f32 0.0, %v2339
  %v2341 = vpop.f32.mrb[0].mxu0
  %v2342 = vpop.f32.mrb[0].mxu0
  %v2343 = vadd.f32 0.0, %v2342
  %v2344 = vpop.f32.mrb[0].mxu0
  %2345 = vmatprep.mubr.bf16.mxu0 %v2209
  %2346 = vmatmul.mubr.bf16.gmra.mrb[0].mxu0 %v2092
  %v2347 = vpop.f32.mrb[0].mxu0
  %v2348 = vadd.f32 0.0, %v2347
  %v2349 = vpop.f32.mrb[0].mxu0
  %v2350 = vpop.f32.mrb[0].mxu0
  %v2351 = vadd.f32 0.0, %v2350
  %v2352 = vpop.f32.mrb[0].mxu0
  %2353 = vmatprep.mubr.bf16.mxu0 %v2212
  %2354 = vmatmul.mubr.bf16.gmra.mrb[0].mxu0 %v2094
  %v2355 = vpop.f32.mrb[0].mxu0
  %v2356 = vadd.f32 0.0, %v2355
  %v2357 = vpop.f32.mrb[0].mxu0
  %v2358 = vpop.f32.mrb[0].mxu0
  %v2359 = vadd.f32 0.0, %v2358
  %v2360 = vpop.f32.mrb[0].mxu0
  %2361 = vmatprep.mubr.bf16.mxu0 %v2215
  %2362 = vmatmul.mubr.bf16.gmra.mrb[0].mxu0 %v2096
  %v2363 = vpop.f32.mrb[0].mxu0
  %v2364 = vadd.f32 0.0, %v2363
  %v2365 = vpop.f32.mrb[0].mxu0
  %v2366 = vpop.f32.mrb[0].mxu0
  %v2367 = vadd.f32 0.0, %v2366
  %v2368 = vpop.f32.mrb[0].mxu0
  %2369 = vmatprep.mubr.bf16.mxu0 %v883
  %2370 = vmatmul.mubr.bf16.gmra.mrb[0].mxu0 %v2098
  %v2371 = vpop.f32.mrb[0].mxu0
  %v2372 = vadd.f32 0.0, %v2371
  %v2373 = vpop.f32.mrb[0].mxu0
  %v2374 = vpop.f32.mrb[0].mxu0
  %v2375 = vadd.f32 0.0, %v2374
  %v2376 = vpop.f32.mrb[0].mxu0
  %2377 = vdwg.mxu0
  %v2378 = vunpack.c.l.bf16 %v123
  %v2379 = vunpack.c.l.bf16 %v124
  %v2380 = vunpack.c.l.bf16 %v125
  %v2381 = vunpack.c.l.bf16 %v126
  %v2382 = vunpack.c.l.bf16 %v127
  %v2383 = vunpack.c.l.bf16 %v128
  %v2384 = vunpack.c.l.bf16 %v129
  %v2385 = vunpack.c.l.bf16 %v130
  %v2386 = vunpack.c.l.bf16 %v131
  %v2387 = vunpack.c.l.bf16 %v132
  %v2388 = vunpack.c.l.bf16 %v133
  %v2389 = vunpack.c.l.bf16 %v134
  %v2390 = vunpack.c.l.bf16 %v135
  %v2391 = vunpack.c.l.bf16 %v136
  %v2392 = vunpack.c.l.bf16 %v137
  %v2393 = vunpack.c.l.bf16 %v138
  %v2394 = vunpack.c.l.bf16 %v139
  %v2395 = vunpack.c.l.bf16 %v140
  %v2396 = vunpack.c.l.bf16 %v141
  %v2397 = vunpack.c.l.bf16 %v142
  %v2398 = vunpack.c.l.bf16 %v143
  %v2399 = vunpack.c.l.bf16 %v144
  %v2400 = vunpack.c.l.bf16 %v145
  %v2401 = vunpack.c.l.bf16 %v146
  %v2402 = vunpack.c.l.bf16 %v147
  %v2403 = vunpack.c.l.bf16 %v148
  %v2404 = vunpack.c.l.bf16 %v149
  %v2405 = vunpack.c.l.bf16 %v150
  %v2406 = vunpack.c.l.bf16 %v151
  %v2407 = vunpack.c.l.bf16 %v152
  %v2408 = vunpack.c.l.bf16 %v153
  %v2409 = vunpack.c.l.bf16 %v154
  %v2410 = vadd.f32 %v2252, %v2378
  %v2411 = vadd.f32 %v2255, %v2379
  %v2412 = vadd.f32 %v2260, %v2380
  %v2413 = vadd.f32 %v2263, %v2381
  %v2414 = vadd.f32 %v2268, %v2382
  %v2415 = vadd.f32 %v2271, %v2383
  %v2416 = vadd.f32 %v2276, %v2384
  %v2417 = vadd.f32 %v2279, %v2385
  %v2418 = vadd.f32 %v2284, %v2386
  %v2419 = vadd.f32 %v2287, %v2387
  %v2420 = vadd.f32 %v2292, %v2388
  %v2421 = vadd.f32 %v2295, %v2389
  %v2422 = vadd.f32 %v2300, %v2390
  %v2423 = vadd.f32 %v2303, %v2391
  %v2424 = vadd.f32 %v2308, %v2392
  %v2425 = vadd.f32 %v2311, %v2393
  %v2426 = vadd.f32 %v2316, %v2394
  %v2427 = vadd.f32 %v2319, %v2395
  %v2428 = vadd.f32 %v2324, %v2396
  %v2429 = vadd.f32 %v2327, %v2397
  %v2430 = vadd.f32 %v2332, %v2398
  %v2431 = vadd.f32 %v2335, %v2399
  %v2432 = vadd.f32 %v2340, %v2400
  %v2433 = vadd.f32 %v2343, %v2401
  %v2434 = vadd.f32 %v2348, %v2402
  %v2435 = vadd.f32 %v2351, %v2403
  %v2436 = vadd.f32 %v2356, %v2404
  %v2437 = vadd.f32 %v2359, %v2405
  %v2438 = vadd.f32 %v2364, %v2406
  %v2439 = vadd.f32 %v2367, %v2407
  %v2440 = vadd.f32 %v2372, %v2408
  %v2441 = vadd.f32 %v2375, %v2409
  %v2442 = vtanh.pop %v2410
  %v2443 = vtanh.pop %v2411
  %v2444 = vtanh.pop %v2412
  %v2445 = vtanh.pop %v2413
  %v2446 = vtanh.pop %v2414
  %v2447 = vtanh.pop %v2415
  %v2448 = vtanh.pop %v2416
  %v2449 = vtanh.pop %v2417
  %v2450 = vtanh.pop %v2418
  %v2451 = vtanh.pop %v2419
  %v2452 = vtanh.pop %v2420
  %v2453 = vtanh.pop %v2421
  %v2454 = vtanh.pop %v2422
  %v2455 = vtanh.pop %v2423
  %v2456 = vtanh.pop %v2424
  %v2457 = vtanh.pop %v2425
  %v2458 = vtanh.pop %v2426
  %v2459 = vtanh.pop %v2427
  %v2460 = vtanh.pop %v2428
  %v2461 = vtanh.pop %v2429
  %v2462 = vtanh.pop %v2430
  %v2463 = vtanh.pop %v2431
  %v2464 = vtanh.pop %v2432
  %v2465 = vtanh.pop %v2433
  %v2466 = vtanh.pop %v2434
  %v2467 = vtanh.pop %v2435
  %v2468 = vtanh.pop %v2436
  %v2469 = vtanh.pop %v2437
  %v2470 = vtanh.pop %v2438
  %v2471 = vtanh.pop %v2439
  %v2472 = vtanh.pop %v2440
  %v2473 = vtanh.pop %v2441
  %v2474 = vsub.f32 1.0, %v1196
  %v2475 = vsub.f32 1.0, %v1198
  %v2476 = vsub.f32 1.0, %v1200
  %v2477 = vsub.f32 1.0, %v1202
  %v2478 = vsub.f32 1.0, %v1204
  %v2479 = vsub.f32 1.0, %v1206
  %v2480 = vsub.f32 1.0, %v1208
  %v2481 = vsub.f32 1.0, %v1210
  %v2482 = vsub.f32 1.0, %v1212
  %v2483 = vsub.f32 1.0, %v1214
  %v2484 = vsub.f32 1.0, %v1216
  %v2485 = vsub.f32 1.0, %v1218
  %v2486 = vsub.f32 1.0, %v1220
  %v2487 = vsub.f32 1.0, %v1222
  %v2488 = vsub.f32 1.0, %v1224
  %v2489 = vsub.f32 1.0, %v1226
  %v2490 = vsub.f32 1.0, %v1228
  %v2491 = vsub.f32 1.0, %v1230
  %v2492 = vsub.f32 1.0, %v1232
  %v2493 = vsub.f32 1.0, %v1234
  %v2494 = vsub.f32 1.0, %v1236
  %v2495 = vsub.f32 1.0, %v1238
  %v2496 = vsub.f32 1.0, %v1240
  %v2497 = vsub.f32 1.0, %v1242
  %v2498 = vsub.f32 1.0, %v1244
  %v2499 = vsub.f32 1.0, %v1246
  %v2500 = vsub.f32 1.0, %v1248
  %v2501 = vsub.f32 1.0, %v1250
  %v2502 = vsub.f32 1.0, %v1252
  %v2503 = vsub.f32 1.0, %v1254
  %v2504 = vsub.f32 1.0, %v1256
  %v2505 = vsub.f32 1.0, %v1258
  %v2506 = vmul.f32 %v2474, %v18
  %v2507 = vmul.f32 %v2475, %v19
  %v2508 = vmul.f32 %v2476, %v20
  %v2509 = vmul.f32 %v2477, %v21
  %v2510 = vmul.f32 %v2478, %v22
  %v2511 = vmul.f32 %v2479, %v23
  %v2512 = vmul.f32 %v2480, %v24
  %v2513 = vmul.f32 %v2481, %v25
  %v2514 = vmul.f32 %v2482, %v26
  %v2515 = vmul.f32 %v2483, %v27
  %v2516 = vmul.f32 %v2484, %v28
  %v2517 = vmul.f32 %v2485, %v29
  %v2518 = vmul.f32 %v2486, %v30
  %v2519 = vmul.f32 %v2487, %v31
  %v2520 = vmul.f32 %v2488, %v32
  %v2521 = vmul.f32 %v2489, %v33
  %v2522 = vmul.f32 %v2490, %v34
  %v2523 = vmul.f32 %v2491, %v35
  %v2524 = vmul.f32 %v2492, %v36
  %v2525 = vmul.f32 %v2493, %v37
  %v2526 = vmul.f32 %v2494, %v38
  %v2527 = vmul.f32 %v2495, %v39
  %v2528 = vmul.f32 %v2496, %v40
  %v2529 = vmul.f32 %v2497, %v41
  %v2530 = vmul.f32 %v2498, %v42
  %v2531 = vmul.f32 %v2499, %v43
  %v2532 = vmul.f32 %v2500, %v44
  %v2533 = vmul.f32 %v2501, %v45
  %v2534 = vmul.f32 %v2502, %v46
  %v2535 = vmul.f32 %v2503, %v47
  %v2536 = vmul.f32 %v2504, %v48
  %v2537 = vmul.f32 %v2505, %v49
  %v2538 = vmul.f32 %v1196, %v2442
  %v2539 = vmul.f32 %v1198, %v2443
  %v2540 = vmul.f32 %v1200, %v2444
  %v2541 = vmul.f32 %v1202, %v2445
  %v2542 = vmul.f32 %v1204, %v2446
  %v2543 = vmul.f32 %v1206, %v2447
  %v2544 = vmul.f32 %v1208, %v2448
  %v2545 = vmul.f32 %v1210, %v2449
  %v2546 = vmul.f32 %v1212, %v2450
  %v2547 = vmul.f32 %v1214, %v2451
  %v2548 = vmul.f32 %v1216, %v2452
  %v2549 = vmul.f32 %v1218, %v2453
  %v2550 = vmul.f32 %v1220, %v2454
  %v2551 = vmul.f32 %v1222, %v2455
  %v2552 = vmul.f32 %v1224, %v2456
  %v2553 = vmul.f32 %v1226, %v2457
  %v2554 = vmul.f32 %v1228, %v2458
  %v2555 = vmul.f32 %v1230, %v2459
  %v2556 = vmul.f32 %v1232, %v2460
  %v2557 = vmul.f32 %v1234, %v2461
  %v2558 = vmul.f32 %v1236, %v2462
  %v2559 = vmul.f32 %v1238, %v2463
  %v2560 = vmul.f32 %v1240, %v2464
  %v2561 = vmul.f32 %v1242, %v2465
  %v2562 = vmul.f32 %v1244, %v2466
  %v2563 = vmul.f32 %v1246, %v2467
  %v2564 = vmul.f32 %v1248, %v2468
  %v2565 = vmul.f32 %v1250, %v2469
  %v2566 = vmul.f32 %v1252, %v2470
  %v2567 = vmul.f32 %v1254, %v2471
  %v2568 = vmul.f32 %v1256, %v2472
  %v2569 = vmul.f32 %v1258, %v2473
  %v2570 = vadd.f32 %v2506, %v2538
  %v2571 = vadd.f32 %v2507, %v2539
  %v2572 = vadd.f32 %v2508, %v2540
  %v2573 = vadd.f32 %v2509, %v2541
  %v2574 = vadd.f32 %v2510, %v2542
  %v2575 = vadd.f32 %v2511, %v2543
  %v2576 = vadd.f32 %v2512, %v2544
  %v2577 = vadd.f32 %v2513, %v2545
  %v2578 = vadd.f32 %v2514, %v2546
  %v2579 = vadd.f32 %v2515, %v2547
  %v2580 = vadd.f32 %v2516, %v2548
  %v2581 = vadd.f32 %v2517, %v2549
  %v2582 = vadd.f32 %v2518, %v2550
  %v2583 = vadd.f32 %v2519, %v2551
  %v2584 = vadd.f32 %v2520, %v2552
  %v2585 = vadd.f32 %v2521, %v2553
  %v2586 = vadd.f32 %v2522, %v2554
  %v2587 = vadd.f32 %v2523, %v2555
  %v2588 = vadd.f32 %v2524, %v2556
  %v2589 = vadd.f32 %v2525, %v2557
  %v2590 = vadd.f32 %v2526, %v2558
  %v2591 = vadd.f32 %v2527, %v2559
  %v2592 = vadd.f32 %v2528, %v2560
  %v2593 = vadd.f32 %v2529, %v2561
  %v2594 = vadd.f32 %v2530, %v2562
  %v2595 = vadd.f32 %v2531, %v2563
  %v2596 = vadd.f32 %v2532, %v2564
  %v2597 = vadd.f32 %v2533, %v2565
  %v2598 = vadd.f32 %v2534, %v2566
  %v2599 = vadd.f32 %v2535, %v2567
  %v2600 = vadd.f32 %v2536, %v2568
  %v2601 = vadd.f32 %v2537, %v2569
  %s2602 = scalar_lea.vmem %s3, 160
  %v2603 = vld [vmem:[%s2602] sm:$0xf]
  %v2604 = vld [vmem:[%s2602 + $0x4] sm:$0xf]
  %v2605 = vld [vmem:[%s2602 + $0x8] sm:$0xf]
  %v2606 = vld [vmem:[%s2602 + $0xc] sm:$0xf]
  %v2607 = vld [vmem:[%s2602 + $0x10] sm:$0xf]
  %v2608 = vld [vmem:[%s2602 + $0x14] sm:$0xf]
  %v2609 = vld [vmem:[%s2602 + $0x18] sm:$0xf]
  %v2610 = vld [vmem:[%s2602 + $0x1c] sm:$0xf]
  %v2611 = vld [vmem:[%s2602 + $0x20] sm:$0xf]
  %v2612 = vld [vmem:[%s2602 + $0x24] sm:$0xf]
  %v2613 = vld [vmem:[%s2602 + $0x28] sm:$0xf]
  %v2614 = vld [vmem:[%s2602 + $0x2c] sm:$0xf]
  %v2615 = vld [vmem:[%s2602 + $0x30] sm:$0xf]
  %v2616 = vld [vmem:[%s2602 + $0x34] sm:$0xf]
  %v2617 = vld [vmem:[%s2602 + $0x38] sm:$0xf]
  %v2618 = vld [vmem:[%s2602 + $0x3c] sm:$0xf]
  %v2619 = vld [vmem:[%s2602 + $0x40] sm:$0xf]
  %v2620 = vld [vmem:[%s2602 + $0x44] sm:$0xf]
  %v2621 = vld [vmem:[%s2602 + $0x48] sm:$0xf]
  %v2622 = vld [vmem:[%s2602 + $0x4c] sm:$0xf]
  %s2623 = scalar_lea.vmem %s3, 240
  %v2624 = vld [vmem:[%s2623] sm:$0xf]
  %v2625 = vld [vmem:[%s2623 + $0x4] sm:$0xf]
  %v2626 = vld [vmem:[%s2623 + $0x8] sm:$0xf]
  %v2627 = vld [vmem:[%s2623 + $0xc] sm:$0xf]
  %v2628 = vld [vmem:[%s2623 + $0x10] sm:$0xf]
  %v2629 = vld [vmem:[%s2623 + $0x14] sm:$0xf]
  %v2630 = vld [vmem:[%s2623 + $0x18] sm:$0xf]
  %v2631 = vld [vmem:[%s2623 + $0x1c] sm:$0xf]
  %v2632 = vld [vmem:[%s2623 + $0x20] sm:$0xf]
  %v2633 = vld [vmem:[%s2623 + $0x24] sm:$0xf]
  %v2634 = vld [vmem:[%s2623 + $0x28] sm:$0xf]
  %v2635 = vld [vmem:[%s2623 + $0x2c] sm:$0xf]
  %v2636 = vld [vmem:[%s2623 + $0x30] sm:$0xf]
  %v2637 = vld [vmem:[%s2623 + $0x34] sm:$0xf]
  %v2638 = vld [vmem:[%s2623 + $0x38] sm:$0xf]
  %v2639 = vld [vmem:[%s2623 + $0x3c] sm:$0xf]
  %v2640 = vld [vmem:[%s2623 + $0x40] sm:$0xf]
  %v2641 = vld [vmem:[%s2623 + $0x44] sm:$0xf]
  %v2642 = vld [vmem:[%s2623 + $0x48] sm:$0xf]
  %v2643 = vld [vmem:[%s2623 + $0x4c] sm:$0xf]
  %s2644 = scalar_lea.vmem %s1, 128
  %v2645 = vld [vmem:[%s2644] sm:$0xf]
  %v2646 = vld [vmem:[%s2644 + $0x4] sm:$0xf]
  %v2647 = vld [vmem:[%s2644 + $0x8] sm:$0xf]
  %v2648 = vld [vmem:[%s2644 + $0xc] sm:$0xf]
  %v2649 = vld [vmem:[%s2644 + $0x10] sm:$0xf]
  %v2650 = vld [vmem:[%s2644 + $0x14] sm:$0xf]
  %v2651 = vld [vmem:[%s2644 + $0x18] sm:$0xf]
  %v2652 = vld [vmem:[%s2644 + $0x1c] sm:$0xf]
  %v2653 = vld [vmem:[%s2644 + $0x20] sm:$0xf]
  %v2654 = vld [vmem:[%s2644 + $0x24] sm:$0xf]
  %v2655 = vld [vmem:[%s2644 + $0x28] sm:$0xf]
  %v2656 = vld [vmem:[%s2644 + $0x2c] sm:$0xf]
  %v2657 = vld [vmem:[%s2644 + $0x30] sm:$0xf]
  %v2658 = vld [vmem:[%s2644 + $0x34] sm:$0xf]
  %v2659 = vld [vmem:[%s2644 + $0x38] sm:$0xf]
  %v2660 = vld [vmem:[%s2644 + $0x3c] sm:$0xf]
  %v2661 = vld [vmem:[%s2644 + $0x40] sm:$0xf]
  %v2662 = vld [vmem:[%s2644 + $0x44] sm:$0xf]
  %v2663 = vld [vmem:[%s2644 + $0x48] sm:$0xf]
  %v2664 = vld [vmem:[%s2644 + $0x4c] sm:$0xf]
  %v2665 = vld [vmem:[%s2644 + $0x50] sm:$0xf]
  %v2666 = vld [vmem:[%s2644 + $0x54] sm:$0xf]
  %v2667 = vld [vmem:[%s2644 + $0x58] sm:$0xf]
  %v2668 = vld [vmem:[%s2644 + $0x5c] sm:$0xf]
  %v2669 = vld [vmem:[%s2644 + $0x60] sm:$0xf]
  %v2670 = vld [vmem:[%s2644 + $0x64] sm:$0xf]
  %v2671 = vld [vmem:[%s2644 + $0x68] sm:$0xf]
  %v2672 = vld [vmem:[%s2644 + $0x6c] sm:$0xf]
  %v2673 = vld [vmem:[%s2644 + $0x70] sm:$0xf]
  %v2674 = vld [vmem:[%s2644 + $0x74] sm:$0xf]
  %v2675 = vld [vmem:[%s2644 + $0x78] sm:$0xf]
  %v2676 = vld [vmem:[%s2644 + $0x7c] sm:$0xf]
  %s2677 = scalar_lea.vmem %s2, 128
  %v2678 = vld [vmem:[%s2677] sm:$0xf]
  %v2679 = vld [vmem:[%s2677 + $0x4] sm:$0xf]
  %v2680 = vld [vmem:[%s2677 + $0x8] sm:$0xf]
  %v2681 = vld [vmem:[%s2677 + $0xc] sm:$0xf]
  %v2682 = vld [vmem:[%s2677 + $0x10] sm:$0xf]
  %v2683 = vld [vmem:[%s2677 + $0x14] sm:$0xf]
  %v2684 = vld [vmem:[%s2677 + $0x18] sm:$0xf]
  %v2685 = vld [vmem:[%s2677 + $0x1c] sm:$0xf]
  %v2686 = vld [vmem:[%s2677 + $0x20] sm:$0xf]
  %v2687 = vld [vmem:[%s2677 + $0x24] sm:$0xf]
  %v2688 = vld [vmem:[%s2677 + $0x28] sm:$0xf]
  %v2689 = vld [vmem:[%s2677 + $0x2c] sm:$0xf]
  %v2690 = vld [vmem:[%s2677 + $0x30] sm:$0xf]
  %v2691 = vld [vmem:[%s2677 + $0x34] sm:$0xf]
  %v2692 = vld [vmem:[%s2677 + $0x38] sm:$0xf]
  %v2693 = vld [vmem:[%s2677 + $0x3c] sm:$0xf]
  %v2694 = vld [vmem:[%s2677 + $0x40] sm:$0xf]
  %v2695 = vld [vmem:[%s2677 + $0x44] sm:$0xf]
  %v2696 = vld [vmem:[%s2677 + $0x48] sm:$0xf]
  %v2697 = vld [vmem:[%s2677 + $0x4c] sm:$0xf]
  %v2698 = vld [vmem:[%s2677 + $0x50] sm:$0xf]
  %v2699 = vld [vmem:[%s2677 + $0x54] sm:$0xf]
  %v2700 = vld [vmem:[%s2677 + $0x58] sm:$0xf]
  %v2701 = vld [vmem:[%s2677 + $0x5c] sm:$0xf]
  %v2702 = vld [vmem:[%s2677 + $0x60] sm:$0xf]
  %v2703 = vld [vmem:[%s2677 + $0x64] sm:$0xf]
  %v2704 = vld [vmem:[%s2677 + $0x68] sm:$0xf]
  %v2705 = vld [vmem:[%s2677 + $0x6c] sm:$0xf]
  %v2706 = vld [vmem:[%s2677 + $0x70] sm:$0xf]
  %v2707 = vld [vmem:[%s2677 + $0x74] sm:$0xf]
  %v2708 = vld [vmem:[%s2677 + $0x78] sm:$0xf]
  %v2709 = vld [vmem:[%s2677 + $0x7c] sm:$0xf]
  %v2710 = vpack.c.bf16 %v2570, %v2570
  %v2711 = vpack.c.bf16 %v2571, %v2571
  %v2712 = vpack.c.bf16 %v2572, %v2572
  %v2713 = vpack.c.bf16 %v2573, %v2573
  %v2714 = vpack.c.bf16 %v2574, %v2574
  %v2715 = vpack.c.bf16 %v2575, %v2575
  %v2716 = vpack.c.bf16 %v2576, %v2576
  %v2717 = vpack.c.bf16 %v2577, %v2577
  %v2718 = vpack.c.bf16 %v2578, %v2578
  %v2719 = vpack.c.bf16 %v2579, %v2579
  %v2720 = vpack.c.bf16 %v2580, %v2580
  %v2721 = vpack.c.bf16 %v2581, %v2581
  %v2722 = vpack.c.bf16 %v2582, %v2582
  %v2723 = vpack.c.bf16 %v2583, %v2583
  %v2724 = vpack.c.bf16 %v2584, %v2584
  %v2725 = vpack.c.bf16 %v2585, %v2585
  %v2726 = vpack.c.bf16 %v2586, %v2586
  %v2727 = vpack.c.bf16 %v2587, %v2587
  %v2728 = vpack.c.bf16 %v2588, %v2588
  %v2729 = vpack.c.bf16 %v2589, %v2589
  %v2730 = vpack.c.bf16 %v2590, %v2590
  %v2731 = vpack.c.bf16 %v2591, %v2591
  %v2732 = vpack.c.bf16 %v2592, %v2592
  %v2733 = vpack.c.bf16 %v2593, %v2593
  %v2734 = vpack.c.bf16 %v2594, %v2594
  %v2735 = vpack.c.bf16 %v2595, %v2595
  %v2736 = vpack.c.bf16 %v2596, %v2596
  %v2737 = vpack.c.bf16 %v2597, %v2597
  %v2738 = vpack.c.bf16 %v2598, %v2598
  %v2739 = vpack.c.bf16 %v2599, %v2599
  %v2740 = vpack.c.bf16 %v2600, %v2600
  %v2741 = vpack.c.bf16 %v2601, %v2601
  %v2774 = vrot.slane %v2710, 7
  %v2775 = vrot.slane %v2711, 7
  %v2776 = vrot.slane %v2712, 7
  %v2777 = vrot.slane %v2713, 7
  %v2778 = vrot.slane %v2714, 7
  %v2779 = vrot.slane %v2715, 7
  %v2780 = vrot.slane %v2716, 7
  %v2781 = vrot.slane %v2717, 7
  %v2782 = vrot.slane %v2718, 7
  %v2783 = vrot.slane %v2719, 7
  %v2784 = vrot.slane %v2720, 7
  %v2785 = vrot.slane %v2721, 7
  %v2786 = vrot.slane %v2722, 7
  %v2787 = vrot.slane %v2723, 7
  %v2788 = vrot.slane %v2724, 7
  %v2789 = vrot.slane %v2725, 7
  %v2790 = vrot.slane %v2726, 7
  %v2791 = vrot.slane %v2727, 7
  %v2792 = vrot.slane %v2728, 7
  %v2793 = vrot.slane %v2729, 7
  %v2794 = vrot.slane %v2730, 7
  %v2795 = vrot.slane %v2731, 7
  %v2796 = vrot.slane %v2732, 7
  %v2797 = vrot.slane %v2733, 7
  %v2798 = vrot.slane %v2734, 7
  %v2799 = vrot.slane %v2735, 7
  %v2800 = vrot.slane %v2736, 7
  %v2801 = vrot.slane %v2737, 7
  %v2802 = vrot.slane %v2738, 7
  %v2803 = vrot.slane %v2739, 7
  %v2804 = vrot.slane %v2740, 7
  %v2805 = vrot.slane %v2741, 7
  %vm2806 = vcmask 1040384
  %v2808 = vsel %vm2806, 0, %v2774
  %v2810 = vsel %vm2806, 0, %v2775
  %v2812 = vsel %vm2806, 0, %v2776
  %v2814 = vsel %vm2806, 0, %v2777
  %v2816 = vsel %vm2806, 0, %v2778
  %v2818 = vsel %vm2806, 0, %v2779
  %v2820 = vsel %vm2806, 0, %v2780
  %v2822 = vsel %vm2806, 0, %v2781
  %v2824 = vsel %vm2806, 0, %v2782
  %v2826 = vsel %vm2806, 0, %v2783
  %v2828 = vsel %vm2806, 0, %v2784
  %v2830 = vsel %vm2806, 0, %v2785
  %v2832 = vsel %vm2806, 0, %v2786
  %v2834 = vsel %vm2806, 0, %v2787
  %v2836 = vsel %vm2806, 0, %v2788
  %v2838 = vsel %vm2806, 0, %v2789
  %v2840 = vsel %vm2806, 0, %v2790
  %v2842 = vsel %vm2806, 0, %v2791
  %v2844 = vsel %vm2806, 0, %v2792
  %v2846 = vsel %vm2806, 0, %v2793
  %v2848 = vsel %vm2806, 0, %v2794
  %v2850 = vsel %vm2806, 0, %v2795
  %v2852 = vsel %vm2806, 0, %v2796
  %v2854 = vsel %vm2806, 0, %v2797
  %v2856 = vsel %vm2806, 0, %v2798
  %v2858 = vsel %vm2806, 0, %v2799
  %v2860 = vsel %vm2806, 0, %v2800
  %v2862 = vsel %vm2806, 0, %v2801
  %v2864 = vsel %vm2806, 0, %v2802
  %v2866 = vsel %vm2806, 0, %v2803
  %v2868 = vsel %vm2806, 0, %v2804
  %v2870 = vsel %vm2806, 0, %v2805
  %vm2871 = vcmask 1044480
  %v2872 = vsel %vm2871, %v2808, 0
  %v2873 = vsel %vm2871, %v2810, 0
  %v2874 = vsel %vm2871, %v2812, 0
  %v2875 = vsel %vm2871, %v2814, 0
  %v2876 = vsel %vm2871, %v2816, 0
  %v2877 = vsel %vm2871, %v2818, 0
  %v2878 = vsel %vm2871, %v2820, 0
  %v2879 = vsel %vm2871, %v2822, 0
  %v2880 = vsel %vm2871, %v2824, 0
  %v2881 = vsel %vm2871, %v2826, 0
  %v2882 = vsel %vm2871, %v2828, 0
  %v2883 = vsel %vm2871, %v2830, 0
  %v2884 = vsel %vm2871, %v2832, 0
  %v2885 = vsel %vm2871, %v2834, 0
  %v2886 = vsel %vm2871, %v2836, 0
  %v2887 = vsel %vm2871, %v2838, 0
  %v2888 = vsel %vm2871, %v2840, 0
  %v2889 = vsel %vm2871, %v2842, 0
  %v2890 = vsel %vm2871, %v2844, 0
  %v2891 = vsel %vm2871, %v2846, 0
  %v2892 = vsel %vm2871, %v2848, 0
  %v2893 = vsel %vm2871, %v2850, 0
  %v2894 = vsel %vm2871, %v2852, 0
  %v2895 = vsel %vm2871, %v2854, 0
  %v2896 = vsel %vm2871, %v2856, 0
  %v2897 = vsel %vm2871, %v2858, 0
  %v2898 = vsel %vm2871, %v2860, 0
  %v2899 = vsel %vm2871, %v2862, 0
  %v2900 = vsel %vm2871, %v2864, 0
  %v2901 = vsel %vm2871, %v2866, 0
  %v2902 = vsel %vm2871, %v2868, 0
  %v2903 = vsel %vm2871, %v2870, 0
  %v2904 = vshrl.u32 %v2872, 16
  %v2906 = vshll.u32 %v2872, 16
  %v2908 = vrot.slane %v2906, 1
  %v2909 = vor.u32 %v2904, %v2908
  %v2910 = vshrl.u32 %v2873, 16
  %v2912 = vshll.u32 %v2873, 16
  %v2914 = vrot.slane %v2912, 1
  %v2915 = vor.u32 %v2910, %v2914
  %v2916 = vshrl.u32 %v2874, 16
  %v2918 = vshll.u32 %v2874, 16
  %v2920 = vrot.slane %v2918, 1
  %v2921 = vor.u32 %v2916, %v2920
  %v2922 = vshrl.u32 %v2875, 16
  %v2924 = vshll.u32 %v2875, 16
  %v2926 = vrot.slane %v2924, 1
  %v2927 = vor.u32 %v2922, %v2926
  %v2928 = vshrl.u32 %v2876, 16
  %v2930 = vshll.u32 %v2876, 16
  %v2932 = vrot.slane %v2930, 1
  %v2933 = vor.u32 %v2928, %v2932
  %v2934 = vshrl.u32 %v2877, 16
  %v2936 = vshll.u32 %v2877, 16
  %v2938 = vrot.slane %v2936, 1
  %v2939 = vor.u32 %v2934, %v2938
  %v2940 = vshrl.u32 %v2878, 16
  %v2942 = vshll.u32 %v2878, 16
  %v2944 = vrot.slane %v2942, 1
  %v2945 = vor.u32 %v2940, %v2944
  %v2946 = vshrl.u32 %v2879, 16
  %v2948 = vshll.u32 %v2879, 16
  %v2950 = vrot.slane %v2948, 1
  %v2951 = vor.u32 %v2946, %v2950
  %v2952 = vshrl.u32 %v2880, 16
  %v2954 = vshll.u32 %v2880, 16
  %v2956 = vrot.slane %v2954, 1
  %v2957 = vor.u32 %v2952, %v2956
  %v2958 = vshrl.u32 %v2881, 16
  %v2960 = vshll.u32 %v2881, 16
  %v2962 = vrot.slane %v2960, 1
  %v2963 = vor.u32 %v2958, %v2962
  %v2964 = vshrl.u32 %v2882, 16
  %v2966 = vshll.u32 %v2882, 16
  %v2968 = vrot.slane %v2966, 1
  %v2969 = vor.u32 %v2964, %v2968
  %v2970 = vshrl.u32 %v2883, 16
  %v2972 = vshll.u32 %v2883, 16
  %v2974 = vrot.slane %v2972, 1
  %v2975 = vor.u32 %v2970, %v2974
  %v2976 = vshrl.u32 %v2884, 16
  %v2978 = vshll.u32 %v2884, 16
  %v2980 = vrot.slane %v2978, 1
  %v2981 = vor.u32 %v2976, %v2980
  %v2982 = vshrl.u32 %v2885, 16
  %v2984 = vshll.u32 %v2885, 16
  %v2986 = vrot.slane %v2984, 1
  %v2987 = vor.u32 %v2982, %v2986
  %v2988 = vshrl.u32 %v2886, 16
  %v2990 = vshll.u32 %v2886, 16
  %v2992 = vrot.slane %v2990, 1
  %v2993 = vor.u32 %v2988, %v2992
  %v2994 = vshrl.u32 %v2887, 16
  %v2996 = vshll.u32 %v2887, 16
  %v2998 = vrot.slane %v2996, 1
  %v2999 = vor.u32 %v2994, %v2998
  %v3000 = vshrl.u32 %v2888, 16
  %v3002 = vshll.u32 %v2888, 16
  %v3004 = vrot.slane %v3002, 1
  %v3005 = vor.u32 %v3000, %v3004
  %v3006 = vshrl.u32 %v2889, 16
  %v3008 = vshll.u32 %v2889, 16
  %v3010 = vrot.slane %v3008, 1
  %v3011 = vor.u32 %v3006, %v3010
  %v3012 = vshrl.u32 %v2890, 16
  %v3014 = vshll.u32 %v2890, 16
  %v3016 = vrot.slane %v3014, 1
  %v3017 = vor.u32 %v3012, %v3016
  %v3018 = vshrl.u32 %v2891, 16
  %v3020 = vshll.u32 %v2891, 16
  %v3022 = vrot.slane %v3020, 1
  %v3023 = vor.u32 %v3018, %v3022
  %v3024 = vshrl.u32 %v2892, 16
  %v3026 = vshll.u32 %v2892, 16
  %v3028 = vrot.slane %v3026, 1
  %v3029 = vor.u32 %v3024, %v3028
  %v3030 = vshrl.u32 %v2893, 16
  %v3032 = vshll.u32 %v2893, 16
  %v3034 = vrot.slane %v3032, 1
  %v3035 = vor.u32 %v3030, %v3034
  %v3036 = vshrl.u32 %v2894, 16
  %v3038 = vshll.u32 %v2894, 16
  %v3040 = vrot.slane %v3038, 1
  %v3041 = vor.u32 %v3036, %v3040
  %v3042 = vshrl.u32 %v2895, 16
  %v3044 = vshll.u32 %v2895, 16
  %v3046 = vrot.slane %v3044, 1
  %v3047 = vor.u32 %v3042, %v3046
  %v3048 = vshrl.u32 %v2896, 16
  %v3050 = vshll.u32 %v2896, 16
  %v3052 = vrot.slane %v3050, 1
  %v3053 = vor.u32 %v3048, %v3052
  %v3054 = vshrl.u32 %v2897, 16
  %v3056 = vshll.u32 %v2897, 16
  %v3058 = vrot.slane %v3056, 1
  %v3059 = vor.u32 %v3054, %v3058
  %v3060 = vshrl.u32 %v2898, 16
  %v3062 = vshll.u32 %v2898, 16
  %v3064 = vrot.slane %v3062, 1
  %v3065 = vor.u32 %v3060, %v3064
  %v3066 = vshrl.u32 %v2899, 16
  %v3068 = vshll.u32 %v2899, 16
  %v3070 = vrot.slane %v3068, 1
  %v3071 = vor.u32 %v3066, %v3070
  %v3072 = vshrl.u32 %v2900, 16
  %v3074 = vshll.u32 %v2900, 16
  %v3076 = vrot.slane %v3074, 1
  %v3077 = vor.u32 %v3072, %v3076
  %v3078 = vshrl.u32 %v2901, 16
  %v3080 = vshll.u32 %v2901, 16
  %v3082 = vrot.slane %v3080, 1
  %v3083 = vor.u32 %v3078, %v3082
  %v3084 = vshrl.u32 %v2902, 16
  %v3086 = vshll.u32 %v2902, 16
  %v3088 = vrot.slane %v3086, 1
  %v3089 = vor.u32 %v3084, %v3088
  %v3090 = vshrl.u32 %v2903, 16
  %v3092 = vshll.u32 %v2903, 16
  %v3094 = vrot.slane %v3092, 1
  %v3095 = vor.u32 %v3090, %v3094
  %3096 = vrot.lane.b32.xlu0 %v2909, 32
  %v3097 = vpop.permute.xlu0 %3096
  %3098 = vrot.lane.b32.xlu0 %v2915, 32
  %v3099 = vpop.permute.xlu0 %3098
  %3100 = vrot.lane.b32.xlu0 %v2921, 32
  %v3101 = vpop.permute.xlu0 %3100
  %3102 = vrot.lane.b32.xlu0 %v2927, 32
  %v3103 = vpop.permute.xlu0 %3102
  %3104 = vrot.lane.b32.xlu0 %v2933, 32
  %v3105 = vpop.permute.xlu0 %3104
  %3106 = vrot.lane.b32.xlu0 %v2939, 32
  %v3107 = vpop.permute.xlu0 %3106
  %3108 = vrot.lane.b32.xlu0 %v2945, 32
  %v3109 = vpop.permute.xlu0 %3108
  %3110 = vrot.lane.b32.xlu0 %v2951, 32
  %v3111 = vpop.permute.xlu0 %3110
  %3112 = vrot.lane.b32.xlu0 %v2957, 32
  %v3113 = vpop.permute.xlu0 %3112
  %3114 = vrot.lane.b32.xlu0 %v2963, 32
  %v3115 = vpop.permute.xlu0 %3114
  %3116 = vrot.lane.b32.xlu0 %v2969, 32
  %v3117 = vpop.permute.xlu0 %3116
  %3118 = vrot.lane.b32.xlu0 %v2975, 32
  %v3119 = vpop.permute.xlu0 %3118
  %3120 = vrot.lane.b32.xlu0 %v2981, 32
  %v3121 = vpop.permute.xlu0 %3120
  %3122 = vrot.lane.b32.xlu0 %v2987, 32
  %v3123 = vpop.permute.xlu0 %3122
  %3124 = vrot.lane.b32.xlu0 %v2993, 32
  %v3125 = vpop.permute.xlu0 %3124
  %3126 = vrot.lane.b32.xlu0 %v2999, 32
  %v3127 = vpop.permute.xlu0 %3126
  %3128 = vrot.lane.b32.xlu0 %v3005, 32
  %v3129 = vpop.permute.xlu0 %3128
  %3130 = vrot.lane.b32.xlu0 %v3011, 32
  %v3131 = vpop.permute.xlu0 %3130
  %3132 = vrot.lane.b32.xlu0 %v3017, 32
  %v3133 = vpop.permute.xlu0 %3132
  %3134 = vrot.lane.b32.xlu0 %v3023, 32
  %v3135 = vpop.permute.xlu0 %3134
  %3136 = vrot.lane.b32.xlu0 %v3029, 32
  %v3137 = vpop.permute.xlu0 %3136
  %3138 = vrot.lane.b32.xlu0 %v3035, 32
  %v3139 = vpop.permute.xlu0 %3138
  %3140 = vrot.lane.b32.xlu0 %v3041, 32
  %v3141 = vpop.permute.xlu0 %3140
  %3142 = vrot.lane.b32.xlu0 %v3047, 32
  %v3143 = vpop.permute.xlu0 %3142
  %3144 = vrot.lane.b32.xlu0 %v3053, 32
  %v3145 = vpop.permute.xlu0 %3144
  %3146 = vrot.lane.b32.xlu0 %v3059, 32
  %v3147 = vpop.permute.xlu0 %3146
  %3148 = vrot.lane.b32.xlu0 %v3065, 32
  %v3149 = vpop.permute.xlu0 %3148
  %3150 = vrot.lane.b32.xlu0 %v3071, 32
  %v3151 = vpop.permute.xlu0 %3150
  %3152 = vrot.lane.b32.xlu0 %v3077, 32
  %v3153 = vpop.permute.xlu0 %3152
  %3154 = vrot.lane.b32.xlu0 %v3083, 32
  %v3155 = vpop.permute.xlu0 %3154
  %3156 = vrot.lane.b32.xlu0 %v3089, 32
  %v3157 = vpop.permute.xlu0 %3156
  %3158 = vrot.lane.b32.xlu0 %v3095, 32
  %v3159 = vpop.permute.xlu0 %3158
  %v3192 = vrot.slane %v2872, 1
  %v3193 = vrot.slane %v2873, 1
  %v3194 = vrot.slane %v2874, 1
  %v3195 = vrot.slane %v2875, 1
  %v3196 = vrot.slane %v2876, 1
  %v3197 = vrot.slane %v2877, 1
  %v3198 = vrot.slane %v2878, 1
  %v3199 = vrot.slane %v2879, 1
  %v3200 = vrot.slane %v2880, 1
  %v3201 = vrot.slane %v2881, 1
  %v3202 = vrot.slane %v2882, 1
  %v3203 = vrot.slane %v2883, 1
  %v3204 = vrot.slane %v2884, 1
  %v3205 = vrot.slane %v2885, 1
  %v3206 = vrot.slane %v2886, 1
  %v3207 = vrot.slane %v2887, 1
  %v3208 = vrot.slane %v2888, 1
  %v3209 = vrot.slane %v2889, 1
  %v3210 = vrot.slane %v2890, 1
  %v3211 = vrot.slane %v2891, 1
  %v3212 = vrot.slane %v2892, 1
  %v3213 = vrot.slane %v2893, 1
  %v3214 = vrot.slane %v2894, 1
  %v3215 = vrot.slane %v2895, 1
  %v3216 = vrot.slane %v2896, 1
  %v3217 = vrot.slane %v2897, 1
  %v3218 = vrot.slane %v2898, 1
  %v3219 = vrot.slane %v2899, 1
  %v3220 = vrot.slane %v2900, 1
  %v3221 = vrot.slane %v2901, 1
  %v3222 = vrot.slane %v2902, 1
  %v3223 = vrot.slane %v2903, 1
  %3224 = vrot.lane.b32.xlu0 %v3192, 64
  %v3225 = vpop.permute.xlu0 %3224
  %3226 = vrot.lane.b32.xlu0 %v3193, 64
  %v3227 = vpop.permute.xlu0 %3226
  %3228 = vrot.lane.b32.xlu0 %v3194, 64
  %v3229 = vpop.permute.xlu0 %3228
  %3230 = vrot.lane.b32.xlu0 %v3195, 64
  %v3231 = vpop.permute.xlu0 %3230
  %3232 = vrot.lane.b32.xlu0 %v3196, 64
  %v3233 = vpop.permute.xlu0 %3232
  %3234 = vrot.lane.b32.xlu0 %v3197, 64
  %v3235 = vpop.permute.xlu0 %3234
  %3236 = vrot.lane.b32.xlu0 %v3198, 64
  %v3237 = vpop.permute.xlu0 %3236
  %3238 = vrot.lane.b32.xlu0 %v3199, 64
  %v3239 = vpop.permute.xlu0 %3238
  %3240 = vrot.lane.b32.xlu0 %v3200, 64
  %v3241 = vpop.permute.xlu0 %3240
  %3242 = vrot.lane.b32.xlu0 %v3201, 64
  %v3243 = vpop.permute.xlu0 %3242
  %3244 = vrot.lane.b32.xlu0 %v3202, 64
  %v3245 = vpop.permute.xlu0 %3244
  %3246 = vrot.lane.b32.xlu0 %v3203, 64
  %v3247 = vpop.permute.xlu0 %3246
  %3248 = vrot.lane.b32.xlu0 %v3204, 64
  %v3249 = vpop.permute.xlu0 %3248
  %3250 = vrot.lane.b32.xlu0 %v3205, 64
  %v3251 = vpop.permute.xlu0 %3250
  %3252 = vrot.lane.b32.xlu0 %v3206, 64
  %v3253 = vpop.permute.xlu0 %3252
  %3254 = vrot.lane.b32.xlu0 %v3207, 64
  %v3255 = vpop.permute.xlu0 %3254
  %3256 = vrot.lane.b32.xlu0 %v3208, 64
  %v3257 = vpop.permute.xlu0 %3256
  %3258 = vrot.lane.b32.xlu0 %v3209, 64
  %v3259 = vpop.permute.xlu0 %3258
  %3260 = vrot.lane.b32.xlu0 %v3210, 64
  %v3261 = vpop.permute.xlu0 %3260
  %3262 = vrot.lane.b32.xlu0 %v3211, 64
  %v3263 = vpop.permute.xlu0 %3262
  %3264 = vrot.lane.b32.xlu0 %v3212, 64
  %v3265 = vpop.permute.xlu0 %3264
  %3266 = vrot.lane.b32.xlu0 %v3213, 64
  %v3267 = vpop.permute.xlu0 %3266
  %3268 = vrot.lane.b32.xlu0 %v3214, 64
  %v3269 = vpop.permute.xlu0 %3268
  %3270 = vrot.lane.b32.xlu0 %v3215, 64
  %v3271 = vpop.permute.xlu0 %3270
  %3272 = vrot.lane.b32.xlu0 %v3216, 64
  %v3273 = vpop.permute.xlu0 %3272
  %3274 = vrot.lane.b32.xlu0 %v3217, 64
  %v3275 = vpop.permute.xlu0 %3274
  %3276 = vrot.lane.b32.xlu0 %v3218, 64
  %v3277 = vpop.permute.xlu0 %3276
  %3278 = vrot.lane.b32.xlu0 %v3219, 64
  %v3279 = vpop.permute.xlu0 %3278
  %3280 = vrot.lane.b32.xlu0 %v3220, 64
  %v3281 = vpop.permute.xlu0 %3280
  %3282 = vrot.lane.b32.xlu0 %v3221, 64
  %v3283 = vpop.permute.xlu0 %3282
  %3284 = vrot.lane.b32.xlu0 %v3222, 64
  %v3285 = vpop.permute.xlu0 %3284
  %3286 = vrot.lane.b32.xlu0 %v3223, 64
  %v3287 = vpop.permute.xlu0 %3286
  %v3288 = vrot.slane %v2904, 1
  %v3289 = vrot.slane %v2906, 2
  %v3290 = vor.u32 %v3288, %v3289
  %v3291 = vrot.slane %v2910, 1
  %v3292 = vrot.slane %v2912, 2
  %v3293 = vor.u32 %v3291, %v3292
  %v3294 = vrot.slane %v2916, 1
  %v3295 = vrot.slane %v2918, 2
  %v3296 = vor.u32 %v3294, %v3295
  %v3297 = vrot.slane %v2922, 1
  %v3298 = vrot.slane %v2924, 2
  %v3299 = vor.u32 %v3297, %v3298
  %v3300 = vrot.slane %v2928, 1
  %v3301 = vrot.slane %v2930, 2
  %v3302 = vor.u32 %v3300, %v3301
  %v3303 = vrot.slane %v2934, 1
  %v3304 = vrot.slane %v2936, 2
  %v3305 = vor.u32 %v3303, %v3304
  %v3306 = vrot.slane %v2940, 1
  %v3307 = vrot.slane %v2942, 2
  %v3308 = vor.u32 %v3306, %v3307
  %v3309 = vrot.slane %v2946, 1
  %v3310 = vrot.slane %v2948, 2
  %v3311 = vor.u32 %v3309, %v3310
  %v3312 = vrot.slane %v2952, 1
  %v3313 = vrot.slane %v2954, 2
  %v3314 = vor.u32 %v3312, %v3313
  %v3315 = vrot.slane %v2958, 1
  %v3316 = vrot.slane %v2960, 2
  %v3317 = vor.u32 %v3315, %v3316
  %v3318 = vrot.slane %v2964, 1
  %v3319 = vrot.slane %v2966, 2
  %v3320 = vor.u32 %v3318, %v3319
  %v3321 = vrot.slane %v2970, 1
  %v3322 = vrot.slane %v2972, 2
  %v3323 = vor.u32 %v3321, %v3322
  %v3324 = vrot.slane %v2976, 1
  %v3325 = vrot.slane %v2978, 2
  %v3326 = vor.u32 %v3324, %v3325
  %v3327 = vrot.slane %v2982, 1
  %v3328 = vrot.slane %v2984, 2
  %v3329 = vor.u32 %v3327, %v3328
  %v3330 = vrot.slane %v2988, 1
  %v3331 = vrot.slane %v2990, 2
  %v3332 = vor.u32 %v3330, %v3331
  %v3333 = vrot.slane %v2994, 1
  %v3334 = vrot.slane %v2996, 2
  %v3335 = vor.u32 %v3333, %v3334
  %v3336 = vrot.slane %v3000, 1
  %v3337 = vrot.slane %v3002, 2
  %v3338 = vor.u32 %v3336, %v3337
  %v3339 = vrot.slane %v3006, 1
  %v3340 = vrot.slane %v3008, 2
  %v3341 = vor.u32 %v3339, %v3340
  %v3342 = vrot.slane %v3012, 1
  %v3343 = vrot.slane %v3014, 2
  %v3344 = vor.u32 %v3342, %v3343
  %v3345 = vrot.slane %v3018, 1
  %v3346 = vrot.slane %v3020, 2
  %v3347 = vor.u32 %v3345, %v3346
  %v3348 = vrot.slane %v3024, 1
  %v3349 = vrot.slane %v3026, 2
  %v3350 = vor.u32 %v3348, %v3349
  %v3351 = vrot.slane %v3030, 1
  %v3352 = vrot.slane %v3032, 2
  %v3353 = vor.u32 %v3351, %v3352
  %v3354 = vrot.slane %v3036, 1
  %v3355 = vrot.slane %v3038, 2
  %v3356 = vor.u32 %v3354, %v3355
  %v3357 = vrot.slane %v3042, 1
  %v3358 = vrot.slane %v3044, 2
  %v3359 = vor.u32 %v3357, %v3358
  %v3360 = vrot.slane %v3048, 1
  %v3361 = vrot.slane %v3050, 2
  %v3362 = vor.u32 %v3360, %v3361
  %v3363 = vrot.slane %v3054, 1
  %v3364 = vrot.slane %v3056, 2
  %v3365 = vor.u32 %v3363, %v3364
  %v3366 = vrot.slane %v3060, 1
  %v3367 = vrot.slane %v3062, 2
  %v3368 = vor.u32 %v3366, %v3367
  %v3369 = vrot.slane %v3066, 1
  %v3370 = vrot.slane %v3068, 2
  %v3371 = vor.u32 %v3369, %v3370
  %v3372 = vrot.slane %v3072, 1
  %v3373 = vrot.slane %v3074, 2
  %v3374 = vor.u32 %v3372, %v3373
  %v3375 = vrot.slane %v3078, 1
  %v3376 = vrot.slane %v3080, 2
  %v3377 = vor.u32 %v3375, %v3376
  %v3378 = vrot.slane %v3084, 1
  %v3379 = vrot.slane %v3086, 2
  %v3380 = vor.u32 %v3378, %v3379
  %v3381 = vrot.slane %v3090, 1
  %v3382 = vrot.slane %v3092, 2
  %v3383 = vor.u32 %v3381, %v3382
  %3384 = vrot.lane.b32.xlu0 %v3290, 96
  %v3385 = vpop.permute.xlu0 %3384
  %3386 = vrot.lane.b32.xlu0 %v3293, 96
  %v3387 = vpop.permute.xlu0 %3386
  %3388 = vrot.lane.b32.xlu0 %v3296, 96
  %v3389 = vpop.permute.xlu0 %3388
  %3390 = vrot.lane.b32.xlu0 %v3299, 96
  %v3391 = vpop.permute.xlu0 %3390
  %3392 = vrot.lane.b32.xlu0 %v3302, 96
  %v3393 = vpop.permute.xlu0 %3392
  %3394 = vrot.lane.b32.xlu0 %v3305, 96
  %v3395 = vpop.permute.xlu0 %3394
  %3396 = vrot.lane.b32.xlu0 %v3308, 96
  %v3397 = vpop.permute.xlu0 %3396
  %3398 = vrot.lane.b32.xlu0 %v3311, 96
  %v3399 = vpop.permute.xlu0 %3398
  %3400 = vrot.lane.b32.xlu0 %v3314, 96
  %v3401 = vpop.permute.xlu0 %3400
  %3402 = vrot.lane.b32.xlu0 %v3317, 96
  %v3403 = vpop.permute.xlu0 %3402
  %3404 = vrot.lane.b32.xlu0 %v3320, 96
  %v3405 = vpop.permute.xlu0 %3404
  %3406 = vrot.lane.b32.xlu0 %v3323, 96
  %v3407 = vpop.permute.xlu0 %3406
  %3408 = vrot.lane.b32.xlu0 %v3326, 96
  %v3409 = vpop.permute.xlu0 %3408
  %3410 = vrot.lane.b32.xlu0 %v3329, 96
  %v3411 = vpop.permute.xlu0 %3410
  %3412 = vrot.lane.b32.xlu0 %v3332, 96
  %v3413 = vpop.permute.xlu0 %3412
  %3414 = vrot.lane.b32.xlu0 %v3335, 96
  %v3415 = vpop.permute.xlu0 %3414
  %3416 = vrot.lane.b32.xlu0 %v3338, 96
  %v3417 = vpop.permute.xlu0 %3416
  %3418 = vrot.lane.b32.xlu0 %v3341, 96
  %v3419 = vpop.permute.xlu0 %3418
  %3420 = vrot.lane.b32.xlu0 %v3344, 96
  %v3421 = vpop.permute.xlu0 %3420
  %3422 = vrot.lane.b32.xlu0 %v3347, 96
  %v3423 = vpop.permute.xlu0 %3422
  %3424 = vrot.lane.b32.xlu0 %v3350, 96
  %v3425 = vpop.permute.xlu0 %3424
  %3426 = vrot.lane.b32.xlu0 %v3353, 96
  %v3427 = vpop.permute.xlu0 %3426
  %3428 = vrot.lane.b32.xlu0 %v3356, 96
  %v3429 = vpop.permute.xlu0 %3428
  %3430 = vrot.lane.b32.xlu0 %v3359, 96
  %v3431 = vpop.permute.xlu0 %3430
  %3432 = vrot.lane.b32.xlu0 %v3362, 96
  %v3433 = vpop.permute.xlu0 %3432
  %3434 = vrot.lane.b32.xlu0 %v3365, 96
  %v3435 = vpop.permute.xlu0 %3434
  %3436 = vrot.lane.b32.xlu0 %v3368, 96
  %v3437 = vpop.permute.xlu0 %3436
  %3438 = vrot.lane.b32.xlu0 %v3371, 96
  %v3439 = vpop.permute.xlu0 %3438
  %3440 = vrot.lane.b32.xlu0 %v3374, 96
  %v3441 = vpop.permute.xlu0 %3440
  %3442 = vrot.lane.b32.xlu0 %v3377, 96
  %v3443 = vpop.permute.xlu0 %3442
  %3444 = vrot.lane.b32.xlu0 %v3380, 96
  %v3445 = vpop.permute.xlu0 %3444
  %3446 = vrot.lane.b32.xlu0 %v3383, 96
  %v3447 = vpop.permute.xlu0 %3446
  %v3448 = vrot.slane %v2872, 2
  %v3449 = vrot.slane %v2873, 2
  %v3450 = vrot.slane %v2874, 2
  %v3451 = vrot.slane %v2875, 2
  %v3452 = vrot.slane %v2876, 2
  %v3453 = vrot.slane %v2877, 2
  %v3454 = vrot.slane %v2878, 2
  %v3455 = vrot.slane %v2879, 2
  %v3456 = vrot.slane %v2880, 2
  %v3457 = vrot.slane %v2881, 2
  %v3458 = vrot.slane %v2882, 2
  %v3459 = vrot.slane %v2883, 2
  %v3460 = vrot.slane %v2884, 2
  %v3461 = vrot.slane %v2885, 2
  %v3462 = vrot.slane %v2886, 2
  %v3463 = vrot.slane %v2887, 2
  %v3464 = vrot.slane %v2888, 2
  %v3465 = vrot.slane %v2889, 2
  %v3466 = vrot.slane %v2890, 2
  %v3467 = vrot.slane %v2891, 2
  %v3468 = vrot.slane %v2892, 2
  %v3469 = vrot.slane %v2893, 2
  %v3470 = vrot.slane %v2894, 2
  %v3471 = vrot.slane %v2895, 2
  %v3472 = vrot.slane %v2896, 2
  %v3473 = vrot.slane %v2897, 2
  %v3474 = vrot.slane %v2898, 2
  %v3475 = vrot.slane %v2899, 2
  %v3476 = vrot.slane %v2900, 2
  %v3477 = vrot.slane %v2901, 2
  %v3478 = vrot.slane %v2902, 2
  %v3479 = vrot.slane %v2903, 2
  %v3481 = vsel %vm408, %v2872, %v3097
  %v3483 = vsel %vm408, %v2873, %v3099
  %v3485 = vsel %vm408, %v2874, %v3101
  %v3487 = vsel %vm408, %v2875, %v3103
  %v3489 = vsel %vm408, %v2876, %v3105
  %v3491 = vsel %vm408, %v2877, %v3107
  %v3493 = vsel %vm408, %v2878, %v3109
  %v3495 = vsel %vm408, %v2879, %v3111
  %v3497 = vsel %vm408, %v2880, %v3113
  %v3499 = vsel %vm408, %v2881, %v3115
  %v3501 = vsel %vm408, %v2882, %v3117
  %v3503 = vsel %vm408, %v2883, %v3119
  %v3505 = vsel %vm408, %v2884, %v3121
  %v3507 = vsel %vm408, %v2885, %v3123
  %v3509 = vsel %vm408, %v2886, %v3125
  %v3511 = vsel %vm408, %v2887, %v3127
  %v3513 = vsel %vm408, %v2888, %v3129
  %v3515 = vsel %vm408, %v2889, %v3131
  %v3517 = vsel %vm408, %v2890, %v3133
  %v3519 = vsel %vm408, %v2891, %v3135
  %v3521 = vsel %vm408, %v2892, %v3137
  %v3523 = vsel %vm408, %v2893, %v3139
  %v3525 = vsel %vm408, %v2894, %v3141
  %v3527 = vsel %vm408, %v2895, %v3143
  %v3529 = vsel %vm408, %v2896, %v3145
  %v3531 = vsel %vm408, %v2897, %v3147
  %v3533 = vsel %vm408, %v2898, %v3149
  %v3535 = vsel %vm408, %v2899, %v3151
  %v3537 = vsel %vm408, %v2900, %v3153
  %v3539 = vsel %vm408, %v2901, %v3155
  %v3541 = vsel %vm408, %v2902, %v3157
  %v3543 = vsel %vm408, %v2903, %v3159
  %v3545 = vsel %vm500, %v3481, %v3225
  %v3547 = vsel %vm500, %v3483, %v3227
  %v3549 = vsel %vm500, %v3485, %v3229
  %v3551 = vsel %vm500, %v3487, %v3231
  %v3553 = vsel %vm500, %v3489, %v3233
  %v3555 = vsel %vm500, %v3491, %v3235
  %v3557 = vsel %vm500, %v3493, %v3237
  %v3559 = vsel %vm500, %v3495, %v3239
  %v3561 = vsel %vm500, %v3497, %v3241
  %v3563 = vsel %vm500, %v3499, %v3243
  %v3565 = vsel %vm500, %v3501, %v3245
  %v3567 = vsel %vm500, %v3503, %v3247
  %v3569 = vsel %vm500, %v3505, %v3249
  %v3571 = vsel %vm500, %v3507, %v3251
  %v3573 = vsel %vm500, %v3509, %v3253
  %v3575 = vsel %vm500, %v3511, %v3255
  %v3577 = vsel %vm500, %v3513, %v3257
  %v3579 = vsel %vm500, %v3515, %v3259
  %v3581 = vsel %vm500, %v3517, %v3261
  %v3583 = vsel %vm500, %v3519, %v3263
  %v3585 = vsel %vm500, %v3521, %v3265
  %v3587 = vsel %vm500, %v3523, %v3267
  %v3589 = vsel %vm500, %v3525, %v3269
  %v3591 = vsel %vm500, %v3527, %v3271
  %v3593 = vsel %vm500, %v3529, %v3273
  %v3595 = vsel %vm500, %v3531, %v3275
  %v3597 = vsel %vm500, %v3533, %v3277
  %v3599 = vsel %vm500, %v3535, %v3279
  %v3601 = vsel %vm500, %v3537, %v3281
  %v3603 = vsel %vm500, %v3539, %v3283
  %v3605 = vsel %vm500, %v3541, %v3285
  %v3607 = vsel %vm500, %v3543, %v3287
  %v3609 = vsel %vm565, %v3545, %v3385
  %v3611 = vsel %vm565, %v3547, %v3387
  %v3613 = vsel %vm565, %v3549, %v3389
  %v3615 = vsel %vm565, %v3551, %v3391
  %v3617 = vsel %vm565, %v3553, %v3393
  %v3619 = vsel %vm565, %v3555, %v3395
  %v3621 = vsel %vm565, %v3557, %v3397
  %v3623 = vsel %vm565, %v3559, %v3399
  %v3625 = vsel %vm565, %v3561, %v3401
  %v3627 = vsel %vm565, %v3563, %v3403
  %v3629 = vsel %vm565, %v3565, %v3405
  %v3631 = vsel %vm565, %v3567, %v3407
  %v3633 = vsel %vm565, %v3569, %v3409
  %v3635 = vsel %vm565, %v3571, %v3411
  %v3637 = vsel %vm565, %v3573, %v3413
  %v3639 = vsel %vm565, %v3575, %v3415
  %v3641 = vsel %vm565, %v3577, %v3417
  %v3643 = vsel %vm565, %v3579, %v3419
  %v3645 = vsel %vm565, %v3581, %v3421
  %v3647 = vsel %vm565, %v3583, %v3423
  %v3649 = vsel %vm565, %v3585, %v3425
  %v3651 = vsel %vm565, %v3587, %v3427
  %v3653 = vsel %vm565, %v3589, %v3429
  %v3655 = vsel %vm565, %v3591, %v3431
  %v3657 = vsel %vm565, %v3593, %v3433
  %v3659 = vsel %vm565, %v3595, %v3435
  %v3661 = vsel %vm565, %v3597, %v3437
  %v3663 = vsel %vm565, %v3599, %v3439
  %v3665 = vsel %vm565, %v3601, %v3441
  %v3667 = vsel %vm565, %v3603, %v3443
  %v3669 = vsel %vm565, %v3605, %v3445
  %v3671 = vsel %vm565, %v3607, %v3447
  %v3704 = vunpack.c.l.b16 %v3609
  %v3705 = vunpack.c.l.b16 %v3448
  %v3706 = vunpack.c.l.b16 %v3611
  %v3707 = vunpack.c.l.b16 %v3449
  %v3708 = vunpack.c.l.b16 %v3613
  %v3709 = vunpack.c.l.b16 %v3450
  %v3710 = vunpack.c.l.b16 %v3615
  %v3711 = vunpack.c.l.b16 %v3451
  %v3712 = vunpack.c.l.b16 %v3617
  %v3713 = vunpack.c.l.b16 %v3452
  %v3714 = vunpack.c.l.b16 %v3619
  %v3715 = vunpack.c.l.b16 %v3453
  %v3716 = vunpack.c.l.b16 %v3621
  %v3717 = vunpack.c.l.b16 %v3454
  %v3718 = vunpack.c.l.b16 %v3623
  %v3719 = vunpack.c.l.b16 %v3455
  %v3720 = vunpack.c.l.b16 %v3625
  %v3721 = vunpack.c.l.b16 %v3456
  %v3722 = vunpack.c.l.b16 %v3627
  %v3723 = vunpack.c.l.b16 %v3457
  %v3724 = vunpack.c.l.b16 %v3629
  %v3725 = vunpack.c.l.b16 %v3458
  %v3726 = vunpack.c.l.b16 %v3631
  %v3727 = vunpack.c.l.b16 %v3459
  %v3728 = vunpack.c.l.b16 %v3633
  %v3729 = vunpack.c.l.b16 %v3460
  %v3730 = vunpack.c.l.b16 %v3635
  %v3731 = vunpack.c.l.b16 %v3461
  %v3732 = vunpack.c.l.b16 %v3637
  %v3733 = vunpack.c.l.b16 %v3462
  %v3734 = vunpack.c.l.b16 %v3639
  %v3735 = vunpack.c.l.b16 %v3463
  %v3736 = vunpack.c.l.b16 %v3641
  %v3737 = vunpack.c.l.b16 %v3464
  %v3738 = vunpack.c.l.b16 %v3643
  %v3739 = vunpack.c.l.b16 %v3465
  %v3740 = vunpack.c.l.b16 %v3645
  %v3741 = vunpack.c.l.b16 %v3466
  %v3742 = vunpack.c.l.b16 %v3647
  %v3743 = vunpack.c.l.b16 %v3467
  %v3744 = vunpack.c.l.b16 %v3649
  %v3745 = vunpack.c.l.b16 %v3468
  %v3746 = vunpack.c.l.b16 %v3651
  %v3747 = vunpack.c.l.b16 %v3469
  %v3748 = vunpack.c.l.b16 %v3653
  %v3749 = vunpack.c.l.b16 %v3470
  %v3750 = vunpack.c.l.b16 %v3655
  %v3751 = vunpack.c.l.b16 %v3471
  %v3752 = vunpack.c.l.b16 %v3657
  %v3753 = vunpack.c.l.b16 %v3472
  %v3754 = vunpack.c.l.b16 %v3659
  %v3755 = vunpack.c.l.b16 %v3473
  %v3756 = vunpack.c.l.b16 %v3661
  %v3757 = vunpack.c.l.b16 %v3474
  %v3758 = vunpack.c.l.b16 %v3663
  %v3759 = vunpack.c.l.b16 %v3475
  %v3760 = vunpack.c.l.b16 %v3665
  %v3761 = vunpack.c.l.b16 %v3476
  %v3762 = vunpack.c.l.b16 %v3667
  %v3763 = vunpack.c.l.b16 %v3477
  %v3764 = vunpack.c.l.b16 %v3669
  %v3765 = vunpack.c.l.b16 %v3478
  %v3766 = vunpack.c.l.b16 %v3671
  %v3767 = vunpack.c.l.b16 %v3479
  %v3768 = vunpack.c.l.bf16 %v2645
  %v3769 = vunpack.c.l.bf16 %v2646
  %v3770 = vunpack.c.l.bf16 %v2647
  %v3771 = vunpack.c.l.bf16 %v2648
  %v3772 = vunpack.c.l.bf16 %v2649
  %v3773 = vunpack.c.l.bf16 %v2650
  %v3774 = vunpack.c.l.bf16 %v2651
  %v3775 = vunpack.c.l.bf16 %v2652
  %v3776 = vunpack.c.l.bf16 %v2653
  %v3777 = vunpack.c.l.bf16 %v2654
  %v3778 = vunpack.c.l.bf16 %v2655
  %v3779 = vunpack.c.l.bf16 %v2656
  %v3780 = vunpack.c.l.bf16 %v2657
  %v3781 = vunpack.c.l.bf16 %v2658
  %v3782 = vunpack.c.l.bf16 %v2659
  %v3783 = vunpack.c.l.bf16 %v2660
  %v3784 = vunpack.c.l.bf16 %v2661
  %v3785 = vunpack.c.l.bf16 %v2662
  %v3786 = vunpack.c.l.bf16 %v2663
  %v3787 = vunpack.c.l.bf16 %v2664
  %v3788 = vunpack.c.l.bf16 %v2665
  %v3789 = vunpack.c.l.bf16 %v2666
  %v3790 = vunpack.c.l.bf16 %v2667
  %v3791 = vunpack.c.l.bf16 %v2668
  %v3792 = vunpack.c.l.bf16 %v2669
  %v3793 = vunpack.c.l.bf16 %v2670
  %v3794 = vunpack.c.l.bf16 %v2671
  %v3795 = vunpack.c.l.bf16 %v2672
  %v3796 = vunpack.c.l.bf16 %v2673
  %v3797 = vunpack.c.l.bf16 %v2674
  %v3798 = vunpack.c.l.bf16 %v2675
  %v3799 = vunpack.c.l.bf16 %v2676
  %v3800 = vpack.c.b16 %v3706, %v3704
  %v3801 = vpack.c.b16 %v3707, %v3705
  %v3802 = vpack.c.b16 %v3710, %v3708
  %v3803 = vpack.c.b16 %v3711, %v3709
  %v3804 = vpack.c.b16 %v3714, %v3712
  %v3805 = vpack.c.b16 %v3715, %v3713
  %v3806 = vpack.c.b16 %v3718, %v3716
  %v3807 = vpack.c.b16 %v3719, %v3717
  %v3808 = vpack.c.b16 %v3722, %v3720
  %v3809 = vpack.c.b16 %v3723, %v3721
  %v3810 = vpack.c.b16 %v3726, %v3724
  %v3811 = vpack.c.b16 %v3727, %v3725
  %v3812 = vpack.c.b16 %v3730, %v3728
  %v3813 = vpack.c.b16 %v3731, %v3729
  %v3814 = vpack.c.b16 %v3734, %v3732
  %v3815 = vpack.c.b16 %v3735, %v3733
  %v3816 = vpack.c.b16 %v3738, %v3736
  %v3817 = vpack.c.b16 %v3739, %v3737
  %v3818 = vpack.c.b16 %v3742, %v3740
  %v3819 = vpack.c.b16 %v3743, %v3741
  %v3820 = vpack.c.b16 %v3746, %v3744
  %v3821 = vpack.c.b16 %v3747, %v3745
  %v3822 = vpack.c.b16 %v3750, %v3748
  %v3823 = vpack.c.b16 %v3751, %v3749
  %v3824 = vpack.c.b16 %v3754, %v3752
  %v3825 = vpack.c.b16 %v3755, %v3753
  %v3826 = vpack.c.b16 %v3758, %v3756
  %v3827 = vpack.c.b16 %v3759, %v3757
  %v3828 = vpack.c.b16 %v3762, %v3760
  %v3829 = vpack.c.b16 %v3763, %v3761
  %v3830 = vpack.c.b16 %v3766, %v3764
  %v3831 = vpack.c.b16 %v3767, %v3765
  %v3868 = vunpack.c.l.b16 %v2603
  %v3869 = vunpack.c.l.b16 %v2604
  %v3870 = vunpack.c.l.b16 %v2605
  %v3871 = vunpack.c.l.b16 %v2606
  %v3872 = vunpack.c.l.b16 %v2607
  %v3873 = vunpack.c.l.b16 %v2608
  %v3874 = vunpack.c.l.b16 %v2609
  %v3875 = vunpack.c.l.b16 %v2610
  %v3876 = vunpack.c.l.b16 %v2611
  %v3877 = vunpack.c.l.b16 %v2612
  %v3878 = vunpack.c.l.b16 %v2613
  %v3879 = vunpack.c.l.b16 %v2614
  %v3880 = vunpack.c.l.b16 %v2615
  %v3881 = vunpack.c.l.b16 %v2616
  %v3882 = vunpack.c.l.b16 %v2617
  %v3883 = vunpack.c.l.b16 %v2618
  %v3884 = vunpack.c.l.b16 %v2619
  %v3885 = vunpack.c.l.b16 %v2620
  %v3886 = vunpack.c.l.b16 %v2621
  %v3887 = vunpack.c.l.b16 %v2622
  %v3888 = vpack.c.b16 %v3869, %v3868
  %v3889 = vpack.c.b16 %v3871, %v3870
  %v3890 = vpack.c.b16 %v3873, %v3872
  %v3891 = vpack.c.b16 %v3875, %v3874
  %v3892 = vpack.c.b16 %v3877, %v3876
  %v3893 = vpack.c.b16 %v3879, %v3878
  %v3894 = vpack.c.b16 %v3881, %v3880
  %v3895 = vpack.c.b16 %v3883, %v3882
  %v3896 = vpack.c.b16 %v3885, %v3884
  %v3897 = vpack.c.b16 %v3887, %v3886
  %v3909 = vsel %vm408, %v3801, 0
  %v3912 = vsel %vm408, %v3803, 0
  %v3915 = vsel %vm408, %v3805, 0
  %v3918 = vsel %vm408, %v3807, 0
  %v3921 = vsel %vm408, %v3809, 0
  %v3924 = vsel %vm408, %v3811, 0
  %v3927 = vsel %vm408, %v3813, 0
  %v3930 = vsel %vm408, %v3815, 0
  %v3933 = vsel %vm408, %v3817, 0
  %v3936 = vsel %vm408, %v3819, 0
  %v3939 = vsel %vm408, %v3821, 0
  %v3942 = vsel %vm408, %v3823, 0
  %v3945 = vsel %vm408, %v3825, 0
  %v3948 = vsel %vm408, %v3827, 0
  %v3951 = vsel %vm408, %v3829, 0
  %v3954 = vsel %vm408, %v3831, 0
  %3956 = vmatprep.subr.bf16.mxu0 0
  %3957 = vmatpush1.bf16.msra.mxu0 %v3888
  %3958 = vmatprep.subr.bf16.mxu0 0
  %3959 = vmatpush1.bf16.msra.mxu0 %v3889
  %3960 = vmatprep.subr.bf16.mxu0 0
  %3961 = vmatpush1.bf16.msra.mxu0 %v3890
  %3962 = vmatprep.subr.bf16.mxu0 0
  %3963 = vmatpush1.bf16.msra.mxu0 %v3891
  %3964 = vmatprep.subr.bf16.mxu0 0
  %3965 = vmatpush1.bf16.msra.mxu0 %v3892
  %3966 = vmatprep.subr.bf16.mxu0 0
  %3967 = vmatpush1.bf16.msra.mxu0 %v3893
  %3968 = vmatprep.subr.bf16.mxu0 0
  %3969 = vmatpush1.bf16.msra.mxu0 %v3894
  %3970 = vmatprep.subr.bf16.mxu0 0
  %3971 = vmatpush1.bf16.msra.mxu0 %v3895
  %3972 = vmatprep.subr.bf16.mxu0 0
  %3973 = vmatpush1.bf16.msra.mxu0 %v3896
  %3974 = vmatprep.subr.bf16.mxu0 0
  %3975 = vmatpush1.bf16.msra.mxu0 %v3897
  %3976 = vmatprep.subr.bf16.mxu0 0
  %3977 = vmatpush1.bf16.msra.mxu0 0
  %3978 = vmatprep.subr.bf16.mxu0 0
  %3979 = vmatpush1.bf16.msra.mxu0 0
  %3980 = vmatprep.subr.bf16.mxu0 0
  %3981 = vmatpush1.bf16.msra.mxu0 0
  %3982 = vmatprep.subr.bf16.mxu0 0
  %3983 = vmatpush1.bf16.msra.mxu0 0
  %3984 = vmatprep.subr.bf16.mxu0 0
  %3985 = vmatpush1.bf16.msra.mxu0 0
  %3986 = vmatprep.subr.bf16.mxu0 0
  %3987 = vmatpush1.bf16.msra.mxu0 0
  %3988 = vmatprep.mubr.bf16.mxu0 %v3909
  %3989 = vmatmul.mubr.bf16.gmra.mrb[0].mxu0 %v3800
  %v3990 = vpop.f32.mrb[0].mxu0
  %v3991 = vadd.f32 %v3768, %v3990
  %v3992 = vpop.f32.mrb[0].mxu0
  %v3993 = vpop.f32.mrb[0].mxu0
  %v3994 = vadd.f32 %v3769, %v3993
  %v3995 = vpop.f32.mrb[0].mxu0
  %3996 = vmatprep.mubr.bf16.mxu0 %v3912
  %3997 = vmatmul.mubr.bf16.gmra.mrb[0].mxu0 %v3802
  %v3998 = vpop.f32.mrb[0].mxu0
  %v3999 = vadd.f32 %v3770, %v3998
  %v4000 = vpop.f32.mrb[0].mxu0
  %v4001 = vpop.f32.mrb[0].mxu0
  %v4002 = vadd.f32 %v3771, %v4001
  %v4003 = vpop.f32.mrb[0].mxu0
  %4004 = vmatprep.mubr.bf16.mxu0 %v3915
  %4005 = vmatmul.mubr.bf16.gmra.mrb[0].mxu0 %v3804
  %v4006 = vpop.f32.mrb[0].mxu0
  %v4007 = vadd.f32 %v3772, %v4006
  %v4008 = vpop.f32.mrb[0].mxu0
  %v4009 = vpop.f32.mrb[0].mxu0
  %v4010 = vadd.f32 %v3773, %v4009
  %v4011 = vpop.f32.mrb[0].mxu0
  %4012 = vmatprep.mubr.bf16.mxu0 %v3918
  %4013 = vmatmul.mubr.bf16.gmra.mrb[0].mxu0 %v3806
  %v4014 = vpop.f32.mrb[0].mxu0
  %v4015 = vadd.f32 %v3774, %v4014
  %v4016 = vpop.f32.mrb[0].mxu0
  %v4017 = vpop.f32.mrb[0].mxu0
  %v4018 = vadd.f32 %v3775, %v4017
  %v4019 = vpop.f32.mrb[0].mxu0
  %4020 = vmatprep.mubr.bf16.mxu0 %v3921
  %4021 = vmatmul.mubr.bf16.gmra.mrb[0].mxu0 %v3808
  %v4022 = vpop.f32.mrb[0].mxu0
  %v4023 = vadd.f32 %v3776, %v4022
  %v4024 = vpop.f32.mrb[0].mxu0
  %v4025 = vpop.f32.mrb[0].mxu0
  %v4026 = vadd.f32 %v3777, %v4025
  %v4027 = vpop.f32.mrb[0].mxu0
  %4028 = vmatprep.mubr.bf16.mxu0 %v3924
  %4029 = vmatmul.mubr.bf16.gmra.mrb[0].mxu0 %v3810
  %v4030 = vpop.f32.mrb[0].mxu0
  %v4031 = vadd.f32 %v3778, %v4030
  %v4032 = vpop.f32.mrb[0].mxu0
  %v4033 = vpop.f32.mrb[0].mxu0
  %v4034 = vadd.f32 %v3779, %v4033
  %v4035 = vpop.f32.mrb[0].mxu0
  %4036 = vmatprep.mubr.bf16.mxu0 %v3927
  %4037 = vmatmul.mubr.bf16.gmra.mrb[0].mxu0 %v3812
  %v4038 = vpop.f32.mrb[0].mxu0
  %v4039 = vadd.f32 %v3780, %v4038
  %v4040 = vpop.f32.mrb[0].mxu0
  %v4041 = vpop.f32.mrb[0].mxu0
  %v4042 = vadd.f32 %v3781, %v4041
  %v4043 = vpop.f32.mrb[0].mxu0
  %4044 = vmatprep.mubr.bf16.mxu0 %v3930
  %4045 = vmatmul.mubr.bf16.gmra.mrb[0].mxu0 %v3814
  %v4046 = vpop.f32.mrb[0].mxu0
  %v4047 = vadd.f32 %v3782, %v4046
  %v4048 = vpop.f32.mrb[0].mxu0
  %v4049 = vpop.f32.mrb[0].mxu0
  %v4050 = vadd.f32 %v3783, %v4049
  %v4051 = vpop.f32.mrb[0].mxu0
  %4052 = vmatprep.mubr.bf16.mxu0 %v3933
  %4053 = vmatmul.mubr.bf16.gmra.mrb[0].mxu0 %v3816
  %v4054 = vpop.f32.mrb[0].mxu0
  %v4055 = vadd.f32 %v3784, %v4054
  %v4056 = vpop.f32.mrb[0].mxu0
  %v4057 = vpop.f32.mrb[0].mxu0
  %v4058 = vadd.f32 %v3785, %v4057
  %v4059 = vpop.f32.mrb[0].mxu0
  %4060 = vmatprep.mubr.bf16.mxu0 %v3936
  %4061 = vmatmul.mubr.bf16.gmra.mrb[0].mxu0 %v3818
  %v4062 = vpop.f32.mrb[0].mxu0
  %v4063 = vadd.f32 %v3786, %v4062
  %v4064 = vpop.f32.mrb[0].mxu0
  %v4065 = vpop.f32.mrb[0].mxu0
  %v4066 = vadd.f32 %v3787, %v4065
  %v4067 = vpop.f32.mrb[0].mxu0
  %4068 = vmatprep.mubr.bf16.mxu0 %v3939
  %4069 = vmatmul.mubr.bf16.gmra.mrb[0].mxu0 %v3820
  %v4070 = vpop.f32.mrb[0].mxu0
  %v4071 = vadd.f32 %v3788, %v4070
  %v4072 = vpop.f32.mrb[0].mxu0
  %v4073 = vpop.f32.mrb[0].mxu0
  %v4074 = vadd.f32 %v3789, %v4073
  %v4075 = vpop.f32.mrb[0].mxu0
  %4076 = vmatprep.mubr.bf16.mxu0 %v3942
  %4077 = vmatmul.mubr.bf16.gmra.mrb[0].mxu0 %v3822
  %v4078 = vpop.f32.mrb[0].mxu0
  %v4079 = vadd.f32 %v3790, %v4078
  %v4080 = vpop.f32.mrb[0].mxu0
  %v4081 = vpop.f32.mrb[0].mxu0
  %v4082 = vadd.f32 %v3791, %v4081
  %v4083 = vpop.f32.mrb[0].mxu0
  %4084 = vmatprep.mubr.bf16.mxu0 %v3945
  %4085 = vmatmul.mubr.bf16.gmra.mrb[0].mxu0 %v3824
  %v4086 = vpop.f32.mrb[0].mxu0
  %v4087 = vadd.f32 %v3792, %v4086
  %v4088 = vpop.f32.mrb[0].mxu0
  %v4089 = vpop.f32.mrb[0].mxu0
  %v4090 = vadd.f32 %v3793, %v4089
  %v4091 = vpop.f32.mrb[0].mxu0
  %4092 = vmatprep.mubr.bf16.mxu0 %v3948
  %4093 = vmatmul.mubr.bf16.gmra.mrb[0].mxu0 %v3826
  %v4094 = vpop.f32.mrb[0].mxu0
  %v4095 = vadd.f32 %v3794, %v4094
  %v4096 = vpop.f32.mrb[0].mxu0
  %v4097 = vpop.f32.mrb[0].mxu0
  %v4098 = vadd.f32 %v3795, %v4097
  %v4099 = vpop.f32.mrb[0].mxu0
  %4100 = vmatprep.mubr.bf16.mxu0 %v3951
  %4101 = vmatmul.mubr.bf16.gmra.mrb[0].mxu0 %v3828
  %v4102 = vpop.f32.mrb[0].mxu0
  %v4103 = vadd.f32 %v3796, %v4102
  %v4104 = vpop.f32.mrb[0].mxu0
  %v4105 = vpop.f32.mrb[0].mxu0
  %v4106 = vadd.f32 %v3797, %v4105
  %v4107 = vpop.f32.mrb[0].mxu0
  %4108 = vmatprep.mubr.bf16.mxu0 %v3954
  %4109 = vmatmul.mubr.bf16.gmra.mrb[0].mxu0 %v3830
  %v4110 = vpop.f32.mrb[0].mxu0
  %v4111 = vadd.f32 %v3798, %v4110
  %v4112 = vpop.f32.mrb[0].mxu0
  %v4113 = vpop.f32.mrb[0].mxu0
  %v4114 = vadd.f32 %v3799, %v4113
  %v4115 = vpop.f32.mrb[0].mxu0
  %4116 = vdwg.mxu0
  %v4117 = vxor.u32 %v3991, 2147483648
  %v4118 = vxor.u32 %v3994, 2147483648
  %v4119 = vxor.u32 %v3999, 2147483648
  %v4120 = vxor.u32 %v4002, 2147483648
  %v4121 = vxor.u32 %v4007, 2147483648
  %v4122 = vxor.u32 %v4010, 2147483648
  %v4123 = vxor.u32 %v4015, 2147483648
  %v4124 = vxor.u32 %v4018, 2147483648
  %v4125 = vxor.u32 %v4023, 2147483648
  %v4126 = vxor.u32 %v4026, 2147483648
  %v4127 = vxor.u32 %v4031, 2147483648
  %v4128 = vxor.u32 %v4034, 2147483648
  %v4129 = vxor.u32 %v4039, 2147483648
  %v4130 = vxor.u32 %v4042, 2147483648
  %v4131 = vxor.u32 %v4047, 2147483648
  %v4132 = vxor.u32 %v4050, 2147483648
  %v4133 = vxor.u32 %v4055, 2147483648
  %v4134 = vxor.u32 %v4058, 2147483648
  %v4135 = vxor.u32 %v4063, 2147483648
  %v4136 = vxor.u32 %v4066, 2147483648
  %v4137 = vxor.u32 %v4071, 2147483648
  %v4138 = vxor.u32 %v4074, 2147483648
  %v4139 = vxor.u32 %v4079, 2147483648
  %v4140 = vxor.u32 %v4082, 2147483648
  %v4141 = vxor.u32 %v4087, 2147483648
  %v4142 = vxor.u32 %v4090, 2147483648
  %v4143 = vxor.u32 %v4095, 2147483648
  %v4144 = vxor.u32 %v4098, 2147483648
  %v4145 = vxor.u32 %v4103, 2147483648
  %v4146 = vxor.u32 %v4106, 2147483648
  %v4147 = vxor.u32 %v4111, 2147483648
  %v4148 = vxor.u32 %v4114, 2147483648
  %v4149 = vmul.f32 %v4117, 1.442695
  %v4150 = vpow.pop %v4149
  %v4151 = vmul.f32 %v4118, 1.442695
  %v4152 = vpow.pop %v4151
  %v4153 = vmul.f32 %v4119, 1.442695
  %v4154 = vpow.pop %v4153
  %v4155 = vmul.f32 %v4120, 1.442695
  %v4156 = vpow.pop %v4155
  %v4157 = vmul.f32 %v4121, 1.442695
  %v4158 = vpow.pop %v4157
  %v4159 = vmul.f32 %v4122, 1.442695
  %v4160 = vpow.pop %v4159
  %v4161 = vmul.f32 %v4123, 1.442695
  %v4162 = vpow.pop %v4161
  %v4163 = vmul.f32 %v4124, 1.442695
  %v4164 = vpow.pop %v4163
  %v4165 = vmul.f32 %v4125, 1.442695
  %v4166 = vpow.pop %v4165
  %v4167 = vmul.f32 %v4126, 1.442695
  %v4168 = vpow.pop %v4167
  %v4169 = vmul.f32 %v4127, 1.442695
  %v4170 = vpow.pop %v4169
  %v4171 = vmul.f32 %v4128, 1.442695
  %v4172 = vpow.pop %v4171
  %v4173 = vmul.f32 %v4129, 1.442695
  %v4174 = vpow.pop %v4173
  %v4175 = vmul.f32 %v4130, 1.442695
  %v4176 = vpow.pop %v4175
  %v4177 = vmul.f32 %v4131, 1.442695
  %v4178 = vpow.pop %v4177
  %v4179 = vmul.f32 %v4132, 1.442695
  %v4180 = vpow.pop %v4179
  %v4181 = vmul.f32 %v4133, 1.442695
  %v4182 = vpow.pop %v4181
  %v4183 = vmul.f32 %v4134, 1.442695
  %v4184 = vpow.pop %v4183
  %v4185 = vmul.f32 %v4135, 1.442695
  %v4186 = vpow.pop %v4185
  %v4187 = vmul.f32 %v4136, 1.442695
  %v4188 = vpow.pop %v4187
  %v4189 = vmul.f32 %v4137, 1.442695
  %v4190 = vpow.pop %v4189
  %v4191 = vmul.f32 %v4138, 1.442695
  %v4192 = vpow.pop %v4191
  %v4193 = vmul.f32 %v4139, 1.442695
  %v4194 = vpow.pop %v4193
  %v4195 = vmul.f32 %v4140, 1.442695
  %v4196 = vpow.pop %v4195
  %v4197 = vmul.f32 %v4141, 1.442695
  %v4198 = vpow.pop %v4197
  %v4199 = vmul.f32 %v4142, 1.442695
  %v4200 = vpow.pop %v4199
  %v4201 = vmul.f32 %v4143, 1.442695
  %v4202 = vpow.pop %v4201
  %v4203 = vmul.f32 %v4144, 1.442695
  %v4204 = vpow.pop %v4203
  %v4205 = vmul.f32 %v4145, 1.442695
  %v4206 = vpow.pop %v4205
  %v4207 = vmul.f32 %v4146, 1.442695
  %v4208 = vpow.pop %v4207
  %v4209 = vmul.f32 %v4147, 1.442695
  %v4210 = vpow.pop %v4209
  %v4211 = vmul.f32 %v4148, 1.442695
  %v4212 = vpow.pop %v4211
  %v4213 = vadd.f32 %v4150, 1.0
  %v4214 = vadd.f32 %v4152, 1.0
  %v4215 = vadd.f32 %v4154, 1.0
  %v4216 = vadd.f32 %v4156, 1.0
  %v4217 = vadd.f32 %v4158, 1.0
  %v4218 = vadd.f32 %v4160, 1.0
  %v4219 = vadd.f32 %v4162, 1.0
  %v4220 = vadd.f32 %v4164, 1.0
  %v4221 = vadd.f32 %v4166, 1.0
  %v4222 = vadd.f32 %v4168, 1.0
  %v4223 = vadd.f32 %v4170, 1.0
  %v4224 = vadd.f32 %v4172, 1.0
  %v4225 = vadd.f32 %v4174, 1.0
  %v4226 = vadd.f32 %v4176, 1.0
  %v4227 = vadd.f32 %v4178, 1.0
  %v4228 = vadd.f32 %v4180, 1.0
  %v4229 = vadd.f32 %v4182, 1.0
  %v4230 = vadd.f32 %v4184, 1.0
  %v4231 = vadd.f32 %v4186, 1.0
  %v4232 = vadd.f32 %v4188, 1.0
  %v4233 = vadd.f32 %v4190, 1.0
  %v4234 = vadd.f32 %v4192, 1.0
  %v4235 = vadd.f32 %v4194, 1.0
  %v4236 = vadd.f32 %v4196, 1.0
  %v4237 = vadd.f32 %v4198, 1.0
  %v4238 = vadd.f32 %v4200, 1.0
  %v4239 = vadd.f32 %v4202, 1.0
  %v4240 = vadd.f32 %v4204, 1.0
  %v4241 = vadd.f32 %v4206, 1.0
  %v4242 = vadd.f32 %v4208, 1.0
  %v4243 = vadd.f32 %v4210, 1.0
  %v4244 = vadd.f32 %v4212, 1.0
  %v4245 = vrcp.pop %v4213
  %v4246 = vmul.f32 1.0, %v4245
  %v4247 = vrcp.pop %v4214
  %v4248 = vmul.f32 1.0, %v4247
  %v4249 = vrcp.pop %v4215
  %v4250 = vmul.f32 1.0, %v4249
  %v4251 = vrcp.pop %v4216
  %v4252 = vmul.f32 1.0, %v4251
  %v4253 = vrcp.pop %v4217
  %v4254 = vmul.f32 1.0, %v4253
  %v4255 = vrcp.pop %v4218
  %v4256 = vmul.f32 1.0, %v4255
  %v4257 = vrcp.pop %v4219
  %v4258 = vmul.f32 1.0, %v4257
  %v4259 = vrcp.pop %v4220
  %v4260 = vmul.f32 1.0, %v4259
  %v4261 = vrcp.pop %v4221
  %v4262 = vmul.f32 1.0, %v4261
  %v4263 = vrcp.pop %v4222
  %v4264 = vmul.f32 1.0, %v4263
  %v4265 = vrcp.pop %v4223
  %v4266 = vmul.f32 1.0, %v4265
  %v4267 = vrcp.pop %v4224
  %v4268 = vmul.f32 1.0, %v4267
  %v4269 = vrcp.pop %v4225
  %v4270 = vmul.f32 1.0, %v4269
  %v4271 = vrcp.pop %v4226
  %v4272 = vmul.f32 1.0, %v4271
  %v4273 = vrcp.pop %v4227
  %v4274 = vmul.f32 1.0, %v4273
  %v4275 = vrcp.pop %v4228
  %v4276 = vmul.f32 1.0, %v4275
  %v4277 = vrcp.pop %v4229
  %v4278 = vmul.f32 1.0, %v4277
  %v4279 = vrcp.pop %v4230
  %v4280 = vmul.f32 1.0, %v4279
  %v4281 = vrcp.pop %v4231
  %v4282 = vmul.f32 1.0, %v4281
  %v4283 = vrcp.pop %v4232
  %v4284 = vmul.f32 1.0, %v4283
  %v4285 = vrcp.pop %v4233
  %v4286 = vmul.f32 1.0, %v4285
  %v4287 = vrcp.pop %v4234
  %v4288 = vmul.f32 1.0, %v4287
  %v4289 = vrcp.pop %v4235
  %v4290 = vmul.f32 1.0, %v4289
  %v4291 = vrcp.pop %v4236
  %v4292 = vmul.f32 1.0, %v4291
  %v4293 = vrcp.pop %v4237
  %v4294 = vmul.f32 1.0, %v4293
  %v4295 = vrcp.pop %v4238
  %v4296 = vmul.f32 1.0, %v4295
  %v4297 = vrcp.pop %v4239
  %v4298 = vmul.f32 1.0, %v4297
  %v4299 = vrcp.pop %v4240
  %v4300 = vmul.f32 1.0, %v4299
  %v4301 = vrcp.pop %v4241
  %v4302 = vmul.f32 1.0, %v4301
  %v4303 = vrcp.pop %v4242
  %v4304 = vmul.f32 1.0, %v4303
  %v4305 = vrcp.pop %v4243
  %v4306 = vmul.f32 1.0, %v4305
  %v4307 = vrcp.pop %v4244
  %v4308 = vmul.f32 1.0, %v4307
  %4341 = vrot.lane.b32.xlu0 %v2570, 32
  %v4342 = vpop.permute.xlu0 %4341
  %4343 = vrot.lane.b32.xlu0 %v2571, 32
  %v4344 = vpop.permute.xlu0 %4343
  %4345 = vrot.lane.b32.xlu0 %v2572, 32
  %v4346 = vpop.permute.xlu0 %4345
  %4347 = vrot.lane.b32.xlu0 %v2573, 32
  %v4348 = vpop.permute.xlu0 %4347
  %4349 = vrot.lane.b32.xlu0 %v2574, 32
  %v4350 = vpop.permute.xlu0 %4349
  %4351 = vrot.lane.b32.xlu0 %v2575, 32
  %v4352 = vpop.permute.xlu0 %4351
  %4353 = vrot.lane.b32.xlu0 %v2576, 32
  %v4354 = vpop.permute.xlu0 %4353
  %4355 = vrot.lane.b32.xlu0 %v2577, 32
  %v4356 = vpop.permute.xlu0 %4355
  %4357 = vrot.lane.b32.xlu0 %v2578, 32
  %v4358 = vpop.permute.xlu0 %4357
  %4359 = vrot.lane.b32.xlu0 %v2579, 32
  %v4360 = vpop.permute.xlu0 %4359
  %4361 = vrot.lane.b32.xlu0 %v2580, 32
  %v4362 = vpop.permute.xlu0 %4361
  %4363 = vrot.lane.b32.xlu0 %v2581, 32
  %v4364 = vpop.permute.xlu0 %4363
  %4365 = vrot.lane.b32.xlu0 %v2582, 32
  %v4366 = vpop.permute.xlu0 %4365
  %4367 = vrot.lane.b32.xlu0 %v2583, 32
  %v4368 = vpop.permute.xlu0 %4367
  %4369 = vrot.lane.b32.xlu0 %v2584, 32
  %v4370 = vpop.permute.xlu0 %4369
  %4371 = vrot.lane.b32.xlu0 %v2585, 32
  %v4372 = vpop.permute.xlu0 %4371
  %4373 = vrot.lane.b32.xlu0 %v2586, 32
  %v4374 = vpop.permute.xlu0 %4373
  %4375 = vrot.lane.b32.xlu0 %v2587, 32
  %v4376 = vpop.permute.xlu0 %4375
  %4377 = vrot.lane.b32.xlu0 %v2588, 32
  %v4378 = vpop.permute.xlu0 %4377
  %4379 = vrot.lane.b32.xlu0 %v2589, 32
  %v4380 = vpop.permute.xlu0 %4379
  %4381 = vrot.lane.b32.xlu0 %v2590, 32
  %v4382 = vpop.permute.xlu0 %4381
  %4383 = vrot.lane.b32.xlu0 %v2591, 32
  %v4384 = vpop.permute.xlu0 %4383
  %4385 = vrot.lane.b32.xlu0 %v2592, 32
  %v4386 = vpop.permute.xlu0 %4385
  %4387 = vrot.lane.b32.xlu0 %v2593, 32
  %v4388 = vpop.permute.xlu0 %4387
  %4389 = vrot.lane.b32.xlu0 %v2594, 32
  %v4390 = vpop.permute.xlu0 %4389
  %4391 = vrot.lane.b32.xlu0 %v2595, 32
  %v4392 = vpop.permute.xlu0 %4391
  %4393 = vrot.lane.b32.xlu0 %v2596, 32
  %v4394 = vpop.permute.xlu0 %4393
  %4395 = vrot.lane.b32.xlu0 %v2597, 32
  %v4396 = vpop.permute.xlu0 %4395
  %4397 = vrot.lane.b32.xlu0 %v2598, 32
  %v4398 = vpop.permute.xlu0 %4397
  %4399 = vrot.lane.b32.xlu0 %v2599, 32
  %v4400 = vpop.permute.xlu0 %4399
  %4401 = vrot.lane.b32.xlu0 %v2600, 32
  %v4402 = vpop.permute.xlu0 %4401
  %4403 = vrot.lane.b32.xlu0 %v2601, 32
  %v4404 = vpop.permute.xlu0 %4403
  %v4437 = vmul.f32 %v4246, %v4342
  %v4438 = vmul.f32 %v4248, %v4344
  %v4439 = vmul.f32 %v4250, %v4346
  %v4440 = vmul.f32 %v4252, %v4348
  %v4441 = vmul.f32 %v4254, %v4350
  %v4442 = vmul.f32 %v4256, %v4352
  %v4443 = vmul.f32 %v4258, %v4354
  %v4444 = vmul.f32 %v4260, %v4356
  %v4445 = vmul.f32 %v4262, %v4358
  %v4446 = vmul.f32 %v4264, %v4360
  %v4447 = vmul.f32 %v4266, %v4362
  %v4448 = vmul.f32 %v4268, %v4364
  %v4449 = vmul.f32 %v4270, %v4366
  %v4450 = vmul.f32 %v4272, %v4368
  %v4451 = vmul.f32 %v4274, %v4370
  %v4452 = vmul.f32 %v4276, %v4372
  %v4453 = vmul.f32 %v4278, %v4374
  %v4454 = vmul.f32 %v4280, %v4376
  %v4455 = vmul.f32 %v4282, %v4378
  %v4456 = vmul.f32 %v4284, %v4380
  %v4457 = vmul.f32 %v4286, %v4382
  %v4458 = vmul.f32 %v4288, %v4384
  %v4459 = vmul.f32 %v4290, %v4386
  %v4460 = vmul.f32 %v4292, %v4388
  %v4461 = vmul.f32 %v4294, %v4390
  %v4462 = vmul.f32 %v4296, %v4392
  %v4463 = vmul.f32 %v4298, %v4394
  %v4464 = vmul.f32 %v4300, %v4396
  %v4465 = vmul.f32 %v4302, %v4398
  %v4466 = vmul.f32 %v4304, %v4400
  %v4467 = vmul.f32 %v4306, %v4402
  %v4468 = vmul.f32 %v4308, %v4404
  %v4469 = vpack.c.bf16 %v4438, %v4437
  %v4470 = vpack.c.bf16 %v4440, %v4439
  %v4471 = vpack.c.bf16 %v4442, %v4441
  %v4472 = vpack.c.bf16 %v4444, %v4443
  %v4473 = vpack.c.bf16 %v4446, %v4445
  %v4474 = vpack.c.bf16 %v4448, %v4447
  %v4475 = vpack.c.bf16 %v4450, %v4449
  %v4476 = vpack.c.bf16 %v4452, %v4451
  %v4477 = vpack.c.bf16 %v4454, %v4453
  %v4478 = vpack.c.bf16 %v4456, %v4455
  %v4479 = vpack.c.bf16 %v4458, %v4457
  %v4480 = vpack.c.bf16 %v4460, %v4459
  %v4481 = vpack.c.bf16 %v4462, %v4461
  %v4482 = vpack.c.bf16 %v4464, %v4463
  %v4483 = vpack.c.bf16 %v4466, %v4465
  %v4484 = vpack.c.bf16 %v4468, %v4467
  %v4501 = vunpack.c.l.b16 %v4469
  %v4502 = vunpack.c.h.b16 %v4469
  %v4503 = vunpack.c.l.b16 %v4470
  %v4504 = vunpack.c.h.b16 %v4470
  %v4505 = vunpack.c.l.b16 %v4471
  %v4506 = vunpack.c.h.b16 %v4471
  %v4507 = vunpack.c.l.b16 %v4472
  %v4508 = vunpack.c.h.b16 %v4472
  %v4509 = vunpack.c.l.b16 %v4473
  %v4510 = vunpack.c.h.b16 %v4473
  %v4511 = vunpack.c.l.b16 %v4474
  %v4512 = vunpack.c.h.b16 %v4474
  %v4513 = vunpack.c.l.b16 %v4475
  %v4514 = vunpack.c.h.b16 %v4475
  %v4515 = vunpack.c.l.b16 %v4476
  %v4516 = vunpack.c.h.b16 %v4476
  %v4517 = vunpack.c.l.b16 %v4477
  %v4518 = vunpack.c.h.b16 %v4477
  %v4519 = vunpack.c.l.b16 %v4478
  %v4520 = vunpack.c.h.b16 %v4478
  %v4521 = vunpack.c.l.b16 %v4479
  %v4522 = vunpack.c.h.b16 %v4479
  %v4523 = vunpack.c.l.b16 %v4480
  %v4524 = vunpack.c.h.b16 %v4480
  %v4525 = vunpack.c.l.b16 %v4481
  %v4526 = vunpack.c.h.b16 %v4481
  %v4527 = vunpack.c.l.b16 %v4482
  %v4528 = vunpack.c.h.b16 %v4482
  %v4529 = vunpack.c.l.b16 %v4483
  %v4530 = vunpack.c.h.b16 %v4483
  %v4531 = vunpack.c.l.b16 %v4484
  %v4532 = vunpack.c.h.b16 %v4484
  %v4533 = vpack.c.b16 %v4501, %v4501
  %v4534 = vpack.c.b16 %v4502, %v4502
  %v4535 = vpack.c.b16 %v4503, %v4503
  %v4536 = vpack.c.b16 %v4504, %v4504
  %v4537 = vpack.c.b16 %v4505, %v4505
  %v4538 = vpack.c.b16 %v4506, %v4506
  %v4539 = vpack.c.b16 %v4507, %v4507
  %v4540 = vpack.c.b16 %v4508, %v4508
  %v4541 = vpack.c.b16 %v4509, %v4509
  %v4542 = vpack.c.b16 %v4510, %v4510
  %v4543 = vpack.c.b16 %v4511, %v4511
  %v4544 = vpack.c.b16 %v4512, %v4512
  %v4545 = vpack.c.b16 %v4513, %v4513
  %v4546 = vpack.c.b16 %v4514, %v4514
  %v4547 = vpack.c.b16 %v4515, %v4515
  %v4548 = vpack.c.b16 %v4516, %v4516
  %v4549 = vpack.c.b16 %v4517, %v4517
  %v4550 = vpack.c.b16 %v4518, %v4518
  %v4551 = vpack.c.b16 %v4519, %v4519
  %v4552 = vpack.c.b16 %v4520, %v4520
  %v4553 = vpack.c.b16 %v4521, %v4521
  %v4554 = vpack.c.b16 %v4522, %v4522
  %v4555 = vpack.c.b16 %v4523, %v4523
  %v4556 = vpack.c.b16 %v4524, %v4524
  %v4557 = vpack.c.b16 %v4525, %v4525
  %v4558 = vpack.c.b16 %v4526, %v4526
  %v4559 = vpack.c.b16 %v4527, %v4527
  %v4560 = vpack.c.b16 %v4528, %v4528
  %v4561 = vpack.c.b16 %v4529, %v4529
  %v4562 = vpack.c.b16 %v4530, %v4530
  %v4563 = vpack.c.b16 %v4531, %v4531
  %v4564 = vpack.c.b16 %v4532, %v4532
  %v4565 = vrot.slane %v4533, 7
  %v4566 = vrot.slane %v4534, 7
  %v4567 = vrot.slane %v4535, 7
  %v4568 = vrot.slane %v4536, 7
  %v4569 = vrot.slane %v4537, 7
  %v4570 = vrot.slane %v4538, 7
  %v4571 = vrot.slane %v4539, 7
  %v4572 = vrot.slane %v4540, 7
  %v4573 = vrot.slane %v4541, 7
  %v4574 = vrot.slane %v4542, 7
  %v4575 = vrot.slane %v4543, 7
  %v4576 = vrot.slane %v4544, 7
  %v4577 = vrot.slane %v4545, 7
  %v4578 = vrot.slane %v4546, 7
  %v4579 = vrot.slane %v4547, 7
  %v4580 = vrot.slane %v4548, 7
  %v4581 = vrot.slane %v4549, 7
  %v4582 = vrot.slane %v4550, 7
  %v4583 = vrot.slane %v4551, 7
  %v4584 = vrot.slane %v4552, 7
  %v4585 = vrot.slane %v4553, 7
  %v4586 = vrot.slane %v4554, 7
  %v4587 = vrot.slane %v4555, 7
  %v4588 = vrot.slane %v4556, 7
  %v4589 = vrot.slane %v4557, 7
  %v4590 = vrot.slane %v4558, 7
  %v4591 = vrot.slane %v4559, 7
  %v4592 = vrot.slane %v4560, 7
  %v4593 = vrot.slane %v4561, 7
  %v4594 = vrot.slane %v4562, 7
  %v4595 = vrot.slane %v4563, 7
  %v4596 = vrot.slane %v4564, 7
  %4597 = vrot.lane.b32.xlu0 %v4565, 96
  %v4598 = vpop.permute.xlu0 %4597
  %4599 = vrot.lane.b32.xlu0 %v4566, 96
  %v4600 = vpop.permute.xlu0 %4599
  %4601 = vrot.lane.b32.xlu0 %v4567, 96
  %v4602 = vpop.permute.xlu0 %4601
  %4603 = vrot.lane.b32.xlu0 %v4568, 96
  %v4604 = vpop.permute.xlu0 %4603
  %4605 = vrot.lane.b32.xlu0 %v4569, 96
  %v4606 = vpop.permute.xlu0 %4605
  %4607 = vrot.lane.b32.xlu0 %v4570, 96
  %v4608 = vpop.permute.xlu0 %4607
  %4609 = vrot.lane.b32.xlu0 %v4571, 96
  %v4610 = vpop.permute.xlu0 %4609
  %4611 = vrot.lane.b32.xlu0 %v4572, 96
  %v4612 = vpop.permute.xlu0 %4611
  %4613 = vrot.lane.b32.xlu0 %v4573, 96
  %v4614 = vpop.permute.xlu0 %4613
  %4615 = vrot.lane.b32.xlu0 %v4574, 96
  %v4616 = vpop.permute.xlu0 %4615
  %4617 = vrot.lane.b32.xlu0 %v4575, 96
  %v4618 = vpop.permute.xlu0 %4617
  %4619 = vrot.lane.b32.xlu0 %v4576, 96
  %v4620 = vpop.permute.xlu0 %4619
  %4621 = vrot.lane.b32.xlu0 %v4577, 96
  %v4622 = vpop.permute.xlu0 %4621
  %4623 = vrot.lane.b32.xlu0 %v4578, 96
  %v4624 = vpop.permute.xlu0 %4623
  %4625 = vrot.lane.b32.xlu0 %v4579, 96
  %v4626 = vpop.permute.xlu0 %4625
  %4627 = vrot.lane.b32.xlu0 %v4580, 96
  %v4628 = vpop.permute.xlu0 %4627
  %4629 = vrot.lane.b32.xlu0 %v4581, 96
  %v4630 = vpop.permute.xlu0 %4629
  %4631 = vrot.lane.b32.xlu0 %v4582, 96
  %v4632 = vpop.permute.xlu0 %4631
  %4633 = vrot.lane.b32.xlu0 %v4583, 96
  %v4634 = vpop.permute.xlu0 %4633
  %4635 = vrot.lane.b32.xlu0 %v4584, 96
  %v4636 = vpop.permute.xlu0 %4635
  %4637 = vrot.lane.b32.xlu0 %v4585, 96
  %v4638 = vpop.permute.xlu0 %4637
  %4639 = vrot.lane.b32.xlu0 %v4586, 96
  %v4640 = vpop.permute.xlu0 %4639
  %4641 = vrot.lane.b32.xlu0 %v4587, 96
  %v4642 = vpop.permute.xlu0 %4641
  %4643 = vrot.lane.b32.xlu0 %v4588, 96
  %v4644 = vpop.permute.xlu0 %4643
  %4645 = vrot.lane.b32.xlu0 %v4589, 96
  %v4646 = vpop.permute.xlu0 %4645
  %4647 = vrot.lane.b32.xlu0 %v4590, 96
  %v4648 = vpop.permute.xlu0 %4647
  %4649 = vrot.lane.b32.xlu0 %v4591, 96
  %v4650 = vpop.permute.xlu0 %4649
  %4651 = vrot.lane.b32.xlu0 %v4592, 96
  %v4652 = vpop.permute.xlu0 %4651
  %4653 = vrot.lane.b32.xlu0 %v4593, 96
  %v4654 = vpop.permute.xlu0 %4653
  %4655 = vrot.lane.b32.xlu0 %v4594, 96
  %v4656 = vpop.permute.xlu0 %4655
  %4657 = vrot.lane.b32.xlu0 %v4595, 96
  %v4658 = vpop.permute.xlu0 %4657
  %4659 = vrot.lane.b32.xlu0 %v4596, 96
  %v4660 = vpop.permute.xlu0 %4659
  %v4662 = vsel %vm2806, 0, %v4598
  %v4664 = vsel %vm2806, 0, %v4600
  %v4666 = vsel %vm2806, 0, %v4602
  %v4668 = vsel %vm2806, 0, %v4604
  %v4670 = vsel %vm2806, 0, %v4606
  %v4672 = vsel %vm2806, 0, %v4608
  %v4674 = vsel %vm2806, 0, %v4610
  %v4676 = vsel %vm2806, 0, %v4612
  %v4678 = vsel %vm2806, 0, %v4614
  %v4680 = vsel %vm2806, 0, %v4616
  %v4682 = vsel %vm2806, 0, %v4618
  %v4684 = vsel %vm2806, 0, %v4620
  %v4686 = vsel %vm2806, 0, %v4622
  %v4688 = vsel %vm2806, 0, %v4624
  %v4690 = vsel %vm2806, 0, %v4626
  %v4692 = vsel %vm2806, 0, %v4628
  %v4694 = vsel %vm2806, 0, %v4630
  %v4696 = vsel %vm2806, 0, %v4632
  %v4698 = vsel %vm2806, 0, %v4634
  %v4700 = vsel %vm2806, 0, %v4636
  %v4702 = vsel %vm2806, 0, %v4638
  %v4704 = vsel %vm2806, 0, %v4640
  %v4706 = vsel %vm2806, 0, %v4642
  %v4708 = vsel %vm2806, 0, %v4644
  %v4710 = vsel %vm2806, 0, %v4646
  %v4712 = vsel %vm2806, 0, %v4648
  %v4714 = vsel %vm2806, 0, %v4650
  %v4716 = vsel %vm2806, 0, %v4652
  %v4718 = vsel %vm2806, 0, %v4654
  %v4720 = vsel %vm2806, 0, %v4656
  %v4722 = vsel %vm2806, 0, %v4658
  %v4724 = vsel %vm2806, 0, %v4660
  %v4725 = vsel %vm2871, %v4662, 0
  %v4726 = vsel %vm2871, %v4664, 0
  %v4727 = vsel %vm2871, %v4666, 0
  %v4728 = vsel %vm2871, %v4668, 0
  %v4729 = vsel %vm2871, %v4670, 0
  %v4730 = vsel %vm2871, %v4672, 0
  %v4731 = vsel %vm2871, %v4674, 0
  %v4732 = vsel %vm2871, %v4676, 0
  %v4733 = vsel %vm2871, %v4678, 0
  %v4734 = vsel %vm2871, %v4680, 0
  %v4735 = vsel %vm2871, %v4682, 0
  %v4736 = vsel %vm2871, %v4684, 0
  %v4737 = vsel %vm2871, %v4686, 0
  %v4738 = vsel %vm2871, %v4688, 0
  %v4739 = vsel %vm2871, %v4690, 0
  %v4740 = vsel %vm2871, %v4692, 0
  %v4741 = vsel %vm2871, %v4694, 0
  %v4742 = vsel %vm2871, %v4696, 0
  %v4743 = vsel %vm2871, %v4698, 0
  %v4744 = vsel %vm2871, %v4700, 0
  %v4745 = vsel %vm2871, %v4702, 0
  %v4746 = vsel %vm2871, %v4704, 0
  %v4747 = vsel %vm2871, %v4706, 0
  %v4748 = vsel %vm2871, %v4708, 0
  %v4749 = vsel %vm2871, %v4710, 0
  %v4750 = vsel %vm2871, %v4712, 0
  %v4751 = vsel %vm2871, %v4714, 0
  %v4752 = vsel %vm2871, %v4716, 0
  %v4753 = vsel %vm2871, %v4718, 0
  %v4754 = vsel %vm2871, %v4720, 0
  %v4755 = vsel %vm2871, %v4722, 0
  %v4756 = vsel %vm2871, %v4724, 0
  %v4757 = vshrl.u32 %v4725, 16
  %v4759 = vshll.u32 %v4725, 16
  %v4761 = vrot.slane %v4759, 1
  %v4762 = vor.u32 %v4757, %v4761
  %v4763 = vshrl.u32 %v4726, 16
  %v4765 = vshll.u32 %v4726, 16
  %v4767 = vrot.slane %v4765, 1
  %v4768 = vor.u32 %v4763, %v4767
  %v4769 = vshrl.u32 %v4727, 16
  %v4771 = vshll.u32 %v4727, 16
  %v4773 = vrot.slane %v4771, 1
  %v4774 = vor.u32 %v4769, %v4773
  %v4775 = vshrl.u32 %v4728, 16
  %v4777 = vshll.u32 %v4728, 16
  %v4779 = vrot.slane %v4777, 1
  %v4780 = vor.u32 %v4775, %v4779
  %v4781 = vshrl.u32 %v4729, 16
  %v4783 = vshll.u32 %v4729, 16
  %v4785 = vrot.slane %v4783, 1
  %v4786 = vor.u32 %v4781, %v4785
  %v4787 = vshrl.u32 %v4730, 16
  %v4789 = vshll.u32 %v4730, 16
  %v4791 = vrot.slane %v4789, 1
  %v4792 = vor.u32 %v4787, %v4791
  %v4793 = vshrl.u32 %v4731, 16
  %v4795 = vshll.u32 %v4731, 16
  %v4797 = vrot.slane %v4795, 1
  %v4798 = vor.u32 %v4793, %v4797
  %v4799 = vshrl.u32 %v4732, 16
  %v4801 = vshll.u32 %v4732, 16
  %v4803 = vrot.slane %v4801, 1
  %v4804 = vor.u32 %v4799, %v4803
  %v4805 = vshrl.u32 %v4733, 16
  %v4807 = vshll.u32 %v4733, 16
  %v4809 = vrot.slane %v4807, 1
  %v4810 = vor.u32 %v4805, %v4809
  %v4811 = vshrl.u32 %v4734, 16
  %v4813 = vshll.u32 %v4734, 16
  %v4815 = vrot.slane %v4813, 1
  %v4816 = vor.u32 %v4811, %v4815
  %v4817 = vshrl.u32 %v4735, 16
  %v4819 = vshll.u32 %v4735, 16
  %v4821 = vrot.slane %v4819, 1
  %v4822 = vor.u32 %v4817, %v4821
  %v4823 = vshrl.u32 %v4736, 16
  %v4825 = vshll.u32 %v4736, 16
  %v4827 = vrot.slane %v4825, 1
  %v4828 = vor.u32 %v4823, %v4827
  %v4829 = vshrl.u32 %v4737, 16
  %v4831 = vshll.u32 %v4737, 16
  %v4833 = vrot.slane %v4831, 1
  %v4834 = vor.u32 %v4829, %v4833
  %v4835 = vshrl.u32 %v4738, 16
  %v4837 = vshll.u32 %v4738, 16
  %v4839 = vrot.slane %v4837, 1
  %v4840 = vor.u32 %v4835, %v4839
  %v4841 = vshrl.u32 %v4739, 16
  %v4843 = vshll.u32 %v4739, 16
  %v4845 = vrot.slane %v4843, 1
  %v4846 = vor.u32 %v4841, %v4845
  %v4847 = vshrl.u32 %v4740, 16
  %v4849 = vshll.u32 %v4740, 16
  %v4851 = vrot.slane %v4849, 1
  %v4852 = vor.u32 %v4847, %v4851
  %v4853 = vshrl.u32 %v4741, 16
  %v4855 = vshll.u32 %v4741, 16
  %v4857 = vrot.slane %v4855, 1
  %v4858 = vor.u32 %v4853, %v4857
  %v4859 = vshrl.u32 %v4742, 16
  %v4861 = vshll.u32 %v4742, 16
  %v4863 = vrot.slane %v4861, 1
  %v4864 = vor.u32 %v4859, %v4863
  %v4865 = vshrl.u32 %v4743, 16
  %v4867 = vshll.u32 %v4743, 16
  %v4869 = vrot.slane %v4867, 1
  %v4870 = vor.u32 %v4865, %v4869
  %v4871 = vshrl.u32 %v4744, 16
  %v4873 = vshll.u32 %v4744, 16
  %v4875 = vrot.slane %v4873, 1
  %v4876 = vor.u32 %v4871, %v4875
  %v4877 = vshrl.u32 %v4745, 16
  %v4879 = vshll.u32 %v4745, 16
  %v4881 = vrot.slane %v4879, 1
  %v4882 = vor.u32 %v4877, %v4881
  %v4883 = vshrl.u32 %v4746, 16
  %v4885 = vshll.u32 %v4746, 16
  %v4887 = vrot.slane %v4885, 1
  %v4888 = vor.u32 %v4883, %v4887
  %v4889 = vshrl.u32 %v4747, 16
  %v4891 = vshll.u32 %v4747, 16
  %v4893 = vrot.slane %v4891, 1
  %v4894 = vor.u32 %v4889, %v4893
  %v4895 = vshrl.u32 %v4748, 16
  %v4897 = vshll.u32 %v4748, 16
  %v4899 = vrot.slane %v4897, 1
  %v4900 = vor.u32 %v4895, %v4899
  %v4901 = vshrl.u32 %v4749, 16
  %v4903 = vshll.u32 %v4749, 16
  %v4905 = vrot.slane %v4903, 1
  %v4906 = vor.u32 %v4901, %v4905
  %v4907 = vshrl.u32 %v4750, 16
  %v4909 = vshll.u32 %v4750, 16
  %v4911 = vrot.slane %v4909, 1
  %v4912 = vor.u32 %v4907, %v4911
  %v4913 = vshrl.u32 %v4751, 16
  %v4915 = vshll.u32 %v4751, 16
  %v4917 = vrot.slane %v4915, 1
  %v4918 = vor.u32 %v4913, %v4917
  %v4919 = vshrl.u32 %v4752, 16
  %v4921 = vshll.u32 %v4752, 16
  %v4923 = vrot.slane %v4921, 1
  %v4924 = vor.u32 %v4919, %v4923
  %v4925 = vshrl.u32 %v4753, 16
  %v4927 = vshll.u32 %v4753, 16
  %v4929 = vrot.slane %v4927, 1
  %v4930 = vor.u32 %v4925, %v4929
  %v4931 = vshrl.u32 %v4754, 16
  %v4933 = vshll.u32 %v4754, 16
  %v4935 = vrot.slane %v4933, 1
  %v4936 = vor.u32 %v4931, %v4935
  %v4937 = vshrl.u32 %v4755, 16
  %v4939 = vshll.u32 %v4755, 16
  %v4941 = vrot.slane %v4939, 1
  %v4942 = vor.u32 %v4937, %v4941
  %v4943 = vshrl.u32 %v4756, 16
  %v4945 = vshll.u32 %v4756, 16
  %v4947 = vrot.slane %v4945, 1
  %v4948 = vor.u32 %v4943, %v4947
  %4949 = vrot.lane.b32.xlu0 %v4762, 32
  %v4950 = vpop.permute.xlu0 %4949
  %4951 = vrot.lane.b32.xlu0 %v4768, 32
  %v4952 = vpop.permute.xlu0 %4951
  %4953 = vrot.lane.b32.xlu0 %v4774, 32
  %v4954 = vpop.permute.xlu0 %4953
  %4955 = vrot.lane.b32.xlu0 %v4780, 32
  %v4956 = vpop.permute.xlu0 %4955
  %4957 = vrot.lane.b32.xlu0 %v4786, 32
  %v4958 = vpop.permute.xlu0 %4957
  %4959 = vrot.lane.b32.xlu0 %v4792, 32
  %v4960 = vpop.permute.xlu0 %4959
  %4961 = vrot.lane.b32.xlu0 %v4798, 32
  %v4962 = vpop.permute.xlu0 %4961
  %4963 = vrot.lane.b32.xlu0 %v4804, 32
  %v4964 = vpop.permute.xlu0 %4963
  %4965 = vrot.lane.b32.xlu0 %v4810, 32
  %v4966 = vpop.permute.xlu0 %4965
  %4967 = vrot.lane.b32.xlu0 %v4816, 32
  %v4968 = vpop.permute.xlu0 %4967
  %4969 = vrot.lane.b32.xlu0 %v4822, 32
  %v4970 = vpop.permute.xlu0 %4969
  %4971 = vrot.lane.b32.xlu0 %v4828, 32
  %v4972 = vpop.permute.xlu0 %4971
  %4973 = vrot.lane.b32.xlu0 %v4834, 32
  %v4974 = vpop.permute.xlu0 %4973
  %4975 = vrot.lane.b32.xlu0 %v4840, 32
  %v4976 = vpop.permute.xlu0 %4975
  %4977 = vrot.lane.b32.xlu0 %v4846, 32
  %v4978 = vpop.permute.xlu0 %4977
  %4979 = vrot.lane.b32.xlu0 %v4852, 32
  %v4980 = vpop.permute.xlu0 %4979
  %4981 = vrot.lane.b32.xlu0 %v4858, 32
  %v4982 = vpop.permute.xlu0 %4981
  %4983 = vrot.lane.b32.xlu0 %v4864, 32
  %v4984 = vpop.permute.xlu0 %4983
  %4985 = vrot.lane.b32.xlu0 %v4870, 32
  %v4986 = vpop.permute.xlu0 %4985
  %4987 = vrot.lane.b32.xlu0 %v4876, 32
  %v4988 = vpop.permute.xlu0 %4987
  %4989 = vrot.lane.b32.xlu0 %v4882, 32
  %v4990 = vpop.permute.xlu0 %4989
  %4991 = vrot.lane.b32.xlu0 %v4888, 32
  %v4992 = vpop.permute.xlu0 %4991
  %4993 = vrot.lane.b32.xlu0 %v4894, 32
  %v4994 = vpop.permute.xlu0 %4993
  %4995 = vrot.lane.b32.xlu0 %v4900, 32
  %v4996 = vpop.permute.xlu0 %4995
  %4997 = vrot.lane.b32.xlu0 %v4906, 32
  %v4998 = vpop.permute.xlu0 %4997
  %4999 = vrot.lane.b32.xlu0 %v4912, 32
  %v5000 = vpop.permute.xlu0 %4999
  %5001 = vrot.lane.b32.xlu0 %v4918, 32
  %v5002 = vpop.permute.xlu0 %5001
  %5003 = vrot.lane.b32.xlu0 %v4924, 32
  %v5004 = vpop.permute.xlu0 %5003
  %5005 = vrot.lane.b32.xlu0 %v4930, 32
  %v5006 = vpop.permute.xlu0 %5005
  %5007 = vrot.lane.b32.xlu0 %v4936, 32
  %v5008 = vpop.permute.xlu0 %5007
  %5009 = vrot.lane.b32.xlu0 %v4942, 32
  %v5010 = vpop.permute.xlu0 %5009
  %5011 = vrot.lane.b32.xlu0 %v4948, 32
  %v5012 = vpop.permute.xlu0 %5011
  %v5045 = vrot.slane %v4725, 1
  %v5046 = vrot.slane %v4726, 1
  %v5047 = vrot.slane %v4727, 1
  %v5048 = vrot.slane %v4728, 1
  %v5049 = vrot.slane %v4729, 1
  %v5050 = vrot.slane %v4730, 1
  %v5051 = vrot.slane %v4731, 1
  %v5052 = vrot.slane %v4732, 1
  %v5053 = vrot.slane %v4733, 1
  %v5054 = vrot.slane %v4734, 1
  %v5055 = vrot.slane %v4735, 1
  %v5056 = vrot.slane %v4736, 1
  %v5057 = vrot.slane %v4737, 1
  %v5058 = vrot.slane %v4738, 1
  %v5059 = vrot.slane %v4739, 1
  %v5060 = vrot.slane %v4740, 1
  %v5061 = vrot.slane %v4741, 1
  %v5062 = vrot.slane %v4742, 1
  %v5063 = vrot.slane %v4743, 1
  %v5064 = vrot.slane %v4744, 1
  %v5065 = vrot.slane %v4745, 1
  %v5066 = vrot.slane %v4746, 1
  %v5067 = vrot.slane %v4747, 1
  %v5068 = vrot.slane %v4748, 1
  %v5069 = vrot.slane %v4749, 1
  %v5070 = vrot.slane %v4750, 1
  %v5071 = vrot.slane %v4751, 1
  %v5072 = vrot.slane %v4752, 1
  %v5073 = vrot.slane %v4753, 1
  %v5074 = vrot.slane %v4754, 1
  %v5075 = vrot.slane %v4755, 1
  %v5076 = vrot.slane %v4756, 1
  %5077 = vrot.lane.b32.xlu0 %v5045, 64
  %v5078 = vpop.permute.xlu0 %5077
  %5079 = vrot.lane.b32.xlu0 %v5046, 64
  %v5080 = vpop.permute.xlu0 %5079
  %5081 = vrot.lane.b32.xlu0 %v5047, 64
  %v5082 = vpop.permute.xlu0 %5081
  %5083 = vrot.lane.b32.xlu0 %v5048, 64
  %v5084 = vpop.permute.xlu0 %5083
  %5085 = vrot.lane.b32.xlu0 %v5049, 64
  %v5086 = vpop.permute.xlu0 %5085
  %5087 = vrot.lane.b32.xlu0 %v5050, 64
  %v5088 = vpop.permute.xlu0 %5087
  %5089 = vrot.lane.b32.xlu0 %v5051, 64
  %v5090 = vpop.permute.xlu0 %5089
  %5091 = vrot.lane.b32.xlu0 %v5052, 64
  %v5092 = vpop.permute.xlu0 %5091
  %5093 = vrot.lane.b32.xlu0 %v5053, 64
  %v5094 = vpop.permute.xlu0 %5093
  %5095 = vrot.lane.b32.xlu0 %v5054, 64
  %v5096 = vpop.permute.xlu0 %5095
  %5097 = vrot.lane.b32.xlu0 %v5055, 64
  %v5098 = vpop.permute.xlu0 %5097
  %5099 = vrot.lane.b32.xlu0 %v5056, 64
  %v5100 = vpop.permute.xlu0 %5099
  %5101 = vrot.lane.b32.xlu0 %v5057, 64
  %v5102 = vpop.permute.xlu0 %5101
  %5103 = vrot.lane.b32.xlu0 %v5058, 64
  %v5104 = vpop.permute.xlu0 %5103
  %5105 = vrot.lane.b32.xlu0 %v5059, 64
  %v5106 = vpop.permute.xlu0 %5105
  %5107 = vrot.lane.b32.xlu0 %v5060, 64
  %v5108 = vpop.permute.xlu0 %5107
  %5109 = vrot.lane.b32.xlu0 %v5061, 64
  %v5110 = vpop.permute.xlu0 %5109
  %5111 = vrot.lane.b32.xlu0 %v5062, 64
  %v5112 = vpop.permute.xlu0 %5111
  %5113 = vrot.lane.b32.xlu0 %v5063, 64
  %v5114 = vpop.permute.xlu0 %5113
  %5115 = vrot.lane.b32.xlu0 %v5064, 64
  %v5116 = vpop.permute.xlu0 %5115
  %5117 = vrot.lane.b32.xlu0 %v5065, 64
  %v5118 = vpop.permute.xlu0 %5117
  %5119 = vrot.lane.b32.xlu0 %v5066, 64
  %v5120 = vpop.permute.xlu0 %5119
  %5121 = vrot.lane.b32.xlu0 %v5067, 64
  %v5122 = vpop.permute.xlu0 %5121
  %5123 = vrot.lane.b32.xlu0 %v5068, 64
  %v5124 = vpop.permute.xlu0 %5123
  %5125 = vrot.lane.b32.xlu0 %v5069, 64
  %v5126 = vpop.permute.xlu0 %5125
  %5127 = vrot.lane.b32.xlu0 %v5070, 64
  %v5128 = vpop.permute.xlu0 %5127
  %5129 = vrot.lane.b32.xlu0 %v5071, 64
  %v5130 = vpop.permute.xlu0 %5129
  %5131 = vrot.lane.b32.xlu0 %v5072, 64
  %v5132 = vpop.permute.xlu0 %5131
  %5133 = vrot.lane.b32.xlu0 %v5073, 64
  %v5134 = vpop.permute.xlu0 %5133
  %5135 = vrot.lane.b32.xlu0 %v5074, 64
  %v5136 = vpop.permute.xlu0 %5135
  %5137 = vrot.lane.b32.xlu0 %v5075, 64
  %v5138 = vpop.permute.xlu0 %5137
  %5139 = vrot.lane.b32.xlu0 %v5076, 64
  %v5140 = vpop.permute.xlu0 %5139
  %v5141 = vrot.slane %v4757, 1
  %v5142 = vrot.slane %v4759, 2
  %v5143 = vor.u32 %v5141, %v5142
  %v5144 = vrot.slane %v4763, 1
  %v5145 = vrot.slane %v4765, 2
  %v5146 = vor.u32 %v5144, %v5145
  %v5147 = vrot.slane %v4769, 1
  %v5148 = vrot.slane %v4771, 2
  %v5149 = vor.u32 %v5147, %v5148
  %v5150 = vrot.slane %v4775, 1
  %v5151 = vrot.slane %v4777, 2
  %v5152 = vor.u32 %v5150, %v5151
  %v5153 = vrot.slane %v4781, 1
  %v5154 = vrot.slane %v4783, 2
  %v5155 = vor.u32 %v5153, %v5154
  %v5156 = vrot.slane %v4787, 1
  %v5157 = vrot.slane %v4789, 2
  %v5158 = vor.u32 %v5156, %v5157
  %v5159 = vrot.slane %v4793, 1
  %v5160 = vrot.slane %v4795, 2
  %v5161 = vor.u32 %v5159, %v5160
  %v5162 = vrot.slane %v4799, 1
  %v5163 = vrot.slane %v4801, 2
  %v5164 = vor.u32 %v5162, %v5163
  %v5165 = vrot.slane %v4805, 1
  %v5166 = vrot.slane %v4807, 2
  %v5167 = vor.u32 %v5165, %v5166
  %v5168 = vrot.slane %v4811, 1
  %v5169 = vrot.slane %v4813, 2
  %v5170 = vor.u32 %v5168, %v5169
  %v5171 = vrot.slane %v4817, 1
  %v5172 = vrot.slane %v4819, 2
  %v5173 = vor.u32 %v5171, %v5172
  %v5174 = vrot.slane %v4823, 1
  %v5175 = vrot.slane %v4825, 2
  %v5176 = vor.u32 %v5174, %v5175
  %v5177 = vrot.slane %v4829, 1
  %v5178 = vrot.slane %v4831, 2
  %v5179 = vor.u32 %v5177, %v5178
  %v5180 = vrot.slane %v4835, 1
  %v5181 = vrot.slane %v4837, 2
  %v5182 = vor.u32 %v5180, %v5181
  %v5183 = vrot.slane %v4841, 1
  %v5184 = vrot.slane %v4843, 2
  %v5185 = vor.u32 %v5183, %v5184
  %v5186 = vrot.slane %v4847, 1
  %v5187 = vrot.slane %v4849, 2
  %v5188 = vor.u32 %v5186, %v5187
  %v5189 = vrot.slane %v4853, 1
  %v5190 = vrot.slane %v4855, 2
  %v5191 = vor.u32 %v5189, %v5190
  %v5192 = vrot.slane %v4859, 1
  %v5193 = vrot.slane %v4861, 2
  %v5194 = vor.u32 %v5192, %v5193
  %v5195 = vrot.slane %v4865, 1
  %v5196 = vrot.slane %v4867, 2
  %v5197 = vor.u32 %v5195, %v5196
  %v5198 = vrot.slane %v4871, 1
  %v5199 = vrot.slane %v4873, 2
  %v5200 = vor.u32 %v5198, %v5199
  %v5201 = vrot.slane %v4877, 1
  %v5202 = vrot.slane %v4879, 2
  %v5203 = vor.u32 %v5201, %v5202
  %v5204 = vrot.slane %v4883, 1
  %v5205 = vrot.slane %v4885, 2
  %v5206 = vor.u32 %v5204, %v5205
  %v5207 = vrot.slane %v4889, 1
  %v5208 = vrot.slane %v4891, 2
  %v5209 = vor.u32 %v5207, %v5208
  %v5210 = vrot.slane %v4895, 1
  %v5211 = vrot.slane %v4897, 2
  %v5212 = vor.u32 %v5210, %v5211
  %v5213 = vrot.slane %v4901, 1
  %v5214 = vrot.slane %v4903, 2
  %v5215 = vor.u32 %v5213, %v5214
  %v5216 = vrot.slane %v4907, 1
  %v5217 = vrot.slane %v4909, 2
  %v5218 = vor.u32 %v5216, %v5217
  %v5219 = vrot.slane %v4913, 1
  %v5220 = vrot.slane %v4915, 2
  %v5221 = vor.u32 %v5219, %v5220
  %v5222 = vrot.slane %v4919, 1
  %v5223 = vrot.slane %v4921, 2
  %v5224 = vor.u32 %v5222, %v5223
  %v5225 = vrot.slane %v4925, 1
  %v5226 = vrot.slane %v4927, 2
  %v5227 = vor.u32 %v5225, %v5226
  %v5228 = vrot.slane %v4931, 1
  %v5229 = vrot.slane %v4933, 2
  %v5230 = vor.u32 %v5228, %v5229
  %v5231 = vrot.slane %v4937, 1
  %v5232 = vrot.slane %v4939, 2
  %v5233 = vor.u32 %v5231, %v5232
  %v5234 = vrot.slane %v4943, 1
  %v5235 = vrot.slane %v4945, 2
  %v5236 = vor.u32 %v5234, %v5235
  %5237 = vrot.lane.b32.xlu0 %v5143, 96
  %v5238 = vpop.permute.xlu0 %5237
  %5239 = vrot.lane.b32.xlu0 %v5146, 96
  %v5240 = vpop.permute.xlu0 %5239
  %5241 = vrot.lane.b32.xlu0 %v5149, 96
  %v5242 = vpop.permute.xlu0 %5241
  %5243 = vrot.lane.b32.xlu0 %v5152, 96
  %v5244 = vpop.permute.xlu0 %5243
  %5245 = vrot.lane.b32.xlu0 %v5155, 96
  %v5246 = vpop.permute.xlu0 %5245
  %5247 = vrot.lane.b32.xlu0 %v5158, 96
  %v5248 = vpop.permute.xlu0 %5247
  %5249 = vrot.lane.b32.xlu0 %v5161, 96
  %v5250 = vpop.permute.xlu0 %5249
  %5251 = vrot.lane.b32.xlu0 %v5164, 96
  %v5252 = vpop.permute.xlu0 %5251
  %5253 = vrot.lane.b32.xlu0 %v5167, 96
  %v5254 = vpop.permute.xlu0 %5253
  %5255 = vrot.lane.b32.xlu0 %v5170, 96
  %v5256 = vpop.permute.xlu0 %5255
  %5257 = vrot.lane.b32.xlu0 %v5173, 96
  %v5258 = vpop.permute.xlu0 %5257
  %5259 = vrot.lane.b32.xlu0 %v5176, 96
  %v5260 = vpop.permute.xlu0 %5259
  %5261 = vrot.lane.b32.xlu0 %v5179, 96
  %v5262 = vpop.permute.xlu0 %5261
  %5263 = vrot.lane.b32.xlu0 %v5182, 96
  %v5264 = vpop.permute.xlu0 %5263
  %5265 = vrot.lane.b32.xlu0 %v5185, 96
  %v5266 = vpop.permute.xlu0 %5265
  %5267 = vrot.lane.b32.xlu0 %v5188, 96
  %v5268 = vpop.permute.xlu0 %5267
  %5269 = vrot.lane.b32.xlu0 %v5191, 96
  %v5270 = vpop.permute.xlu0 %5269
  %5271 = vrot.lane.b32.xlu0 %v5194, 96
  %v5272 = vpop.permute.xlu0 %5271
  %5273 = vrot.lane.b32.xlu0 %v5197, 96
  %v5274 = vpop.permute.xlu0 %5273
  %5275 = vrot.lane.b32.xlu0 %v5200, 96
  %v5276 = vpop.permute.xlu0 %5275
  %5277 = vrot.lane.b32.xlu0 %v5203, 96
  %v5278 = vpop.permute.xlu0 %5277
  %5279 = vrot.lane.b32.xlu0 %v5206, 96
  %v5280 = vpop.permute.xlu0 %5279
  %5281 = vrot.lane.b32.xlu0 %v5209, 96
  %v5282 = vpop.permute.xlu0 %5281
  %5283 = vrot.lane.b32.xlu0 %v5212, 96
  %v5284 = vpop.permute.xlu0 %5283
  %5285 = vrot.lane.b32.xlu0 %v5215, 96
  %v5286 = vpop.permute.xlu0 %5285
  %5287 = vrot.lane.b32.xlu0 %v5218, 96
  %v5288 = vpop.permute.xlu0 %5287
  %5289 = vrot.lane.b32.xlu0 %v5221, 96
  %v5290 = vpop.permute.xlu0 %5289
  %5291 = vrot.lane.b32.xlu0 %v5224, 96
  %v5292 = vpop.permute.xlu0 %5291
  %5293 = vrot.lane.b32.xlu0 %v5227, 96
  %v5294 = vpop.permute.xlu0 %5293
  %5295 = vrot.lane.b32.xlu0 %v5230, 96
  %v5296 = vpop.permute.xlu0 %5295
  %5297 = vrot.lane.b32.xlu0 %v5233, 96
  %v5298 = vpop.permute.xlu0 %5297
  %5299 = vrot.lane.b32.xlu0 %v5236, 96
  %v5300 = vpop.permute.xlu0 %5299
  %v5301 = vrot.slane %v4725, 2
  %v5302 = vrot.slane %v4726, 2
  %v5303 = vrot.slane %v4727, 2
  %v5304 = vrot.slane %v4728, 2
  %v5305 = vrot.slane %v4729, 2
  %v5306 = vrot.slane %v4730, 2
  %v5307 = vrot.slane %v4731, 2
  %v5308 = vrot.slane %v4732, 2
  %v5309 = vrot.slane %v4733, 2
  %v5310 = vrot.slane %v4734, 2
  %v5311 = vrot.slane %v4735, 2
  %v5312 = vrot.slane %v4736, 2
  %v5313 = vrot.slane %v4737, 2
  %v5314 = vrot.slane %v4738, 2
  %v5315 = vrot.slane %v4739, 2
  %v5316 = vrot.slane %v4740, 2
  %v5317 = vrot.slane %v4741, 2
  %v5318 = vrot.slane %v4742, 2
  %v5319 = vrot.slane %v4743, 2
  %v5320 = vrot.slane %v4744, 2
  %v5321 = vrot.slane %v4745, 2
  %v5322 = vrot.slane %v4746, 2
  %v5323 = vrot.slane %v4747, 2
  %v5324 = vrot.slane %v4748, 2
  %v5325 = vrot.slane %v4749, 2
  %v5326 = vrot.slane %v4750, 2
  %v5327 = vrot.slane %v4751, 2
  %v5328 = vrot.slane %v4752, 2
  %v5329 = vrot.slane %v4753, 2
  %v5330 = vrot.slane %v4754, 2
  %v5331 = vrot.slane %v4755, 2
  %v5332 = vrot.slane %v4756, 2
  %v5334 = vsel %vm408, %v4725, %v4950
  %v5336 = vsel %vm408, %v4726, %v4952
  %v5338 = vsel %vm408, %v4727, %v4954
  %v5340 = vsel %vm408, %v4728, %v4956
  %v5342 = vsel %vm408, %v4729, %v4958
  %v5344 = vsel %vm408, %v4730, %v4960
  %v5346 = vsel %vm408, %v4731, %v4962
  %v5348 = vsel %vm408, %v4732, %v4964
  %v5350 = vsel %vm408, %v4733, %v4966
  %v5352 = vsel %vm408, %v4734, %v4968
  %v5354 = vsel %vm408, %v4735, %v4970
  %v5356 = vsel %vm408, %v4736, %v4972
  %v5358 = vsel %vm408, %v4737, %v4974
  %v5360 = vsel %vm408, %v4738, %v4976
  %v5362 = vsel %vm408, %v4739, %v4978
  %v5364 = vsel %vm408, %v4740, %v4980
  %v5366 = vsel %vm408, %v4741, %v4982
  %v5368 = vsel %vm408, %v4742, %v4984
  %v5370 = vsel %vm408, %v4743, %v4986
  %v5372 = vsel %vm408, %v4744, %v4988
  %v5374 = vsel %vm408, %v4745, %v4990
  %v5376 = vsel %vm408, %v4746, %v4992
  %v5378 = vsel %vm408, %v4747, %v4994
  %v5380 = vsel %vm408, %v4748, %v4996
  %v5382 = vsel %vm408, %v4749, %v4998
  %v5384 = vsel %vm408, %v4750, %v5000
  %v5386 = vsel %vm408, %v4751, %v5002
  %v5388 = vsel %vm408, %v4752, %v5004
  %v5390 = vsel %vm408, %v4753, %v5006
  %v5392 = vsel %vm408, %v4754, %v5008
  %v5394 = vsel %vm408, %v4755, %v5010
  %v5396 = vsel %vm408, %v4756, %v5012
  %v5398 = vsel %vm500, %v5334, %v5078
  %v5400 = vsel %vm500, %v5336, %v5080
  %v5402 = vsel %vm500, %v5338, %v5082
  %v5404 = vsel %vm500, %v5340, %v5084
  %v5406 = vsel %vm500, %v5342, %v5086
  %v5408 = vsel %vm500, %v5344, %v5088
  %v5410 = vsel %vm500, %v5346, %v5090
  %v5412 = vsel %vm500, %v5348, %v5092
  %v5414 = vsel %vm500, %v5350, %v5094
  %v5416 = vsel %vm500, %v5352, %v5096
  %v5418 = vsel %vm500, %v5354, %v5098
  %v5420 = vsel %vm500, %v5356, %v5100
  %v5422 = vsel %vm500, %v5358, %v5102
  %v5424 = vsel %vm500, %v5360, %v5104
  %v5426 = vsel %vm500, %v5362, %v5106
  %v5428 = vsel %vm500, %v5364, %v5108
  %v5430 = vsel %vm500, %v5366, %v5110
  %v5432 = vsel %vm500, %v5368, %v5112
  %v5434 = vsel %vm500, %v5370, %v5114
  %v5436 = vsel %vm500, %v5372, %v5116
  %v5438 = vsel %vm500, %v5374, %v5118
  %v5440 = vsel %vm500, %v5376, %v5120
  %v5442 = vsel %vm500, %v5378, %v5122
  %v5444 = vsel %vm500, %v5380, %v5124
  %v5446 = vsel %vm500, %v5382, %v5126
  %v5448 = vsel %vm500, %v5384, %v5128
  %v5450 = vsel %vm500, %v5386, %v5130
  %v5452 = vsel %vm500, %v5388, %v5132
  %v5454 = vsel %vm500, %v5390, %v5134
  %v5456 = vsel %vm500, %v5392, %v5136
  %v5458 = vsel %vm500, %v5394, %v5138
  %v5460 = vsel %vm500, %v5396, %v5140
  %v5462 = vsel %vm565, %v5398, %v5238
  %v5464 = vsel %vm565, %v5400, %v5240
  %v5466 = vsel %vm565, %v5402, %v5242
  %v5468 = vsel %vm565, %v5404, %v5244
  %v5470 = vsel %vm565, %v5406, %v5246
  %v5472 = vsel %vm565, %v5408, %v5248
  %v5474 = vsel %vm565, %v5410, %v5250
  %v5476 = vsel %vm565, %v5412, %v5252
  %v5478 = vsel %vm565, %v5414, %v5254
  %v5480 = vsel %vm565, %v5416, %v5256
  %v5482 = vsel %vm565, %v5418, %v5258
  %v5484 = vsel %vm565, %v5420, %v5260
  %v5486 = vsel %vm565, %v5422, %v5262
  %v5488 = vsel %vm565, %v5424, %v5264
  %v5490 = vsel %vm565, %v5426, %v5266
  %v5492 = vsel %vm565, %v5428, %v5268
  %v5494 = vsel %vm565, %v5430, %v5270
  %v5496 = vsel %vm565, %v5432, %v5272
  %v5498 = vsel %vm565, %v5434, %v5274
  %v5500 = vsel %vm565, %v5436, %v5276
  %v5502 = vsel %vm565, %v5438, %v5278
  %v5504 = vsel %vm565, %v5440, %v5280
  %v5506 = vsel %vm565, %v5442, %v5282
  %v5508 = vsel %vm565, %v5444, %v5284
  %v5510 = vsel %vm565, %v5446, %v5286
  %v5512 = vsel %vm565, %v5448, %v5288
  %v5514 = vsel %vm565, %v5450, %v5290
  %v5516 = vsel %vm565, %v5452, %v5292
  %v5518 = vsel %vm565, %v5454, %v5294
  %v5520 = vsel %vm565, %v5456, %v5296
  %v5522 = vsel %vm565, %v5458, %v5298
  %v5524 = vsel %vm565, %v5460, %v5300
  %v5557 = vunpack.c.l.b16 %v5462
  %v5558 = vunpack.c.l.b16 %v5301
  %v5559 = vunpack.c.l.b16 %v5464
  %v5560 = vunpack.c.l.b16 %v5302
  %v5561 = vunpack.c.l.b16 %v5466
  %v5562 = vunpack.c.l.b16 %v5303
  %v5563 = vunpack.c.l.b16 %v5468
  %v5564 = vunpack.c.l.b16 %v5304
  %v5565 = vunpack.c.l.b16 %v5470
  %v5566 = vunpack.c.l.b16 %v5305
  %v5567 = vunpack.c.l.b16 %v5472
  %v5568 = vunpack.c.l.b16 %v5306
  %v5569 = vunpack.c.l.b16 %v5474
  %v5570 = vunpack.c.l.b16 %v5307
  %v5571 = vunpack.c.l.b16 %v5476
  %v5572 = vunpack.c.l.b16 %v5308
  %v5573 = vunpack.c.l.b16 %v5478
  %v5574 = vunpack.c.l.b16 %v5309
  %v5575 = vunpack.c.l.b16 %v5480
  %v5576 = vunpack.c.l.b16 %v5310
  %v5577 = vunpack.c.l.b16 %v5482
  %v5578 = vunpack.c.l.b16 %v5311
  %v5579 = vunpack.c.l.b16 %v5484
  %v5580 = vunpack.c.l.b16 %v5312
  %v5581 = vunpack.c.l.b16 %v5486
  %v5582 = vunpack.c.l.b16 %v5313
  %v5583 = vunpack.c.l.b16 %v5488
  %v5584 = vunpack.c.l.b16 %v5314
  %v5585 = vunpack.c.l.b16 %v5490
  %v5586 = vunpack.c.l.b16 %v5315
  %v5587 = vunpack.c.l.b16 %v5492
  %v5588 = vunpack.c.l.b16 %v5316
  %v5589 = vunpack.c.l.b16 %v5494
  %v5590 = vunpack.c.l.b16 %v5317
  %v5591 = vunpack.c.l.b16 %v5496
  %v5592 = vunpack.c.l.b16 %v5318
  %v5593 = vunpack.c.l.b16 %v5498
  %v5594 = vunpack.c.l.b16 %v5319
  %v5595 = vunpack.c.l.b16 %v5500
  %v5596 = vunpack.c.l.b16 %v5320
  %v5597 = vunpack.c.l.b16 %v5502
  %v5598 = vunpack.c.l.b16 %v5321
  %v5599 = vunpack.c.l.b16 %v5504
  %v5600 = vunpack.c.l.b16 %v5322
  %v5601 = vunpack.c.l.b16 %v5506
  %v5602 = vunpack.c.l.b16 %v5323
  %v5603 = vunpack.c.l.b16 %v5508
  %v5604 = vunpack.c.l.b16 %v5324
  %v5605 = vunpack.c.l.b16 %v5510
  %v5606 = vunpack.c.l.b16 %v5325
  %v5607 = vunpack.c.l.b16 %v5512
  %v5608 = vunpack.c.l.b16 %v5326
  %v5609 = vunpack.c.l.b16 %v5514
  %v5610 = vunpack.c.l.b16 %v5327
  %v5611 = vunpack.c.l.b16 %v5516
  %v5612 = vunpack.c.l.b16 %v5328
  %v5613 = vunpack.c.l.b16 %v5518
  %v5614 = vunpack.c.l.b16 %v5329
  %v5615 = vunpack.c.l.b16 %v5520
  %v5616 = vunpack.c.l.b16 %v5330
  %v5617 = vunpack.c.l.b16 %v5522
  %v5618 = vunpack.c.l.b16 %v5331
  %v5619 = vunpack.c.l.b16 %v5524
  %v5620 = vunpack.c.l.b16 %v5332
  %v5621 = vpack.c.b16 %v5559, %v5557
  %v5622 = vpack.c.b16 %v5560, %v5558
  %v5623 = vpack.c.b16 %v5563, %v5561
  %v5624 = vpack.c.b16 %v5564, %v5562
  %v5625 = vpack.c.b16 %v5567, %v5565
  %v5626 = vpack.c.b16 %v5568, %v5566
  %v5627 = vpack.c.b16 %v5571, %v5569
  %v5628 = vpack.c.b16 %v5572, %v5570
  %v5629 = vpack.c.b16 %v5575, %v5573
  %v5630 = vpack.c.b16 %v5576, %v5574
  %v5631 = vpack.c.b16 %v5579, %v5577
  %v5632 = vpack.c.b16 %v5580, %v5578
  %v5633 = vpack.c.b16 %v5583, %v5581
  %v5634 = vpack.c.b16 %v5584, %v5582
  %v5635 = vpack.c.b16 %v5587, %v5585
  %v5636 = vpack.c.b16 %v5588, %v5586
  %v5637 = vpack.c.b16 %v5591, %v5589
  %v5638 = vpack.c.b16 %v5592, %v5590
  %v5639 = vpack.c.b16 %v5595, %v5593
  %v5640 = vpack.c.b16 %v5596, %v5594
  %v5641 = vpack.c.b16 %v5599, %v5597
  %v5642 = vpack.c.b16 %v5600, %v5598
  %v5643 = vpack.c.b16 %v5603, %v5601
  %v5644 = vpack.c.b16 %v5604, %v5602
  %v5645 = vpack.c.b16 %v5607, %v5605
  %v5646 = vpack.c.b16 %v5608, %v5606
  %v5647 = vpack.c.b16 %v5611, %v5609
  %v5648 = vpack.c.b16 %v5612, %v5610
  %v5649 = vpack.c.b16 %v5615, %v5613
  %v5650 = vpack.c.b16 %v5616, %v5614
  %v5651 = vpack.c.b16 %v5619, %v5617
  %v5652 = vpack.c.b16 %v5620, %v5618
  %v5689 = vunpack.c.l.b16 %v2624
  %v5690 = vunpack.c.l.b16 %v2625
  %v5691 = vunpack.c.l.b16 %v2626
  %v5692 = vunpack.c.l.b16 %v2627
  %v5693 = vunpack.c.l.b16 %v2628
  %v5694 = vunpack.c.l.b16 %v2629
  %v5695 = vunpack.c.l.b16 %v2630
  %v5696 = vunpack.c.l.b16 %v2631
  %v5697 = vunpack.c.l.b16 %v2632
  %v5698 = vunpack.c.l.b16 %v2633
  %v5699 = vunpack.c.l.b16 %v2634
  %v5700 = vunpack.c.l.b16 %v2635
  %v5701 = vunpack.c.l.b16 %v2636
  %v5702 = vunpack.c.l.b16 %v2637
  %v5703 = vunpack.c.l.b16 %v2638
  %v5704 = vunpack.c.l.b16 %v2639
  %v5705 = vunpack.c.l.b16 %v2640
  %v5706 = vunpack.c.l.b16 %v2641
  %v5707 = vunpack.c.l.b16 %v2642
  %v5708 = vunpack.c.l.b16 %v2643
  %v5709 = vpack.c.b16 %v5690, %v5689
  %v5710 = vpack.c.b16 %v5692, %v5691
  %v5711 = vpack.c.b16 %v5694, %v5693
  %v5712 = vpack.c.b16 %v5696, %v5695
  %v5713 = vpack.c.b16 %v5698, %v5697
  %v5714 = vpack.c.b16 %v5700, %v5699
  %v5715 = vpack.c.b16 %v5702, %v5701
  %v5716 = vpack.c.b16 %v5704, %v5703
  %v5717 = vpack.c.b16 %v5706, %v5705
  %v5718 = vpack.c.b16 %v5708, %v5707
  %v5730 = vsel %vm408, %v5622, 0
  %v5733 = vsel %vm408, %v5624, 0
  %v5736 = vsel %vm408, %v5626, 0
  %v5739 = vsel %vm408, %v5628, 0
  %v5742 = vsel %vm408, %v5630, 0
  %v5745 = vsel %vm408, %v5632, 0
  %v5748 = vsel %vm408, %v5634, 0
  %v5751 = vsel %vm408, %v5636, 0
  %v5754 = vsel %vm408, %v5638, 0
  %v5757 = vsel %vm408, %v5640, 0
  %v5760 = vsel %vm408, %v5642, 0
  %v5763 = vsel %vm408, %v5644, 0
  %v5766 = vsel %vm408, %v5646, 0
  %v5769 = vsel %vm408, %v5648, 0
  %v5772 = vsel %vm408, %v5650, 0
  %v5775 = vsel %vm408, %v5652, 0
  %5777 = vmatprep.subr.bf16.mxu0 0
  %5778 = vmatpush1.bf16.msra.mxu0 %v5709
  %5779 = vmatprep.subr.bf16.mxu0 0
  %5780 = vmatpush1.bf16.msra.mxu0 %v5710
  %5781 = vmatprep.subr.bf16.mxu0 0
  %5782 = vmatpush1.bf16.msra.mxu0 %v5711
  %5783 = vmatprep.subr.bf16.mxu0 0
  %5784 = vmatpush1.bf16.msra.mxu0 %v5712
  %5785 = vmatprep.subr.bf16.mxu0 0
  %5786 = vmatpush1.bf16.msra.mxu0 %v5713
  %5787 = vmatprep.subr.bf16.mxu0 0
  %5788 = vmatpush1.bf16.msra.mxu0 %v5714
  %5789 = vmatprep.subr.bf16.mxu0 0
  %5790 = vmatpush1.bf16.msra.mxu0 %v5715
  %5791 = vmatprep.subr.bf16.mxu0 0
  %5792 = vmatpush1.bf16.msra.mxu0 %v5716
  %5793 = vmatprep.subr.bf16.mxu0 0
  %5794 = vmatpush1.bf16.msra.mxu0 %v5717
  %5795 = vmatprep.subr.bf16.mxu0 0
  %5796 = vmatpush1.bf16.msra.mxu0 %v5718
  %5797 = vmatprep.subr.bf16.mxu0 0
  %5798 = vmatpush1.bf16.msra.mxu0 0
  %5799 = vmatprep.subr.bf16.mxu0 0
  %5800 = vmatpush1.bf16.msra.mxu0 0
  %5801 = vmatprep.subr.bf16.mxu0 0
  %5802 = vmatpush1.bf16.msra.mxu0 0
  %5803 = vmatprep.subr.bf16.mxu0 0
  %5804 = vmatpush1.bf16.msra.mxu0 0
  %5805 = vmatprep.subr.bf16.mxu0 0
  %5806 = vmatpush1.bf16.msra.mxu0 0
  %5807 = vmatprep.subr.bf16.mxu0 0
  %5808 = vmatpush1.bf16.msra.mxu0 0
  %5809 = vmatprep.mubr.bf16.mxu0 %v5730
  %5810 = vmatmul.mubr.bf16.gmra.mrb[0].mxu0 %v5621
  %v5811 = vpop.f32.mrb[0].mxu0
  %v5812 = vadd.f32 0.0, %v5811
  %v5813 = vpop.f32.mrb[0].mxu0
  %v5814 = vpop.f32.mrb[0].mxu0
  %v5815 = vadd.f32 0.0, %v5814
  %v5816 = vpop.f32.mrb[0].mxu0
  %5817 = vmatprep.mubr.bf16.mxu0 %v5733
  %5818 = vmatmul.mubr.bf16.gmra.mrb[0].mxu0 %v5623
  %v5819 = vpop.f32.mrb[0].mxu0
  %v5820 = vadd.f32 0.0, %v5819
  %v5821 = vpop.f32.mrb[0].mxu0
  %v5822 = vpop.f32.mrb[0].mxu0
  %v5823 = vadd.f32 0.0, %v5822
  %v5824 = vpop.f32.mrb[0].mxu0
  %5825 = vmatprep.mubr.bf16.mxu0 %v5736
  %5826 = vmatmul.mubr.bf16.gmra.mrb[0].mxu0 %v5625
  %v5827 = vpop.f32.mrb[0].mxu0
  %v5828 = vadd.f32 0.0, %v5827
  %v5829 = vpop.f32.mrb[0].mxu0
  %v5830 = vpop.f32.mrb[0].mxu0
  %v5831 = vadd.f32 0.0, %v5830
  %v5832 = vpop.f32.mrb[0].mxu0
  %5833 = vmatprep.mubr.bf16.mxu0 %v5739
  %5834 = vmatmul.mubr.bf16.gmra.mrb[0].mxu0 %v5627
  %v5835 = vpop.f32.mrb[0].mxu0
  %v5836 = vadd.f32 0.0, %v5835
  %v5837 = vpop.f32.mrb[0].mxu0
  %v5838 = vpop.f32.mrb[0].mxu0
  %v5839 = vadd.f32 0.0, %v5838
  %v5840 = vpop.f32.mrb[0].mxu0
  %5841 = vmatprep.mubr.bf16.mxu0 %v5742
  %5842 = vmatmul.mubr.bf16.gmra.mrb[0].mxu0 %v5629
  %v5843 = vpop.f32.mrb[0].mxu0
  %v5844 = vadd.f32 0.0, %v5843
  %v5845 = vpop.f32.mrb[0].mxu0
  %v5846 = vpop.f32.mrb[0].mxu0
  %v5847 = vadd.f32 0.0, %v5846
  %v5848 = vpop.f32.mrb[0].mxu0
  %5849 = vmatprep.mubr.bf16.mxu0 %v5745
  %5850 = vmatmul.mubr.bf16.gmra.mrb[0].mxu0 %v5631
  %v5851 = vpop.f32.mrb[0].mxu0
  %v5852 = vadd.f32 0.0, %v5851
  %v5853 = vpop.f32.mrb[0].mxu0
  %v5854 = vpop.f32.mrb[0].mxu0
  %v5855 = vadd.f32 0.0, %v5854
  %v5856 = vpop.f32.mrb[0].mxu0
  %5857 = vmatprep.mubr.bf16.mxu0 %v5748
  %5858 = vmatmul.mubr.bf16.gmra.mrb[0].mxu0 %v5633
  %v5859 = vpop.f32.mrb[0].mxu0
  %v5860 = vadd.f32 0.0, %v5859
  %v5861 = vpop.f32.mrb[0].mxu0
  %v5862 = vpop.f32.mrb[0].mxu0
  %v5863 = vadd.f32 0.0, %v5862
  %v5864 = vpop.f32.mrb[0].mxu0
  %5865 = vmatprep.mubr.bf16.mxu0 %v5751
  %5866 = vmatmul.mubr.bf16.gmra.mrb[0].mxu0 %v5635
  %v5867 = vpop.f32.mrb[0].mxu0
  %v5868 = vadd.f32 0.0, %v5867
  %v5869 = vpop.f32.mrb[0].mxu0
  %v5870 = vpop.f32.mrb[0].mxu0
  %v5871 = vadd.f32 0.0, %v5870
  %v5872 = vpop.f32.mrb[0].mxu0
  %5873 = vmatprep.mubr.bf16.mxu0 %v5754
  %5874 = vmatmul.mubr.bf16.gmra.mrb[0].mxu0 %v5637
  %v5875 = vpop.f32.mrb[0].mxu0
  %v5876 = vadd.f32 0.0, %v5875
  %v5877 = vpop.f32.mrb[0].mxu0
  %v5878 = vpop.f32.mrb[0].mxu0
  %v5879 = vadd.f32 0.0, %v5878
  %v5880 = vpop.f32.mrb[0].mxu0
  %5881 = vmatprep.mubr.bf16.mxu0 %v5757
  %5882 = vmatmul.mubr.bf16.gmra.mrb[0].mxu0 %v5639
  %v5883 = vpop.f32.mrb[0].mxu0
  %v5884 = vadd.f32 0.0, %v5883
  %v5885 = vpop.f32.mrb[0].mxu0
  %v5886 = vpop.f32.mrb[0].mxu0
  %v5887 = vadd.f32 0.0, %v5886
  %v5888 = vpop.f32.mrb[0].mxu0
  %5889 = vmatprep.mubr.bf16.mxu0 %v5760
  %5890 = vmatmul.mubr.bf16.gmra.mrb[0].mxu0 %v5641
  %v5891 = vpop.f32.mrb[0].mxu0
  %v5892 = vadd.f32 0.0, %v5891
  %v5893 = vpop.f32.mrb[0].mxu0
  %v5894 = vpop.f32.mrb[0].mxu0
  %v5895 = vadd.f32 0.0, %v5894
  %v5896 = vpop.f32.mrb[0].mxu0
  %5897 = vmatprep.mubr.bf16.mxu0 %v5763
  %5898 = vmatmul.mubr.bf16.gmra.mrb[0].mxu0 %v5643
  %v5899 = vpop.f32.mrb[0].mxu0
  %v5900 = vadd.f32 0.0, %v5899
  %v5901 = vpop.f32.mrb[0].mxu0
  %v5902 = vpop.f32.mrb[0].mxu0
  %v5903 = vadd.f32 0.0, %v5902
  %v5904 = vpop.f32.mrb[0].mxu0
  %5905 = vmatprep.mubr.bf16.mxu0 %v5766
  %5906 = vmatmul.mubr.bf16.gmra.mrb[0].mxu0 %v5645
  %v5907 = vpop.f32.mrb[0].mxu0
  %v5908 = vadd.f32 0.0, %v5907
  %v5909 = vpop.f32.mrb[0].mxu0
  %v5910 = vpop.f32.mrb[0].mxu0
  %v5911 = vadd.f32 0.0, %v5910
  %v5912 = vpop.f32.mrb[0].mxu0
  %5913 = vmatprep.mubr.bf16.mxu0 %v5769
  %5914 = vmatmul.mubr.bf16.gmra.mrb[0].mxu0 %v5647
  %v5915 = vpop.f32.mrb[0].mxu0
  %v5916 = vadd.f32 0.0, %v5915
  %v5917 = vpop.f32.mrb[0].mxu0
  %v5918 = vpop.f32.mrb[0].mxu0
  %v5919 = vadd.f32 0.0, %v5918
  %v5920 = vpop.f32.mrb[0].mxu0
  %5921 = vmatprep.mubr.bf16.mxu0 %v5772
  %5922 = vmatmul.mubr.bf16.gmra.mrb[0].mxu0 %v5649
  %v5923 = vpop.f32.mrb[0].mxu0
  %v5924 = vadd.f32 0.0, %v5923
  %v5925 = vpop.f32.mrb[0].mxu0
  %v5926 = vpop.f32.mrb[0].mxu0
  %v5927 = vadd.f32 0.0, %v5926
  %v5928 = vpop.f32.mrb[0].mxu0
  %5929 = vmatprep.mubr.bf16.mxu0 %v5775
  %5930 = vmatmul.mubr.bf16.gmra.mrb[0].mxu0 %v5651
  %v5931 = vpop.f32.mrb[0].mxu0
  %v5932 = vadd.f32 0.0, %v5931
  %v5933 = vpop.f32.mrb[0].mxu0
  %v5934 = vpop.f32.mrb[0].mxu0
  %v5935 = vadd.f32 0.0, %v5934
  %v5936 = vpop.f32.mrb[0].mxu0
  %5937 = vdwg.mxu0
  %v5938 = vunpack.c.l.bf16 %v2678
  %v5939 = vunpack.c.l.bf16 %v2679
  %v5940 = vunpack.c.l.bf16 %v2680
  %v5941 = vunpack.c.l.bf16 %v2681
  %v5942 = vunpack.c.l.bf16 %v2682
  %v5943 = vunpack.c.l.bf16 %v2683
  %v5944 = vunpack.c.l.bf16 %v2684
  %v5945 = vunpack.c.l.bf16 %v2685
  %v5946 = vunpack.c.l.bf16 %v2686
  %v5947 = vunpack.c.l.bf16 %v2687
  %v5948 = vunpack.c.l.bf16 %v2688
  %v5949 = vunpack.c.l.bf16 %v2689
  %v5950 = vunpack.c.l.bf16 %v2690
  %v5951 = vunpack.c.l.bf16 %v2691
  %v5952 = vunpack.c.l.bf16 %v2692
  %v5953 = vunpack.c.l.bf16 %v2693
  %v5954 = vunpack.c.l.bf16 %v2694
  %v5955 = vunpack.c.l.bf16 %v2695
  %v5956 = vunpack.c.l.bf16 %v2696
  %v5957 = vunpack.c.l.bf16 %v2697
  %v5958 = vunpack.c.l.bf16 %v2698
  %v5959 = vunpack.c.l.bf16 %v2699
  %v5960 = vunpack.c.l.bf16 %v2700
  %v5961 = vunpack.c.l.bf16 %v2701
  %v5962 = vunpack.c.l.bf16 %v2702
  %v5963 = vunpack.c.l.bf16 %v2703
  %v5964 = vunpack.c.l.bf16 %v2704
  %v5965 = vunpack.c.l.bf16 %v2705
  %v5966 = vunpack.c.l.bf16 %v2706
  %v5967 = vunpack.c.l.bf16 %v2707
  %v5968 = vunpack.c.l.bf16 %v2708
  %v5969 = vunpack.c.l.bf16 %v2709
  %v5970 = vadd.f32 %v5812, %v5938
  %v5971 = vadd.f32 %v5815, %v5939
  %v5972 = vadd.f32 %v5820, %v5940
  %v5973 = vadd.f32 %v5823, %v5941
  %v5974 = vadd.f32 %v5828, %v5942
  %v5975 = vadd.f32 %v5831, %v5943
  %v5976 = vadd.f32 %v5836, %v5944
  %v5977 = vadd.f32 %v5839, %v5945
  %v5978 = vadd.f32 %v5844, %v5946
  %v5979 = vadd.f32 %v5847, %v5947
  %v5980 = vadd.f32 %v5852, %v5948
  %v5981 = vadd.f32 %v5855, %v5949
  %v5982 = vadd.f32 %v5860, %v5950
  %v5983 = vadd.f32 %v5863, %v5951
  %v5984 = vadd.f32 %v5868, %v5952
  %v5985 = vadd.f32 %v5871, %v5953
  %v5986 = vadd.f32 %v5876, %v5954
  %v5987 = vadd.f32 %v5879, %v5955
  %v5988 = vadd.f32 %v5884, %v5956
  %v5989 = vadd.f32 %v5887, %v5957
  %v5990 = vadd.f32 %v5892, %v5958
  %v5991 = vadd.f32 %v5895, %v5959
  %v5992 = vadd.f32 %v5900, %v5960
  %v5993 = vadd.f32 %v5903, %v5961
  %v5994 = vadd.f32 %v5908, %v5962
  %v5995 = vadd.f32 %v5911, %v5963
  %v5996 = vadd.f32 %v5916, %v5964
  %v5997 = vadd.f32 %v5919, %v5965
  %v5998 = vadd.f32 %v5924, %v5966
  %v5999 = vadd.f32 %v5927, %v5967
  %v6000 = vadd.f32 %v5932, %v5968
  %v6001 = vadd.f32 %v5935, %v5969
  %v6002 = vtanh.pop %v5970
  %v6003 = vtanh.pop %v5971
  %v6004 = vtanh.pop %v5972
  %v6005 = vtanh.pop %v5973
  %v6006 = vtanh.pop %v5974
  %v6007 = vtanh.pop %v5975
  %v6008 = vtanh.pop %v5976
  %v6009 = vtanh.pop %v5977
  %v6010 = vtanh.pop %v5978
  %v6011 = vtanh.pop %v5979
  %v6012 = vtanh.pop %v5980
  %v6013 = vtanh.pop %v5981
  %v6014 = vtanh.pop %v5982
  %v6015 = vtanh.pop %v5983
  %v6016 = vtanh.pop %v5984
  %v6017 = vtanh.pop %v5985
  %v6018 = vtanh.pop %v5986
  %v6019 = vtanh.pop %v5987
  %v6020 = vtanh.pop %v5988
  %v6021 = vtanh.pop %v5989
  %v6022 = vtanh.pop %v5990
  %v6023 = vtanh.pop %v5991
  %v6024 = vtanh.pop %v5992
  %v6025 = vtanh.pop %v5993
  %v6026 = vtanh.pop %v5994
  %v6027 = vtanh.pop %v5995
  %v6028 = vtanh.pop %v5996
  %v6029 = vtanh.pop %v5997
  %v6030 = vtanh.pop %v5998
  %v6031 = vtanh.pop %v5999
  %v6032 = vtanh.pop %v6000
  %v6033 = vtanh.pop %v6001
  %v6034 = vsub.f32 1.0, %v4246
  %v6035 = vsub.f32 1.0, %v4248
  %v6036 = vsub.f32 1.0, %v4250
  %v6037 = vsub.f32 1.0, %v4252
  %v6038 = vsub.f32 1.0, %v4254
  %v6039 = vsub.f32 1.0, %v4256
  %v6040 = vsub.f32 1.0, %v4258
  %v6041 = vsub.f32 1.0, %v4260
  %v6042 = vsub.f32 1.0, %v4262
  %v6043 = vsub.f32 1.0, %v4264
  %v6044 = vsub.f32 1.0, %v4266
  %v6045 = vsub.f32 1.0, %v4268
  %v6046 = vsub.f32 1.0, %v4270
  %v6047 = vsub.f32 1.0, %v4272
  %v6048 = vsub.f32 1.0, %v4274
  %v6049 = vsub.f32 1.0, %v4276
  %v6050 = vsub.f32 1.0, %v4278
  %v6051 = vsub.f32 1.0, %v4280
  %v6052 = vsub.f32 1.0, %v4282
  %v6053 = vsub.f32 1.0, %v4284
  %v6054 = vsub.f32 1.0, %v4286
  %v6055 = vsub.f32 1.0, %v4288
  %v6056 = vsub.f32 1.0, %v4290
  %v6057 = vsub.f32 1.0, %v4292
  %v6058 = vsub.f32 1.0, %v4294
  %v6059 = vsub.f32 1.0, %v4296
  %v6060 = vsub.f32 1.0, %v4298
  %v6061 = vsub.f32 1.0, %v4300
  %v6062 = vsub.f32 1.0, %v4302
  %v6063 = vsub.f32 1.0, %v4304
  %v6064 = vsub.f32 1.0, %v4306
  %v6065 = vsub.f32 1.0, %v4308
  %v6066 = vmul.f32 %v6034, %v2570
  %v6067 = vmul.f32 %v6035, %v2571
  %v6068 = vmul.f32 %v6036, %v2572
  %v6069 = vmul.f32 %v6037, %v2573
  %v6070 = vmul.f32 %v6038, %v2574
  %v6071 = vmul.f32 %v6039, %v2575
  %v6072 = vmul.f32 %v6040, %v2576
  %v6073 = vmul.f32 %v6041, %v2577
  %v6074 = vmul.f32 %v6042, %v2578
  %v6075 = vmul.f32 %v6043, %v2579
  %v6076 = vmul.f32 %v6044, %v2580
  %v6077 = vmul.f32 %v6045, %v2581
  %v6078 = vmul.f32 %v6046, %v2582
  %v6079 = vmul.f32 %v6047, %v2583
  %v6080 = vmul.f32 %v6048, %v2584
  %v6081 = vmul.f32 %v6049, %v2585
  %v6082 = vmul.f32 %v6050, %v2586
  %v6083 = vmul.f32 %v6051, %v2587
  %v6084 = vmul.f32 %v6052, %v2588
  %v6085 = vmul.f32 %v6053, %v2589
  %v6086 = vmul.f32 %v6054, %v2590
  %v6087 = vmul.f32 %v6055, %v2591
  %v6088 = vmul.f32 %v6056, %v2592
  %v6089 = vmul.f32 %v6057, %v2593
  %v6090 = vmul.f32 %v6058, %v2594
  %v6091 = vmul.f32 %v6059, %v2595
  %v6092 = vmul.f32 %v6060, %v2596
  %v6093 = vmul.f32 %v6061, %v2597
  %v6094 = vmul.f32 %v6062, %v2598
  %v6095 = vmul.f32 %v6063, %v2599
  %v6096 = vmul.f32 %v6064, %v2600
  %v6097 = vmul.f32 %v6065, %v2601
  %v6098 = vmul.f32 %v4246, %v6002
  %v6099 = vmul.f32 %v4248, %v6003
  %v6100 = vmul.f32 %v4250, %v6004
  %v6101 = vmul.f32 %v4252, %v6005
  %v6102 = vmul.f32 %v4254, %v6006
  %v6103 = vmul.f32 %v4256, %v6007
  %v6104 = vmul.f32 %v4258, %v6008
  %v6105 = vmul.f32 %v4260, %v6009
  %v6106 = vmul.f32 %v4262, %v6010
  %v6107 = vmul.f32 %v4264, %v6011
  %v6108 = vmul.f32 %v4266, %v6012
  %v6109 = vmul.f32 %v4268, %v6013
  %v6110 = vmul.f32 %v4270, %v6014
  %v6111 = vmul.f32 %v4272, %v6015
  %v6112 = vmul.f32 %v4274, %v6016
  %v6113 = vmul.f32 %v4276, %v6017
  %v6114 = vmul.f32 %v4278, %v6018
  %v6115 = vmul.f32 %v4280, %v6019
  %v6116 = vmul.f32 %v4282, %v6020
  %v6117 = vmul.f32 %v4284, %v6021
  %v6118 = vmul.f32 %v4286, %v6022
  %v6119 = vmul.f32 %v4288, %v6023
  %v6120 = vmul.f32 %v4290, %v6024
  %v6121 = vmul.f32 %v4292, %v6025
  %v6122 = vmul.f32 %v4294, %v6026
  %v6123 = vmul.f32 %v4296, %v6027
  %v6124 = vmul.f32 %v4298, %v6028
  %v6125 = vmul.f32 %v4300, %v6029
  %v6126 = vmul.f32 %v4302, %v6030
  %v6127 = vmul.f32 %v4304, %v6031
  %v6128 = vmul.f32 %v4306, %v6032
  %v6129 = vmul.f32 %v4308, %v6033
  %v6130 = vadd.f32 %v6066, %v6098
  %v6131 = vadd.f32 %v6067, %v6099
  %v6132 = vadd.f32 %v6068, %v6100
  %v6133 = vadd.f32 %v6069, %v6101
  %v6134 = vadd.f32 %v6070, %v6102
  %v6135 = vadd.f32 %v6071, %v6103
  %v6136 = vadd.f32 %v6072, %v6104
  %v6137 = vadd.f32 %v6073, %v6105
  %v6138 = vadd.f32 %v6074, %v6106
  %v6139 = vadd.f32 %v6075, %v6107
  %v6140 = vadd.f32 %v6076, %v6108
  %v6141 = vadd.f32 %v6077, %v6109
  %v6142 = vadd.f32 %v6078, %v6110
  %v6143 = vadd.f32 %v6079, %v6111
  %v6144 = vadd.f32 %v6080, %v6112
  %v6145 = vadd.f32 %v6081, %v6113
  %v6146 = vadd.f32 %v6082, %v6114
  %v6147 = vadd.f32 %v6083, %v6115
  %v6148 = vadd.f32 %v6084, %v6116
  %v6149 = vadd.f32 %v6085, %v6117
  %v6150 = vadd.f32 %v6086, %v6118
  %v6151 = vadd.f32 %v6087, %v6119
  %v6152 = vadd.f32 %v6088, %v6120
  %v6153 = vadd.f32 %v6089, %v6121
  %v6154 = vadd.f32 %v6090, %v6122
  %v6155 = vadd.f32 %v6091, %v6123
  %v6156 = vadd.f32 %v6092, %v6124
  %v6157 = vadd.f32 %v6093, %v6125
  %v6158 = vadd.f32 %v6094, %v6126
  %v6159 = vadd.f32 %v6095, %v6127
  %v6160 = vadd.f32 %v6096, %v6128
  %v6161 = vadd.f32 %v6097, %v6129
  %6162 = vst.msk [vmem:[%s4] sm:$0xff] %vm408, %v6130
  %6163 = vst.msk [vmem:[%s4 + $0x8] sm:$0xff] %vm408, %v6131
  %6164 = vst.msk [vmem:[%s4 + $0x10] sm:$0xff] %vm408, %v6132
  %6165 = vst.msk [vmem:[%s4 + $0x18] sm:$0xff] %vm408, %v6133
  %6166 = vst.msk [vmem:[%s4 + $0x20] sm:$0xff] %vm408, %v6134
  %6167 = vst.msk [vmem:[%s4 + $0x28] sm:$0xff] %vm408, %v6135
  %6168 = vst.msk [vmem:[%s4 + $0x30] sm:$0xff] %vm408, %v6136
  %6169 = vst.msk [vmem:[%s4 + $0x38] sm:$0xff] %vm408, %v6137
  %6170 = vst.msk [vmem:[%s4 + $0x40] sm:$0xff] %vm408, %v6138
  %6171 = vst.msk [vmem:[%s4 + $0x48] sm:$0xff] %vm408, %v6139
  %6172 = vst.msk [vmem:[%s4 + $0x50] sm:$0xff] %vm408, %v6140
  %6173 = vst.msk [vmem:[%s4 + $0x58] sm:$0xff] %vm408, %v6141
  %6174 = vst.msk [vmem:[%s4 + $0x60] sm:$0xff] %vm408, %v6142
  %6175 = vst.msk [vmem:[%s4 + $0x68] sm:$0xff] %vm408, %v6143
  %6176 = vst.msk [vmem:[%s4 + $0x70] sm:$0xff] %vm408, %v6144
  %6177 = vst.msk [vmem:[%s4 + $0x78] sm:$0xff] %vm408, %v6145
  %6178 = vst.msk [vmem:[%s4 + $0x80] sm:$0xff] %vm408, %v6146
  %6179 = vst.msk [vmem:[%s4 + $0x88] sm:$0xff] %vm408, %v6147
  %6180 = vst.msk [vmem:[%s4 + $0x90] sm:$0xff] %vm408, %v6148
  %6181 = vst.msk [vmem:[%s4 + $0x98] sm:$0xff] %vm408, %v6149
  %6182 = vst.msk [vmem:[%s4 + $0xa0] sm:$0xff] %vm408, %v6150
  %6183 = vst.msk [vmem:[%s4 + $0xa8] sm:$0xff] %vm408, %v6151
  %6184 = vst.msk [vmem:[%s4 + $0xb0] sm:$0xff] %vm408, %v6152
  %6185 = vst.msk [vmem:[%s4 + $0xb8] sm:$0xff] %vm408, %v6153
  %6186 = vst.msk [vmem:[%s4 + $0xc0] sm:$0xff] %vm408, %v6154
  %6187 = vst.msk [vmem:[%s4 + $0xc8] sm:$0xff] %vm408, %v6155
  %6188 = vst.msk [vmem:[%s4 + $0xd0] sm:$0xff] %vm408, %v6156
  %6189 = vst.msk [vmem:[%s4 + $0xd8] sm:$0xff] %vm408, %v6157
  %6190 = vst.msk [vmem:[%s4 + $0xe0] sm:$0xff] %vm408, %v6158
  %6191 = vst.msk [vmem:[%s4 + $0xe8] sm:$0xff] %vm408, %v6159
  %6192 = vst.msk [vmem:[%s4 + $0xf0] sm:$0xff] %vm408, %v6160
  %6193 = vst.msk [vmem:[%s4 + $0xf8] sm:$0xff] %vm408, %v6161
  // Predicated region
  $region18: #{sep_conv_gru.1} parent=0 // pred_check
    _
  $region19: #{sep_conv_gru.1} parent=0 // pred_check_branch
    %6195 = sbr.rel (0) target = $region21
  $region20: #{sep_conv_gru.1} parent=0 // pred_region
    _
  $region21: #{sep_conv_gru.1} parent=0 // pred_fallthru
    _
  // Predicated region
  $region22: #{sep_conv_gru.1} parent=0 // pred_check
    _
  $region23: #{sep_conv_gru.1} parent=0 // pred_check_branch
    %6197 = sbr.rel (0) target = $region25
  $region24: #{sep_conv_gru.1} parent=0 // pred_region
    _
  $region25: #{sep_conv_gru.1} parent=0 // pred_fallthru
    _

</llo_original>
